<compile_context>
chip_gen: v7x
topology: tpu7x:2x2x1
jax: 0.10.0
libtpu: 0.0.40
codegen_flags: <defaults>
</compile_context>

<pallas_src>
import functools
import math

import jax
import jax.numpy as jnp
import numpy as np
from jax import lax
from jax.experimental import pallas as pl
from jax.experimental.pallas import tpu as pltpu


def _round_up(x, m):
    return ((x + m - 1) // m) * m


def _pad2(a, rows, cols):
    r, c = a.shape
    return jnp.pad(a, ((0, rows - r), (0, cols - c)))


# ---------------------------------------------------------------------------
# One-time probe: does this backend support (and correctly implement) a strided,
# dynamically-shifted lane rotate?  Used for the relative-position skew; if it is
# unavailable we fall back to a select chain that is still cheaper than the
# original V-way scatter.  The probe also exercises shift amounts > lane count.
# ---------------------------------------------------------------------------
_STRIDED_ROLL_OK = None


def _strided_roll_supported():
    global _STRIDED_ROLL_OK
    if _STRIDED_ROLL_OK is not None:
        return _STRIDED_ROLL_OK

    rows, lanes = 8, 128

    def probe_kernel(x_ref, o_ref):
        s = pl.program_id(0) * 7 + 125                      # dynamic shift, wraps past `lanes`
        o_ref[0] = pltpu.roll(x_ref[...], s, axis=1, stride=1, stride_axis=0)

    try:
        x = jnp.arange(rows * lanes, dtype=jnp.float32).reshape(rows, lanes)
        out = pl.pallas_call(
            probe_kernel,
            out_shape=jax.ShapeDtypeStruct((2, rows, lanes), jnp.float32),
            grid=(2,),
            in_specs=[pl.BlockSpec((rows, lanes), lambda g: (0, 0))],
            out_specs=pl.BlockSpec((1, rows, lanes), lambda g: (g, 0, 0)),
        )(x)
        out = np.asarray(jax.block_until_ready(out))
        xn = np.asarray(x)
        want = np.stack([
            np.stack([np.roll(xn[i], 125 + 7 * g + i) for i in range(rows)])
            for g in range(2)
        ])
        _STRIDED_ROLL_OK = bool(np.allclose(out, want))
    except Exception:
        _STRIDED_ROLL_OK = False
    return _STRIDED_ROLL_OK


def _span_kernel(x_ref, kmask_ref, rel_ref, wq_ref, bq_ref, wk_ref, bk_ref,
                 st_ref, ed_ref, kscr,
                 *, rel_radius, d_model, d_pad, vrows, use_roll_skew):
    """Fused st/ed relative-position attention logits for one (batch, q-tile) grid point.

    x_ref:     (1, Lp, D)       input representations (resident across q-tiles of a batch element)
    kmask_ref: (1, 1, Lp)       int32 key-padding mask (nonzero == masked key)
    rel_ref:   (2, Vr, Dp)      zero-padded relative-position key embeddings [st, ed]
    wq_ref:    (D, 2*Dp)        packed, 128-lane-aligned [Wq_st | Wq_ed]
    bq_ref:    (1, 2*Dp)
    wk_ref:    (D, 2*Dp)        packed, 128-lane-aligned [Wk_st | Wk_ed]
    bk_ref:    (1, 2*Dp)
    st_ref:    (1, TQ, Lp)      start-span logits tile
    ed_ref:    (1, TQ, Lp)      end-span logits tile
    kscr:      (Vr + Lp, 2*Dp)  f32 key-side scratch: rows [0, Vr) = rel embeddings,
                                rows [Vr, Vr+Lp) = key projections (built once per batch element)
    """
    qt = pl.program_id(1)
    Lp = x_ref.shape[1]
    TQ = st_ref.shape[1]
    Dp = d_pad
    R = rel_radius
    V = 2 * R + 1

    # --- once per batch element: key-side projection (and rel rows) into the scratch ------------
    # NOTE: relies on the q-tile grid axis being sequential ("arbitrary"); if that axis is ever
    # split across cores the key scratch must be rebuilt per core.
    @pl.when(qt == 0)
    def _():
        if R > 0:
            kscr[0:vrows, 0:Dp] = rel_ref[0].astype(jnp.float32)
            kscr[0:vrows, Dp:2 * Dp] = rel_ref[1].astype(jnp.float32)
        x_all = x_ref[0].astype(jnp.float32)                                    # (Lp, D)
        kscr[vrows:vrows + Lp, :] = (
            jnp.dot(x_all, wk_ref[...].astype(jnp.float32),
                    preferred_element_type=jnp.float32)
            + bk_ref[...].astype(jnp.float32))

    # --- this q-tile's query projection (cheap; recomputed per tile instead of cached) ----------
    q_start = pl.multiple_of(qt * TQ, TQ)
    x_q = x_ref[0, pl.ds(q_start, TQ), :].astype(jnp.float32)                   # (TQ, D)
    scale = 1.0 / math.sqrt(d_model)
    q_all = (jnp.dot(x_q, wq_ref[...].astype(jnp.float32),
                     preferred_element_type=jnp.float32)
             + bq_ref[...].astype(jnp.float32)) * scale                         # (TQ, 2*Dp)
    q_st = q_all[:, 0:Dp]
    q_ed = q_all[:, Dp:2 * Dp]

    # --- one lane-dense matmul per head over [rel rows | key rows] -------------------------------
    dn = (((1,), (1,)), ((), ()))                       # contract last dims (no k.T relayout)
    out_st = lax.dot_general(q_st, kscr[:, 0:Dp], dn,
                             preferred_element_type=jnp.float32)                # (TQ, Vr+Lp)
    out_ed = lax.dot_general(q_ed, kscr[:, Dp:2 * Dp], dn,
                             preferred_element_type=jnp.float32)

    if R > 0:
        scores_st = out_st[:, vrows:vrows + Lp]
        scores_ed = out_ed[:, vrows:vrows + Lp]

        col = lax.broadcasted_iota(jnp.int32, (TQ, Lp), 1)
        row = q_start + lax.broadcasted_iota(jnp.int32, (TQ, Lp), 0)
        dist = col - row
        left_st, right_st = out_st[:, 0:1], out_st[:, V - 1:V]
        left_ed, right_ed = out_ed[:, 0:1], out_ed[:, V - 1:V]

        if use_roll_skew:
            # Diagonal skew: row i of the rel logits is rotated so that column j holds the bias
            # for relative distance (j - global_row_i); clipped edges fixed with two selects.
            shift = (q_start - R) % Lp
            skew_st = pltpu.roll(out_st[:, 0:Lp], shift, axis=1, stride=1, stride_axis=0)
            skew_ed = pltpu.roll(out_ed[:, 0:Lp], shift, axis=1, stride=1, stride_axis=0)
            bias_st = jnp.where(dist < -R, left_st, jnp.where(dist > R, right_st, skew_st))
            bias_ed = jnp.where(dist < -R, left_ed, jnp.where(dist > R, right_ed, skew_ed))
        else:
            # Fallback: monotonic threshold chain (V-1 shared compares, one select per head each,
            # no adds / live accumulators) -- still ~2x cheaper than the original V-way scatter.
            bias_st, bias_ed = left_st, left_ed
            for r in range(1, V):
                sel = dist >= (r - R)
                bias_st = jnp.where(sel, out_st[:, r:r + 1], bias_st)
                bias_ed = jnp.where(sel, out_ed[:, r:r + 1], bias_ed)

        scores_st = scores_st + bias_st
        scores_ed = scores_ed + bias_ed
    else:
        scores_st = out_st
        scores_ed = out_ed

    masked = kmask_ref[0] != 0                          # (1, Lp) -- broadcasts over query rows
    st_ref[0] = jnp.where(masked, -1e18, scores_st).astype(st_ref.dtype)
    ed_ref[0] = jnp.where(masked, -1e18, scores_ed).astype(ed_ref.dtype)


def _choose_query_tile(Lp, query_tile):
    if query_tile is not None:
        tq = int(query_tile)
    else:
        # 128 keeps vreg / vst pressure comfortable on v5e; long sequences on v6e/v7x get 256.
        tq = 256 if (Lp % 256 == 0 and Lp >= 1024) else 128
    tq = min(tq, Lp)
    if Lp % tq != 0:
        tq = 128 if Lp % 128 == 0 else Lp
    return tq


def span_attention_logits(x, key_pad_mask, rel_emb, wq, bq, wk, bk, max_relative_position,
                          *, d_pad, v_rows, out_dtype=jnp.float32, query_tile=None):
    """Fused st/ed single-head relative-attention logits.

    x: [B, Lp, D] (Lp a multiple of 128); key_pad_mask: [B, Lp] (nonzero == masked key);
    rel_emb: [2, Vr, Dp]; wq/wk: [D, 2*Dp]; bq/bk: [1, 2*Dp].
    Returns (st_logits, ed_logits), each [B, Lp, Lp] in `out_dtype`.
    """
    B, Lp, D = x.shape
    R = int(max_relative_position)
    Dp = int(d_pad)
    Vr = int(v_rows)
    TQ = _choose_query_tile(Lp, query_tile)
    n_qt = Lp // TQ
    KROWS = Vr + Lp
    out_bytes = jnp.dtype(out_dtype).itemsize

    use_roll = (R > 0) and _strided_roll_supported()

    kmask = key_pad_mask.reshape(B, 1, Lp).astype(jnp.int32)
    kernel = functools.partial(_span_kernel, rel_radius=R, d_model=D, d_pad=Dp, vrows=Vr,
                               use_roll_skew=use_roll)

    # VMEM budget from the actual footprint (scratch + double-buffered blocks), capped below
    # physical VMEM so Mosaic keeps headroom for its own scratch.
    x_bytes = jnp.dtype(x.dtype).itemsize
    blk_bytes = (Lp * D * x_bytes                       # resident x block
                 + Lp * 4                               # key-padding mask
                 + 2 * Vr * Dp * 4                      # rel embeddings
                 + 2 * (D * 2 * Dp + 2 * Dp) * 4        # packed q / k weights + biases
                 + 2 * TQ * Lp * out_bytes)             # two output tiles
    scr_bytes = KROWS * 2 * Dp * 4
    need = scr_bytes + 2 * blk_bytes + (4 << 20)
    try:
        phys = int(pltpu.get_tpu_info().vmem_capacity_bytes)
    except Exception:
        phys = 64 << 20                                 # conservative (v7x-sized) fallback
    vmem_limit = int(min(max(need, 32 << 20), (phys * 7) // 8))
    # TODO(synk): for very large L*D on v7x (64 MiB VMEM) the resident x block should move to
    # pl.ANY + a manual DMA under the qt==0 branch, and B==1 workloads should core-split the
    # q-tile axis (rebuilding the key scratch per core).

    flops = int(B * (2 * Lp * D * 2 * Dp               # key projection
                     + 2 * Lp * D * 2 * Dp             # query projection (summed over tiles)
                     + 2 * 2 * Lp * KROWS * Dp))       # two heads' score matmuls
    bytes_accessed = int(B * Lp * D * x_bytes + B * Lp * 4 + 2 * Vr * Dp * 4
                         + 2 * (D * 2 * Dp + 2 * Dp) * 4
                         + 2 * B * Lp * Lp * out_bytes)

    st, ed = pl.pallas_call(
        kernel,
        out_shape=(jax.ShapeDtypeStruct((B, Lp, Lp), out_dtype),
                   jax.ShapeDtypeStruct((B, Lp, Lp), out_dtype)),
        grid=(B, n_qt),
        in_specs=[
            pl.BlockSpec((1, Lp, D), lambda b, q: (b, 0, 0)),        # x (resident per batch elem)
            pl.BlockSpec((1, 1, Lp), lambda b, q: (b, 0, 0)),        # key-padding mask
            pl.BlockSpec(tuple(rel_emb.shape), lambda b, q: (0, 0, 0)),  # rel embeddings (st, ed)
            pl.BlockSpec((D, 2 * Dp), lambda b, q: (0, 0)),          # Wq (st | ed), lane-aligned
            pl.BlockSpec((1, 2 * Dp), lambda b, q: (0, 0)),          # bq
            pl.BlockSpec((D, 2 * Dp), lambda b, q: (0, 0)),          # Wk (st | ed), lane-aligned
            pl.BlockSpec((1, 2 * Dp), lambda b, q: (0, 0)),          # bk
        ],
        out_specs=(
            pl.BlockSpec((1, TQ, Lp), lambda b, q: (b, q, 0)),       # lane-dense [*, Lp] stores
            pl.BlockSpec((1, TQ, Lp), lambda b, q: (b, q, 0)),
        ),
        scratch_shapes=[pltpu.VMEM((KROWS, 2 * Dp), jnp.float32)],
        compiler_params=pltpu.CompilerParams(
            # q-tile axis must stay sequential ("arbitrary"): the key scratch built at qt == 0 is
            # reused by every later q-tile of the same batch element.
            dimension_semantics=("parallel", "arbitrary"),
            vmem_limit_bytes=vmem_limit,
        ),
        cost_estimate=pl.CostEstimate(flops=flops, transcendentals=0,
                                      bytes_accessed=bytes_accessed),
    )(x, kmask, rel_emb, wq, bq, wk, bk)
    return st, ed


def init_span_classifier_params(key, hidden_dim, max_relative_position):
    """Deterministic synthetic init for the two attention heads (heads=1 => head_dim=hidden_dim)."""
    vocab = 2 * max_relative_position + 1 if max_relative_position > 0 else 1

    def one_head(k):
        kq, kbq, kk, kbk, kr = jax.random.split(k, 5)
        return {
            "wq": jax.random.normal(kq, (hidden_dim, hidden_dim), jnp.float32) * 0.05,
            "bq": jax.random.normal(kbq, (1, hidden_dim), jnp.float32) * 0.05,
            "wk": jax.random.normal(kk, (hidden_dim, hidden_dim), jnp.float32) * 0.05,
            "bk": jax.random.normal(kbk, (1, hidden_dim), jnp.float32) * 0.05,
            "rel_emb": jax.random.normal(kr, (vocab, hidden_dim), jnp.float32) * 0.05,
        }

    kst, ked = jax.random.split(key)
    # TODO(synk): layer_norm / V-projection / final_linear / softmax exist in the torch module but
    # are dead code for the returned logits; not instantiated here.
    return {"st": one_head(kst), "ed": one_head(ked)}


def span_classifier_forward(params, repre, key_pad_mask, max_relative_position,
                            *, out_dtype=jnp.float32, query_tile=None):
    """Matches SpanClassifier.forward: returns (span_st_logits, span_ed_logits), each [B, L, L].

    `key_pad_mask` is [B, L], nonzero == masked key position (the row of the broadcast square mask
    the torch module applies via masked_fill(-1e18)).  `out_dtype=jnp.bfloat16` halves the logits
    write-back (the kernel's roofline once the bias path is cheap) at a small precision cost.
    """
    # TODO(synk): fully general per-query [B, L, L] masks would need a dense-mask kernel variant.
    B, L, D = repre.shape
    R = int(max_relative_position)
    V = 2 * R + 1

    Dp = _round_up(D, 128)                                    # 128-lane aligned segment stride
    Lp = _round_up(max(L, V if R > 0 else 1), 128)            # lane-dense [*, Lp] outputs
    Vr = _round_up(V, 128) if R > 0 else 0                    # rel rows padded (aligned score slice)

    def pack(name):
        a, b = params["st"][name], params["ed"][name]
        return jnp.concatenate([_pad2(a, a.shape[0], Dp), _pad2(b, b.shape[0], Dp)], axis=1)

    wq, bq = pack("wq"), pack("bq")
    wk, bk = pack("wk"), pack("bk")
    if R > 0:
        rel = jnp.stack([_pad2(params["st"]["rel_emb"], Vr, Dp),
                         _pad2(params["ed"]["rel_emb"], Vr, Dp)], axis=0)
    else:
        rel = jnp.zeros((2, 8, Dp), jnp.float32)              # unused dummy

    xr = repre
    mk = key_pad_mask.astype(jnp.int32)
    if Lp != L:
        xr = jnp.pad(xr, ((0, 0), (0, Lp - L), (0, 0)))
        mk = jnp.pad(mk, ((0, 0), (0, Lp - L)), constant_values=1)   # padded keys are masked

    st, ed = span_attention_logits(xr, mk, rel, wq, bq, wk, bk, R,
                                   d_pad=Dp, v_rows=Vr,
                                   out_dtype=out_dtype, query_tile=query_tile)
    if Lp != L:
        st = st[:, :L, :L]
        ed = ed[:, :L, :L]
    return st, ed


def _reference_forward(params, repre, key_pad_mask, max_relative_position):
    """Pure-JAX reference (same math as the torch module's logits path)."""
    B, L, D = repre.shape
    scale = 1.0 / math.sqrt(D)
    if max_relative_position > 0:
        r = jnp.arange(L)
        rpm = jnp.clip(r[None, :] - r[:, None], -max_relative_position,
                       max_relative_position) + max_relative_position

    def one(head):
        q = (repre @ head["wq"] + head["bq"]) * scale
        k = repre @ head["wk"] + head["bk"]
        scores = jnp.einsum("bid,bjd->bij", q, k)
        if max_relative_position > 0:
            relk = head["rel_emb"][rpm]                      # [L, L, D]
            scores = scores + jnp.einsum("bid,ijd->bij", q, relk)
        return jnp.where(key_pad_mask[:, None, :] != 0, -1e18, scores)

    return one(params["st"]), one(params["ed"])


if __name__ == "__main__":
    B, L, D = 2, 8, 32
    max_relative_position = 4

    key = jax.random.PRNGKey(0)
    kp, kx = jax.random.split(key)
    params = init_span_classifier_params(kp, D, max_relative_position)
    repre = jax.random.normal(kx, (B, L, D), jnp.float32)

    # key-padding mask [B, L]; nonzero == masked (pad the last 2 key positions of batch 1)
    key_pad_mask = jnp.zeros((B, L), jnp.int32).at[1, L - 2:].set(1)

    st, ed = span_classifier_forward(params, repre, key_pad_mask, max_relative_position)
    jax.block_until_ready((st, ed))

    st_ref, ed_ref = _reference_forward(params, repre, key_pad_mask, max_relative_position)
    assert st.shape == (B, L, L) and ed.shape == (B, L, L)
    assert np.allclose(np.asarray(st), np.asarray(st_ref), rtol=1e-4, atol=1e-4)
    assert np.allclose(np.asarray(ed), np.asarray(ed_ref), rtol=1e-4, atol=1e-4)

    print("KERNEL_OK")
</pallas_src>

<mosaic_0001>
module attributes {stable_mosaic.version = 11 : i64} {
  func.func @probe_kernel(%arg0: i32, %arg1: memref<8x128xf32, #tpu.memory_space<vmem>>, %arg2: memref<1x8x128xf32, #tpu.memory_space<vmem>>) attributes {dimension_semantics = [#tpu.dimension_semantics<arbitrary>], iteration_bounds = array<i64: 2>, scalar_prefetch = 0 : i64, scratch_operands = 0 : i64, tpu.core_type = #tpu.core_type<tc>, window_params = [{pipeline_mode = #tpu.pipeline_mode<synchronous>, transform_indices = @transform_0, window_bounds = array<i64: 8, 128>}, {transform_indices = @transform_1, window_bounds = array<i64: 1, 8, 128>}]} {
    %c7_i32 = arith.constant 7 : i32
    %0 = arith.muli %arg0, %c7_i32 : i32
    %c125_i32 = arith.constant 125 : i32
    %1 = arith.addi %0, %c125_i32 : i32
    %c0 = arith.constant 0 : index
    %c0_0 = arith.constant 0 : index
    %2 = vector.load %arg1[%c0, %c0_0] : memref<8x128xf32, #tpu.memory_space<vmem>>, vector<8x128xf32>
    %3 = tpu.dynamic_rotate %2 by %1 dim 1 {stride = 1 : si32, stride_dimension = 0 : si32} : vector<8x128xf32>, i32 -> vector<8x128xf32>
    %c0_1 = arith.constant 0 : index
    %c0_2 = arith.constant 0 : index
    %c0_3 = arith.constant 0 : index
    %4 = vector.load %arg2[%c0_1, %c0_2, %c0_3] : memref<1x8x128xf32, #tpu.memory_space<vmem>>, vector<1x8x128xf32>
    %5 = vector.shape_cast %4 : vector<1x8x128xf32> to vector<8x128xf32>
    %6 = vector.shape_cast %3 : vector<8x128xf32> to vector<1x8x128xf32>
    tpu.vector_store %arg2[%c0_1, %c0_2, %c0_3], %6 {strides = array<i32>} : memref<1x8x128xf32, #tpu.memory_space<vmem>>, vector<1x8x128xf32>,
    return
  }
  func.func @transform_0(%arg0: i32) -> (i32, i32) {
    %c0_i32 = arith.constant 0 : i32
    %c0_i32_0 = arith.constant 0 : i32
    %c0_i32_1 = arith.constant 0 : i32
    return %c0_i32, %c0_i32_0 : i32, i32
  }
  func.func @transform_1(%arg0: i32) -> (i32, i32, i32) {
    %c0_i32 = arith.constant 0 : i32
    %c0_i32_0 = arith.constant 0 : i32
    %c0_i32_1 = arith.constant 0 : i32
    return %arg0, %c0_i32, %c0_i32_0 : i32, i32, i32
  }
}

module attributes {stable_mosaic.version = 11 : i64} {
  func.func @_span_kernel(%arg0: i32, %arg1: i32, %arg2: memref<1x128x32xf32, #tpu.memory_space<vmem>>, %arg3: memref<1x1x128xi32, #tpu.memory_space<vmem>>, %arg4: memref<2x128x128xf32, #tpu.memory_space<vmem>>, %arg5: memref<32x256xf32, #tpu.memory_space<vmem>>, %arg6: memref<1x256xf32, #tpu.memory_space<vmem>>, %arg7: memref<32x256xf32, #tpu.memory_space<vmem>>, %arg8: memref<1x256xf32, #tpu.memory_space<vmem>>, %arg9: memref<1x128x128xf32, #tpu.memory_space<vmem>>, %arg10: memref<1x128x128xf32, #tpu.memory_space<vmem>>, %arg11: memref<256x256xf32, #tpu.memory_space<vmem>>) attributes {dimension_semantics = [#tpu.dimension_semantics<parallel>, #tpu.dimension_semantics<arbitrary>], iteration_bounds = array<i64: 2, 1>, scalar_prefetch = 0 : i64, scratch_operands = 1 : i64, tpu.core_type = #tpu.core_type<tc>, window_params = [{transform_indices = @transform_0, window_bounds = array<i64: 1, 128, 32>}, {transform_indices = @transform_1, window_bounds = array<i64: 1, 1, 128>}, {pipeline_mode = #tpu.pipeline_mode<synchronous>, transform_indices = @transform_2, window_bounds = array<i64: 2, 128, 128>}, {pipeline_mode = #tpu.pipeline_mode<synchronous>, transform_indices = @transform_3, window_bounds = array<i64: 32, 256>}, {pipeline_mode = #tpu.pipeline_mode<synchronous>, transform_indices = @transform_4, window_bounds = array<i64: 1, 256>}, {pipeline_mode = #tpu.pipeline_mode<synchronous>, transform_indices = @transform_5, window_bounds = array<i64: 32, 256>}, {pipeline_mode = #tpu.pipeline_mode<synchronous>, transform_indices = @transform_6, window_bounds = array<i64: 1, 256>}, {transform_indices = @transform_7, window_bounds = array<i64: 1, 128, 128>}, {transform_indices = @transform_8, window_bounds = array<i64: 1, 128, 128>}]} {
    %c0_i32 = arith.constant 0 : i32
    %0 = arith.cmpi eq, %arg1, %c0_i32 : i32
    %1 = arith.extui %0 : i1 to i32
    %c0_i32_0 = arith.constant 0 : i32
    %2 = arith.cmpi ne, %1, %c0_i32_0 : i32
    scf.if %2 {
      %c0_25 = arith.constant 0 : index
      %c0_26 = arith.constant 0 : index
      %c0_27 = arith.constant 0 : index
      %134 = vector.load %arg4[%c0_25, %c0_26, %c0_27] : memref<2x128x128xf32, #tpu.memory_space<vmem>>, vector<1x128x128xf32>
      %135 = vector.shape_cast %134 : vector<1x128x128xf32> to vector<128x128xf32>
      %c0_28 = arith.constant 0 : index
      %c0_29 = arith.constant 0 : index
      %136 = vector.load %arg11[%c0_28, %c0_29] : memref<256x256xf32, #tpu.memory_space<vmem>>, vector<128x128xf32>
      tpu.vector_store %arg11[%c0_28, %c0_29], %135 {strides = array<i32>} : memref<256x256xf32, #tpu.memory_space<vmem>>, vector<128x128xf32>,
      %c1 = arith.constant 1 : index
      %c0_30 = arith.constant 0 : index
      %c0_31 = arith.constant 0 : index
      %137 = vector.load %arg4[%c1, %c0_30, %c0_31] : memref<2x128x128xf32, #tpu.memory_space<vmem>>, vector<1x128x128xf32>
      %138 = vector.shape_cast %137 : vector<1x128x128xf32> to vector<128x128xf32>
      %c0_32 = arith.constant 0 : index
      %c128_33 = arith.constant 128 : index
      %139 = vector.load %arg11[%c0_32, %c128_33] : memref<256x256xf32, #tpu.memory_space<vmem>>, vector<128x128xf32>
      tpu.vector_store %arg11[%c0_32, %c128_33], %138 {strides = array<i32>} : memref<256x256xf32, #tpu.memory_space<vmem>>, vector<128x128xf32>,
      %c0_34 = arith.constant 0 : index
      %c0_35 = arith.constant 0 : index
      %c0_36 = arith.constant 0 : index
      %140 = vector.load %arg2[%c0_34, %c0_35, %c0_36] : memref<1x128x32xf32, #tpu.memory_space<vmem>>, vector<1x128x32xf32>
      %141 = vector.shape_cast %140 : vector<1x128x32xf32> to vector<128x32xf32>
      %c0_37 = arith.constant 0 : index
      %c0_38 = arith.constant 0 : index
      %142 = vector.load %arg7[%c0_37, %c0_38] : memref<32x256xf32, #tpu.memory_space<vmem>>, vector<32x256xf32>
      %cst_39 = arith.constant dense<0.000000e+00> : vector<128x256xf32>
      %143 = tpu.matmul %141, %142, %cst_39 {dimension_numbers = #tpu.dot_dimension_numbers<[1], [0], [0], [1], [0, 0, 1, 1], [], []>} : vector<128x32xf32>, vector<32x256xf32>, vector<128x256xf32> -> vector<128x256xf32>
      %c0_40 = arith.constant 0 : index
      %c0_41 = arith.constant 0 : index
      %144 = vector.load %arg8[%c0_40, %c0_41] : memref<1x256xf32, #tpu.memory_space<vmem>>, vector<1x256xf32>
      %145 = vector.broadcast %144 : vector<1x256xf32> to vector<128x256xf32>
      %146 = arith.addf %143, %145 : vector<128x256xf32>
      %c128_42 = arith.constant 128 : index
      %c0_43 = arith.constant 0 : index
      %147 = vector.load %arg11[%c128_42, %c0_43] : memref<256x256xf32, #tpu.memory_space<vmem>>, vector<128x256xf32>
      tpu.vector_store %arg11[%c128_42, %c0_43], %146 {strides = array<i32>} : memref<256x256xf32, #tpu.memory_space<vmem>>, vector<128x256xf32>,
    } else {
    }
    %c128_i32 = arith.constant 128 : i32
    %3 = arith.muli %arg1, %c128_i32 : i32
    %4 = tpu.assume_multiple %3, 128 : i32
    %c0 = arith.constant 0 : index
    %5 = arith.index_cast %4 : i32 to index
    %c0_1 = arith.constant 0 : index
    %6 = vector.load %arg2[%c0, %5, %c0_1] : memref<1x128x32xf32, #tpu.memory_space<vmem>>, vector<1x128x32xf32>
    %7 = vector.shape_cast %6 : vector<1x128x32xf32> to vector<128x32xf32>
    %c0_2 = arith.constant 0 : index
    %c0_3 = arith.constant 0 : index
    %8 = vector.load %arg5[%c0_2, %c0_3] : memref<32x256xf32, #tpu.memory_space<vmem>>, vector<32x256xf32>
    %cst = arith.constant dense<0.000000e+00> : vector<128x256xf32>
    %9 = tpu.matmul %7, %8, %cst {dimension_numbers = #tpu.dot_dimension_numbers<[1], [0], [0], [1], [0, 0, 1, 1], [], []>} : vector<128x32xf32>, vector<32x256xf32>, vector<128x256xf32> -> vector<128x256xf32>
    %c0_4 = arith.constant 0 : index
    %c0_5 = arith.constant 0 : index
    %10 = vector.load %arg6[%c0_4, %c0_5] : memref<1x256xf32, #tpu.memory_space<vmem>>, vector<1x256xf32>
    %11 = vector.broadcast %10 : vector<1x256xf32> to vector<128x256xf32>
    %12 = arith.addf %9, %11 : vector<128x256xf32>
    %cst_6 = arith.constant 0.176776692 : f32
    %13 = vector.broadcast %cst_6 : f32 to vector<128x256xf32>
    %14 = arith.mulf %12, %13 : vector<128x256xf32>
    %15 = vector.extract_strided_slice %14 {offsets = [0, 0], sizes = [128, 128], strides = [1, 1]} : vector<128x256xf32> to vector<128x128xf32>
    %16 = vector.extract_strided_slice %14 {offsets = [0, 128], sizes = [128, 128], strides = [1, 1]} : vector<128x256xf32> to vector<128x128xf32>
    %c0_7 = arith.constant 0 : index
    %c0_8 = arith.constant 0 : index
    %17 = vector.load %arg11[%c0_7, %c0_8] : memref<256x256xf32, #tpu.memory_space<vmem>>, vector<256x128xf32>
    %cst_9 = arith.constant dense<0.000000e+00> : vector<128x256xf32>
    %18 = tpu.matmul %15, %17, %cst_9 {dimension_numbers = #tpu.dot_dimension_numbers<[1], [1], [0], [0], [0, 0, 1, 0], [], []>} : vector<128x128xf32>, vector<256x128xf32>, vector<128x256xf32> -> vector<128x256xf32>
    %c0_10 = arith.constant 0 : index
    %c128 = arith.constant 128 : index
    %19 = vector.load %arg11[%c0_10, %c128] : memref<256x256xf32, #tpu.memory_space<vmem>>, vector<256x128xf32>
    %cst_11 = arith.constant dense<0.000000e+00> : vector<128x256xf32>
    %20 = tpu.matmul %16, %19, %cst_11 {dimension_numbers = #tpu.dot_dimension_numbers<[1], [1], [0], [0], [0, 0, 1, 0], [], []>} : vector<128x128xf32>, vector<256x128xf32>, vector<128x256xf32> -> vector<128x256xf32>
    %21 = vector.extract_strided_slice %18 {offsets = [0, 128], sizes = [128, 128], strides = [1, 1]} : vector<128x256xf32> to vector<128x128xf32>
    %22 = vector.extract_strided_slice %20 {offsets = [0, 128], sizes = [128, 128], strides = [1, 1]} : vector<128x256xf32> to vector<128x128xf32>
    %23 = tpu.iota {dimensions = array<i32: 1>} : vector<128x128xi32>
    %24 = tpu.iota {dimensions = array<i32: 0>} : vector<128x128xi32>
    %25 = vector.broadcast %4 : i32 to vector<128x128xi32>
    %26 = arith.addi %25, %24 : vector<128x128xi32>
    %27 = arith.subi %23, %26 : vector<128x128xi32>
    %28 = vector.extract_strided_slice %18 {offsets = [0, 0], sizes = [128, 1], strides = [1, 1]} : vector<128x256xf32> to vector<128x1xf32>
    %29 = vector.extract_strided_slice %20 {offsets = [0, 0], sizes = [128, 1], strides = [1, 1]} : vector<128x256xf32> to vector<128x1xf32>
    %c-3_i32 = arith.constant -3 : i32
    %30 = vector.broadcast %c-3_i32 : i32 to vector<128x128xi32>
    %31 = arith.cmpi sge, %27, %30 : vector<128x128xi32>
    %32 = vector.extract_strided_slice %18 {offsets = [0, 1], sizes = [128, 1], strides = [1, 1]} : vector<128x256xf32> to vector<128x1xf32>
    %33 = vector.shape_cast %32 : vector<128x1xf32> to vector<128x1xf32>
    %34 = vector.broadcast %33 : vector<128x1xf32> to vector<128x128xf32>
    %35 = vector.shape_cast %28 : vector<128x1xf32> to vector<128x1xf32>
    %36 = vector.broadcast %35 : vector<128x1xf32> to vector<128x128xf32>
    %37 = arith.select %31, %34, %36 : vector<128x128xi1>, vector<128x128xf32>
    %38 = vector.extract_strided_slice %20 {offsets = [0, 1], sizes = [128, 1], strides = [1, 1]} : vector<128x256xf32> to vector<128x1xf32>
    %39 = vector.shape_cast %38 : vector<128x1xf32> to vector<128x1xf32>
    %40 = vector.broadcast %39 : vector<128x1xf32> to vector<128x128xf32>
    %41 = vector.shape_cast %29 : vector<128x1xf32> to vector<128x1xf32>
    %42 = vector.broadcast %41 : vector<128x1xf32> to vector<128x128xf32>
    %43 = arith.select %31, %40, %42 : vector<128x128xi1>, vector<128x128xf32>
    %c-2_i32 = arith.constant -2 : i32
    %44 = vector.broadcast %c-2_i32 : i32 to vector<128x128xi32>
    %45 = arith.cmpi sge, %27, %44 : vector<128x128xi32>
    %46 = vector.extract_strided_slice %18 {offsets = [0, 2], sizes = [128, 1], strides = [1, 1]} : vector<128x256xf32> to vector<128x1xf32>
    %47 = vector.shape_cast %46 : vector<128x1xf32> to vector<128x1xf32>
    %48 = vector.broadcast %47 : vector<128x1xf32> to vector<128x128xf32>
    %49 = arith.select %45, %48, %37 : vector<128x128xi1>, vector<128x128xf32>
    %50 = vector.extract_strided_slice %20 {offsets = [0, 2], sizes = [128, 1], strides = [1, 1]} : vector<128x256xf32> to vector<128x1xf32>
    %51 = vector.shape_cast %50 : vector<128x1xf32> to vector<128x1xf32>
    %52 = vector.broadcast %51 : vector<128x1xf32> to vector<128x128xf32>
    %53 = arith.select %45, %52, %43 : vector<128x128xi1>, vector<128x128xf32>
    %c-1_i32 = arith.constant -1 : i32
    %54 = vector.broadcast %c-1_i32 : i32 to vector<128x128xi32>
    %55 = arith.cmpi sge, %27, %54 : vector<128x128xi32>
    %56 = vector.extract_strided_slice %18 {offsets = [0, 3], sizes = [128, 1], strides = [1, 1]} : vector<128x256xf32> to vector<128x1xf32>
    %57 = vector.shape_cast %56 : vector<128x1xf32> to vector<128x1xf32>
    %58 = vector.broadcast %57 : vector<128x1xf32> to vector<128x128xf32>
    %59 = arith.select %55, %58, %49 : vector<128x128xi1>, vector<128x128xf32>
    %60 = vector.extract_strided_slice %20 {offsets = [0, 3], sizes = [128, 1], strides = [1, 1]} : vector<128x256xf32> to vector<128x1xf32>
    %61 = vector.shape_cast %60 : vector<128x1xf32> to vector<128x1xf32>
    %62 = vector.broadcast %61 : vector<128x1xf32> to vector<128x128xf32>
    %63 = arith.select %55, %62, %53 : vector<128x128xi1>, vector<128x128xf32>
    %c0_i32_12 = arith.constant 0 : i32
    %64 = vector.broadcast %c0_i32_12 : i32 to vector<128x128xi32>
    %65 = arith.cmpi sge, %27, %64 : vector<128x128xi32>
    %66 = vector.extract_strided_slice %18 {offsets = [0, 4], sizes = [128, 1], strides = [1, 1]} : vector<128x256xf32> to vector<128x1xf32>
    %67 = vector.shape_cast %66 : vector<128x1xf32> to vector<128x1xf32>
    %68 = vector.broadcast %67 : vector<128x1xf32> to vector<128x128xf32>
    %69 = arith.select %65, %68, %59 : vector<128x128xi1>, vector<128x128xf32>
    %70 = vector.extract_strided_slice %20 {offsets = [0, 4], sizes = [128, 1], strides = [1, 1]} : vector<128x256xf32> to vector<128x1xf32>
    %71 = vector.shape_cast %70 : vector<128x1xf32> to vector<128x1xf32>
    %72 = vector.broadcast %71 : vector<128x1xf32> to vector<128x128xf32>
    %73 = arith.select %65, %72, %63 : vector<128x128xi1>, vector<128x128xf32>
    %c1_i32 = arith.constant 1 : i32
    %74 = vector.broadcast %c1_i32 : i32 to vector<128x128xi32>
    %75 = arith.cmpi sge, %27, %74 : vector<128x128xi32>
    %76 = vector.extract_strided_slice %18 {offsets = [0, 5], sizes = [128, 1], strides = [1, 1]} : vector<128x256xf32> to vector<128x1xf32>
    %77 = vector.shape_cast %76 : vector<128x1xf32> to vector<128x1xf32>
    %78 = vector.broadcast %77 : vector<128x1xf32> to vector<128x128xf32>
    %79 = arith.select %75, %78, %69 : vector<128x128xi1>, vector<128x128xf32>
    %80 = vector.extract_strided_slice %20 {offsets = [0, 5], sizes = [128, 1], strides = [1, 1]} : vector<128x256xf32> to vector<128x1xf32>
    %81 = vector.shape_cast %80 : vector<128x1xf32> to vector<128x1xf32>
    %82 = vector.broadcast %81 : vector<128x1xf32> to vector<128x128xf32>
    %83 = arith.select %75, %82, %73 : vector<128x128xi1>, vector<128x128xf32>
    %c2_i32 = arith.constant 2 : i32
    %84 = vector.broadcast %c2_i32 : i32 to vector<128x128xi32>
    %85 = arith.cmpi sge, %27, %84 : vector<128x128xi32>
    %86 = vector.extract_strided_slice %18 {offsets = [0, 6], sizes = [128, 1], strides = [1, 1]} : vector<128x256xf32> to vector<128x1xf32>
    %87 = vector.shape_cast %86 : vector<128x1xf32> to vector<128x1xf32>
    %88 = vector.broadcast %87 : vector<128x1xf32> to vector<128x128xf32>
    %89 = arith.select %85, %88, %79 : vector<128x128xi1>, vector<128x128xf32>
    %90 = vector.extract_strided_slice %20 {offsets = [0, 6], sizes = [128, 1], strides = [1, 1]} : vector<128x256xf32> to vector<128x1xf32>
    %91 = vector.shape_cast %90 : vector<128x1xf32> to vector<128x1xf32>
    %92 = vector.broadcast %91 : vector<128x1xf32> to vector<128x128xf32>
    %93 = arith.select %85, %92, %83 : vector<128x128xi1>, vector<128x128xf32>
    %c3_i32 = arith.constant 3 : i32
    %94 = vector.broadcast %c3_i32 : i32 to vector<128x128xi32>
    %95 = arith.cmpi sge, %27, %94 : vector<128x128xi32>
    %96 = vector.extract_strided_slice %18 {offsets = [0, 7], sizes = [128, 1], strides = [1, 1]} : vector<128x256xf32> to vector<128x1xf32>
    %97 = vector.shape_cast %96 : vector<128x1xf32> to vector<128x1xf32>
    %98 = vector.broadcast %97 : vector<128x1xf32> to vector<128x128xf32>
    %99 = arith.select %95, %98, %89 : vector<128x128xi1>, vector<128x128xf32>
    %100 = vector.extract_strided_slice %20 {offsets = [0, 7], sizes = [128, 1], strides = [1, 1]} : vector<128x256xf32> to vector<128x1xf32>
    %101 = vector.shape_cast %100 : vector<128x1xf32> to vector<128x1xf32>
    %102 = vector.broadcast %101 : vector<128x1xf32> to vector<128x128xf32>
    %103 = arith.select %95, %102, %93 : vector<128x128xi1>, vector<128x128xf32>
    %c4_i32 = arith.constant 4 : i32
    %104 = vector.broadcast %c4_i32 : i32 to vector<128x128xi32>
    %105 = arith.cmpi sge, %27, %104 : vector<128x128xi32>
    %106 = vector.extract_strided_slice %18 {offsets = [0, 8], sizes = [128, 1], strides = [1, 1]} : vector<128x256xf32> to vector<128x1xf32>
    %107 = vector.shape_cast %106 : vector<128x1xf32> to vector<128x1xf32>
    %108 = vector.broadcast %107 : vector<128x1xf32> to vector<128x128xf32>
    %109 = arith.select %105, %108, %99 : vector<128x128xi1>, vector<128x128xf32>
    %110 = vector.extract_strided_slice %20 {offsets = [0, 8], sizes = [128, 1], strides = [1, 1]} : vector<128x256xf32> to vector<128x1xf32>
    %111 = vector.shape_cast %110 : vector<128x1xf32> to vector<128x1xf32>
    %112 = vector.broadcast %111 : vector<128x1xf32> to vector<128x128xf32>
    %113 = arith.select %105, %112, %103 : vector<128x128xi1>, vector<128x128xf32>
    %114 = arith.addf %21, %109 : vector<128x128xf32>
    %115 = arith.addf %22, %113 : vector<128x128xf32>
    %c0_13 = arith.constant 0 : index
    %c0_14 = arith.constant 0 : index
    %c0_15 = arith.constant 0 : index
    %116 = vector.load %arg3[%c0_13, %c0_14, %c0_15] : memref<1x1x128xi32, #tpu.memory_space<vmem>>, vector<1x1x128xi32>
    %117 = vector.shape_cast %116 : vector<1x1x128xi32> to vector<1x128xi32>
    %c0_i32_16 = arith.constant 0 : i32
    %118 = vector.broadcast %c0_i32_16 : i32 to vector<1x128xi32>
    %119 = arith.cmpi ne, %117, %118 : vector<1x128xi32>
    %cst_17 = arith.constant -9.99999984E+17 : f32
    %120 = vector.shape_cast %119 : vector<1x128xi1> to vector<1x128xi1>
    %121 = vector.broadcast %120 : vector<1x128xi1> to vector<128x128xi1>
    %122 = vector.broadcast %cst_17 : f32 to vector<128x128xf32>
    %123 = arith.select %121, %122, %114 : vector<128x128xi1>, vector<128x128xf32>
    %c0_18 = arith.constant 0 : index
    %c0_19 = arith.constant 0 : index
    %c0_20 = arith.constant 0 : index
    %124 = vector.load %arg9[%c0_18, %c0_19, %c0_20] : memref<1x128x128xf32, #tpu.memory_space<vmem>>, vector<1x128x128xf32>
    %125 = vector.shape_cast %124 : vector<1x128x128xf32> to vector<128x128xf32>
    %126 = vector.shape_cast %123 : vector<128x128xf32> to vector<1x128x128xf32>
    tpu.vector_store %arg9[%c0_18, %c0_19, %c0_20], %126 {strides = array<i32>} : memref<1x128x128xf32, #tpu.memory_space<vmem>>, vector<1x128x128xf32>,
    %cst_21 = arith.constant -9.99999984E+17 : f32
    %127 = vector.shape_cast %119 : vector<1x128xi1> to vector<1x128xi1>
    %128 = vector.broadcast %127 : vector<1x128xi1> to vector<128x128xi1>
    %129 = vector.broadcast %cst_21 : f32 to vector<128x128xf32>
    %130 = arith.select %128, %129, %115 : vector<128x128xi1>, vector<128x128xf32>
    %c0_22 = arith.constant 0 : index
    %c0_23 = arith.constant 0 : index
    %c0_24 = arith.constant 0 : index
    %131 = vector.load %arg10[%c0_22, %c0_23, %c0_24] : memref<1x128x128xf32, #tpu.memory_space<vmem>>, vector<1x128x128xf32>
    %132 = vector.shape_cast %131 : vector<1x128x128xf32> to vector<128x128xf32>
    %133 = vector.shape_cast %130 : vector<128x128xf32> to vector<1x128x128xf32>
    tpu.vector_store %arg10[%c0_22, %c0_23, %c0_24], %133 {strides = array<i32>} : memref<1x128x128xf32, #tpu.memory_space<vmem>>, vector<1x128x128xf32>,
    return
  }
  func.func @transform_0(%arg0: i32, %arg1: i32) -> (i32, i32, i32) {
    %c0_i32 = arith.constant 0 : i32
    %c0_i32_0 = arith.constant 0 : i32
    %c0_i32_1 = arith.constant 0 : i32
    return %arg0, %c0_i32, %c0_i32_0 : i32, i32, i32
  }
  func.func @transform_1(%arg0: i32, %arg1: i32) -> (i32, i32, i32) {
    %c0_i32 = arith.constant 0 : i32
    %c0_i32_0 = arith.constant 0 : i32
    %c0_i32_1 = arith.constant 0 : i32
    return %arg0, %c0_i32, %c0_i32_0 : i32, i32, i32
  }
  func.func @transform_2(%arg0: i32, %arg1: i32) -> (i32, i32, i32) {
    %c0_i32 = arith.constant 0 : i32
    %c0_i32_0 = arith.constant 0 : i32
    %c0_i32_1 = arith.constant 0 : i32
    %c0_i32_2 = arith.constant 0 : i32
    return %c0_i32, %c0_i32_0, %c0_i32_1 : i32, i32, i32
  }
  func.func @transform_3(%arg0: i32, %arg1: i32) -> (i32, i32) {
    %c0_i32 = arith.constant 0 : i32
    %c0_i32_0 = arith.constant 0 : i32
    %c0_i32_1 = arith.constant 0 : i32
    return %c0_i32, %c0_i32_0 : i32, i32
  }
  func.func @transform_4(%arg0: i32, %arg1: i32) -> (i32, i32) {
    %c0_i32 = arith.constant 0 : i32
    %c0_i32_0 = arith.constant 0 : i32
    %c0_i32_1 = arith.constant 0 : i32
    return %c0_i32, %c0_i32_0 : i32, i32
  }
  func.func @transform_5(%arg0: i32, %arg1: i32) -> (i32, i32) {
    %c0_i32 = arith.constant 0 : i32
    %c0_i32_0 = arith.constant 0 : i32
    %c0_i32_1 = arith.constant 0 : i32
    return %c0_i32, %c0_i32_0 : i32, i32
  }
  func.func @transform_6(%arg0: i32, %arg1: i32) -> (i32, i32) {
    %c0_i32 = arith.constant 0 : i32
    %c0_i32_0 = arith.constant 0 : i32
    %c0_i32_1 = arith.constant 0 : i32
    return %c0_i32, %c0_i32_0 : i32, i32
  }
  func.func @transform_7(%arg0: i32, %arg1: i32) -> (i32, i32, i32) {
    %c0_i32 = arith.constant 0 : i32
    %c0_i32_0 = arith.constant 0 : i32
    return %arg0, %arg1, %c0_i32 : i32, i32, i32
  }
  func.func @transform_8(%arg0: i32, %arg1: i32) -> (i32, i32, i32) {
    %c0_i32 = arith.constant 0 : i32
    %c0_i32_0 = arith.constant 0 : i32
    return %arg0, %arg1, %c0_i32 : i32, i32, i32
  }
}

</mosaic_0001>

<llo_original>
// kernel: tpu_custom_call.1
$region0: #{tpu_custom_call.1}
  #allocation0 [shape = 'u32[]', space=smem, size = 0x4, offset = 0x4, fixed_abs, tag = 'smem constant byte address 0x4 - core index']
  #allocation1 [shape = 'u32[144,128]{1,0:T(1,128)}', space=vmem, size = 0x12000, scoped, tag = 'internal scratch']
  %s0 = inlined_call_operand.hbm [shape: f32[8,128], index: 0, kind: input, shape index: {}]
  %s1 = inlined_call_operand.hbm [shape: f32[2,8,128], index: 1, kind: output, shape index: {}]
  %s2 = sld [smem:[#allocation0]]
  $region41: #{tpu_custom_call.1} parent=0
    _
  %s4 = ssub.s32 1, %s2
  %s5 = scalar_select 0, %s4, %s2
  $region1: #{tpu_custom_call.1} parent=0
    #allocation2 [shape = 'u8[4096]{0}', space=vmem, size = 0x1000, scoped, tag = 'input window, operand 0, single buffered']
    #allocation3 [shape = 's32[2]{0}', space=sflag, size = 0x8, scoped, tag = 'scoped memory for tpu_custom_call.1']
    #allocation4 [shape = 's32[2]{0}', space=sflag, size = 0x8, scoped, tag = 'scoped memory for tpu_custom_call.1']
    #allocation5 [shape = 'u8[8192]{0}', space=vmem, size = 0x2000, scoped, tag = 'output window, operand 0']
    %6 = vsyncpa [#allocation3], 0
    %7 = vsyncpa [#allocation4], 0
    %s8 = scalar_lea.sflag [#allocation4], 1
    %9 = vsyncpa %s8, 0
    loop: start=0, step=1, limit=4
    $region2: #{tpu_custom_call.1} parent=1 // loop_pre_header
      _
    $region3: #{tpu_custom_call.1} parent=1 // loop_header
      %s11 = sphi 0, %s15
      %p12 = scmp.ge.s32.totalorder %s11, 4
      %s19 = sphi 0, %s19
      %s21 = sphi 0, %s19
      %s22 = sphi 0, %s21
      %s36 = sphi 0, %s22
      %s42 = sphi 0, %s44
      %s45 = sphi 0, %s42
      %s46 = sphi 0, %s45
      %s62 = sphi 0, %s46
    $region4: #{tpu_custom_call.1} parent=1 // loop_header_branch
      %14 = sbr.rel (%p12) target = $region8
    $region5: #{tpu_custom_call.1} parent=1 // loop_body
      %s16 = ssub.s32 %s11, 1
      %s17 = ssub.s32 %s11, 2
      %s18 = sadd.s32 %s11, 1
      %s20 = sadd.s32 %s19, 1
      %p23 = scmp.eq.s32.totalorder %s11, 1
      %p24 = scmp.ne.s32.totalorder %s19, %s21
      %p25 = scmp.eq.s32.totalorder %s11, 0
      %p26 = por %p24, %p25
      %p27 = scmp.ne.s32.totalorder %s19, %s21
      %p28 = scmp.eq.s32.totalorder %s16, 1
      %p29 = por %p27, %p28
      %p30 = scmp.ne.s32.totalorder %s21, %s22
      %p31 = scmp.eq.s32.totalorder %s16, 0
      %p32 = por %p30, %p31
      %p33 = scmp.ne.s32.totalorder %s21, %s22
      %p34 = scmp.eq.s32.totalorder %s17, 1
      %p35 = por %p33, %p34
      %p37 = scmp.ne.s32.totalorder %s22, %s36
      %p38 = scmp.eq.s32.totalorder %s17, 0
      %p39 = por %p37, %p38
      %s40 = ssub.s32 %s11, %s18
      %p41 = scmp.eq.s32.totalorder %s40, 0
      %s43 = sadd.s32 %s42, 1
      %s44 = scalar_select %p41, %s42, %s43
      %p47 = pneg %p41
      %p48 = scmp.eq.s32.totalorder %s11, 1
      %p49 = por %p47, %p48
      %p50 = scmp.ne.s32.totalorder %s42, %s45
      %p51 = scmp.eq.s32.totalorder %s11, 0
      %p52 = por %p50, %p51
      %p53 = scmp.ne.s32.totalorder %s42, %s45
      %p54 = scmp.eq.s32.totalorder %s16, 1
      %p55 = por %p53, %p54
      %p56 = scmp.ne.s32.totalorder %s45, %s46
      %p57 = scmp.eq.s32.totalorder %s16, 0
      %p58 = por %p56, %p57
      %p59 = scmp.ne.s32.totalorder %s45, %s46
      %p60 = scmp.eq.s32.totalorder %s17, 1
      %p61 = por %p59, %p60
      %p63 = scmp.ne.s32.totalorder %s46, %s62
      %p64 = scmp.eq.s32.totalorder %s17, 0
      %p65 = por %p63, %p64
      %p66 = scmp.le.s32.totalorder 1, %s11
      %p67 = scmp.lt.s32.totalorder %s11, 3
      %p68 = pnand %p66, %p67
      %p69 = pneg %p68
      // Predicated region
      $region9: #{tpu_custom_call.1} parent=5 // pred_check
        _
      $region10: #{tpu_custom_call.1} parent=5 // pred_check_branch
        %71 = sbr.rel (%p68) target = $region12
      $region11: #{tpu_custom_call.1} parent=5 // pred_region
        %s72 = ssub.s32 %s11, 1
        // Predicated region
        $region13: #{tpu_custom_call.1} parent=11 // pred_check
          %p73 = pneg %p32
        $region14: #{tpu_custom_call.1} parent=11 // pred_check_branch
          %75 = sbr.rel (%p73) target = $region16
        $region15: #{tpu_custom_call.1} parent=11 // pred_region
          %s77 = ssub.s32 128, 128
          %78 = vsyncadd [#allocation3], %s77
          %s80 = sshll.u32 [#allocation2], 4
          %s81 = int_to_ptr.vmem [resolvable:$true] %s80
          %83 = dma.hbm_to_vmem [thread:$0]  %s0, 128, %s81, [#allocation3]
        $region16: #{tpu_custom_call.1} parent=11 // pred_fallthru
          _
      $region12: #{tpu_custom_call.1} parent=5 // pred_fallthru
        _
      %p84 = scmp.lt.s32.totalorder %s11, 2
      // Predicated region
      $region17: #{tpu_custom_call.1} parent=5 // pred_check
        %p85 = pneg %p84
      $region18: #{tpu_custom_call.1} parent=5 // pred_check_branch
        %87 = sbr.rel (%p85) target = $region20
      $region19: #{tpu_custom_call.1} parent=5 // pred_region
        _
      $region20: #{tpu_custom_call.1} parent=5 // pred_fallthru
        _
      %p88 = scmp.le.s32.totalorder 1, %s11
      %p89 = scmp.lt.s32.totalorder %s11, 3
      %p90 = pnand %p88, %p89
      %p91 = pneg %p90
      // Predicated region
      $region21: #{tpu_custom_call.1} parent=5 // pred_check
        _
      $region22: #{tpu_custom_call.1} parent=5 // pred_check_branch
        %93 = sbr.rel (%p90) target = $region24
      $region23: #{tpu_custom_call.1} parent=5 // pred_region
        %s94 = ssub.s32 %s11, 1
        // Predicated region
        $region25: #{tpu_custom_call.1} parent=23 // pred_check
          %p95 = pneg %p32
        $region26: #{tpu_custom_call.1} parent=23 // pred_check_branch
          %97 = sbr.rel (%p95) target = $region28
        $region27: #{tpu_custom_call.1} parent=23 // pred_region
          %98 = dma.done [#allocation3], 128
        $region28: #{tpu_custom_call.1} parent=23 // pred_fallthru
          _
        %p99 = pneg %p32
        %p100 = pneg %p29
        %p101 = pneg %p58
        %p102 = pneg %p55
        %s103 = sand.u32 %s45, 1
        %s104 = scalar_lea.sflag [#allocation4], %s103
        %s105 = sand.u32 %s45, 1
        %s106 = smul.addr %s105, 8
        %s107 = scalar_lea.vmem [#allocation5], %s106
        %s108 = smul.u32 %s16, 7
        %s109 = sadd.s32 %s108, 125
        %v110 = vld [vmem:[#allocation2] sm:$0xff]
        %s111 = sand.u32 %s109, 127
        %s112 = sand.u32 %s111, 127
        %s113 = sand.u32 %s112, 127
        %s114 = sand.u32 %s113, 255
        %s116 = sor.u32 256, %s114
        %117 = vrot.lane.b32.xlu0 %v110, %s116
        %v118 = vpop.permute.xlu0 %117
        %119 = vst [vmem:[%s107] sm:$0xff] %v118
        %s120 = sand.u32 %s45, 1
        %s121 = scalar_lea.sflag [#allocation4], %s120
        %s122 = sand.u32 %s45, 1
        %s123 = smul.addr %s122, 8
        %s124 = scalar_lea.vmem [#allocation5], %s123
        // Predicated region
        $region29: #{tpu_custom_call.1} parent=23 // pred_check
          %p125 = pneg %p55
        $region30: #{tpu_custom_call.1} parent=23 // pred_check_branch
          %127 = sbr.rel (%p125) target = $region32
        $region31: #{tpu_custom_call.1} parent=23 // pred_region
          %s129 = ssub.s32 128, 128
          %130 = vsyncadd %s121, %s129
          %s131 = smul.addr %s16, 128
          %s132 = scalar_lea.hbm %s1, %s131
          %s134 = sshll.u32 %s124, 4
          %s135 = int_to_ptr.vmem [resolvable:$true] %s134
          %137 = dma.vmem_to_hbm [thread:$0]  %s135, 128, %s132, %s121
        $region32: #{tpu_custom_call.1} parent=23 // pred_fallthru
          _
      $region24: #{tpu_custom_call.1} parent=5 // pred_fallthru
        _
      %p138 = scmp.le.s32.totalorder 2, %s11
      // Predicated region
      $region33: #{tpu_custom_call.1} parent=5 // pred_check
        %p139 = pneg %p138
      $region34: #{tpu_custom_call.1} parent=5 // pred_check_branch
        %141 = sbr.rel (%p139) target = $region36
      $region35: #{tpu_custom_call.1} parent=5 // pred_region
        %s142 = ssub.s32 %s11, 2
        // Predicated region
        $region37: #{tpu_custom_call.1} parent=35 // pred_check
          %p143 = pneg %p61
        $region38: #{tpu_custom_call.1} parent=35 // pred_check_branch
          %145 = sbr.rel (%p143) target = $region40
        $region39: #{tpu_custom_call.1} parent=35 // pred_region
          %s146 = sand.u32 %s46, 1
          %s147 = scalar_lea.sflag [#allocation4], %s146
          %s148 = sand.u32 %s46, 1
          %s149 = smul.addr %s148, 8
          %s150 = scalar_lea.vmem [#allocation5], %s149
          %151 = dma.done %s147, 128
        $region40: #{tpu_custom_call.1} parent=35 // pred_fallthru
          _
      $region36: #{tpu_custom_call.1} parent=5 // pred_fallthru
        _
    $region6: #{tpu_custom_call.1} parent=1 // loop_footer
      %s15 = sadd.s32 1, %s11
    $region7: #{tpu_custom_call.1} parent=1 // loop_footer_branch
      %10 = sbr.rel target = $region3
    $region8: #{tpu_custom_call.1} parent=1 // loop_exit
      _
    %152 = vsyncpa [#allocation3], 1
    %s153 = scalar_lea.sflag [#allocation3], 1
    %154 = vsyncpa %s153, 1
    %155 = vsyncpa [#allocation4], 1
    %s156 = scalar_lea.sflag [#allocation4], 1
    %157 = vsyncpa %s156, 1

// kernel: tpu_custom_call.1
$region0: #{tpu_custom_call.1}
  #allocation0 [shape = 'u32[]', space=smem, size = 0x4, offset = 0x4, fixed_abs, tag = 'smem constant byte address 0x4 - core index']
  #allocation1 [shape = 'u32[144,128]{1,0:T(1,128)}', space=vmem, size = 0x12000, scoped, tag = 'internal scratch']
  #allocation2 [shape = 'f32[256,256]{1,0:T(8,128)}', space=vmem, size = 0x40000, scoped, tag = 'scratch operand']
  %s0 = inlined_call_operand.vmem [shape: f32[2,128,32], index: 0, kind: input, shape index: {}]
  %s1 = inlined_call_operand.vmem [shape: s32[2,1,128], index: 1, kind: input, shape index: {}]
  %s2 = inlined_call_operand.vmem [shape: f32[2,128,128], index: 2, kind: input, shape index: {}]
  %s3 = inlined_call_operand.vmem [shape: f32[32,256], index: 3, kind: input, shape index: {}]
  %s4 = inlined_call_operand.vmem [shape: f32[1,256], index: 4, kind: input, shape index: {}]
  %s5 = inlined_call_operand.hbm [shape: f32[32,256], index: 5, kind: input, shape index: {}]
  %s6 = inlined_call_operand.vmem [shape: f32[1,256], index: 6, kind: input, shape index: {}]
  %s7 = inlined_call_operand.hbm [shape: f32[2,128,128], index: 7, kind: output, shape index: {0}]
  %s8 = inlined_call_operand.hbm [shape: f32[2,128,128], index: 8, kind: output, shape index: {1}]
  %9 = xla_tuple %s7, %s8
  %s10 = sld [smem:[#allocation0]]
  $region77: #{tpu_custom_call.1} parent=0
    _
  %s12 = ssub.s32 1, %s10
  %s13 = scalar_select 0, %s12, %s10
  $region1: #{tpu_custom_call.1} parent=0
    #allocation3 [shape = 'u8[32768]{0}', space=vmem, size = 0x8000, scoped, tag = 'input window, operand 5, single buffered']
    #allocation4 [shape = 's32[2]{0}', space=sflag, size = 0x8, scoped, tag = 'scoped memory for tpu_custom_call.1']
    #allocation5 [shape = 's32[2]{0}', space=sflag, size = 0x8, scoped, tag = 'scoped memory for tpu_custom_call.1']
    #allocation6 [shape = 'u8[131072]{0}', space=vmem, size = 0x20000, scoped, tag = 'output window, operand 0']
    #allocation7 [shape = 'u8[131072]{0}', space=vmem, size = 0x20000, scoped, tag = 'output window, operand 1']
    #allocation8 [shape = 's32[2]{0}', space=sflag, size = 0x8, scoped, tag = 'scoped memory for tpu_custom_call.1']
    %14 = vsyncpa [#allocation4], 0
    %15 = vsyncpa [#allocation5], 0
    %s16 = scalar_lea.sflag [#allocation5], 1
    %17 = vsyncpa %s16, 0
    %18 = vsyncpa [#allocation8], 0
    %s19 = scalar_lea.sflag [#allocation8], 1
    %20 = vsyncpa %s19, 0
    loop: start=0, step=1, limit=4
    $region2: #{tpu_custom_call.1} parent=1 // loop_pre_header
      _
    $region3: #{tpu_custom_call.1} parent=1 // loop_header
      %s22 = sphi 0, %s26
      %p23 = scmp.ge.s32.totalorder %s22, 4
      %s29 = sphi 0, %s41
      %s30 = sphi 0, %s37
      %s31 = sphi 0, %s29
      %s32 = sphi 0, %s30
      %s33 = sphi 0, %s31
      %s34 = sphi 0, %s32
      %s44 = sphi 0, %s46
      %s47 = sphi 0, %s44
      %s48 = sphi 0, %s47
      %s64 = sphi 0, %s48
      %s70 = sphi 0, %s72
      %s73 = sphi 0, %s70
      %s74 = sphi 0, %s73
      %s90 = sphi 0, %s74
      %s94 = sphi 0, %s94
      %s96 = sphi 0, %s94
      %s97 = sphi 0, %s96
      %s111 = sphi 0, %s97
      %s115 = sphi 0, %s115
      %s117 = sphi 0, %s115
      %s118 = sphi 0, %s117
      %s132 = sphi 0, %s118
      %s136 = sphi 0, %s136
      %s138 = sphi 0, %s136
      %s139 = sphi 0, %s138
      %s153 = sphi 0, %s139
      %s157 = sphi 0, %s157
      %s159 = sphi 0, %s157
      %s160 = sphi 0, %s159
      %s174 = sphi 0, %s160
      %s178 = sphi 0, %s178
      %s180 = sphi 0, %s178
      %s181 = sphi 0, %s180
      %s195 = sphi 0, %s181
      %s203 = sphi 0, %s205
      %s206 = sphi 0, %s203
      %s207 = sphi 0, %s206
      %s223 = sphi 0, %s207
      %s231 = sphi 0, %s233
      %s234 = sphi 0, %s231
      %s235 = sphi 0, %s234
      %s251 = sphi 0, %s235
    $region4: #{tpu_custom_call.1} parent=1 // loop_header_branch
      %25 = sbr.rel (%p23) target = $region8
    $region5: #{tpu_custom_call.1} parent=1 // loop_body
      %s27 = ssub.s32 %s22, 1
      %s28 = ssub.s32 %s22, 2
      %s35 = sadd.s32 1, %s30
      %p36 = scmp.ge.s32.totalorder %s35, 1
      %s37 = scalar_select %p36, 0, %s35
      %s38 = sadd.s32 1, %s29
      %s39 = scalar_select %p36, %s38, %s29
      %p40 = scmp.ge.s32.totalorder %s39, 2
      %s41 = scalar_select %p40, 0, %s39
      %s42 = ssub.s32 %s29, %s41
      %p43 = scmp.eq.s32.totalorder %s42, 0
      %s45 = sadd.s32 %s44, 1
      %s46 = scalar_select %p43, %s44, %s45
      %p49 = pneg %p43
      %p50 = scmp.eq.s32.totalorder %s22, 1
      %p51 = por %p49, %p50
      %p52 = scmp.ne.s32.totalorder %s44, %s47
      %p53 = scmp.eq.s32.totalorder %s22, 0
      %p54 = por %p52, %p53
      %p55 = scmp.ne.s32.totalorder %s44, %s47
      %p56 = scmp.eq.s32.totalorder %s27, 1
      %p57 = por %p55, %p56
      %p58 = scmp.ne.s32.totalorder %s47, %s48
      %p59 = scmp.eq.s32.totalorder %s27, 0
      %p60 = por %p58, %p59
      %p61 = scmp.ne.s32.totalorder %s47, %s48
      %p62 = scmp.eq.s32.totalorder %s28, 1
      %p63 = por %p61, %p62
      %p65 = scmp.ne.s32.totalorder %s48, %s64
      %p66 = scmp.eq.s32.totalorder %s28, 0
      %p67 = por %p65, %p66
      %s68 = ssub.s32 %s29, %s41
      %p69 = scmp.eq.s32.totalorder %s68, 0
      %s71 = sadd.s32 %s70, 1
      %s72 = scalar_select %p69, %s70, %s71
      %p75 = pneg %p69
      %p76 = scmp.eq.s32.totalorder %s22, 1
      %p77 = por %p75, %p76
      %p78 = scmp.ne.s32.totalorder %s70, %s73
      %p79 = scmp.eq.s32.totalorder %s22, 0
      %p80 = por %p78, %p79
      %p81 = scmp.ne.s32.totalorder %s70, %s73
      %p82 = scmp.eq.s32.totalorder %s27, 1
      %p83 = por %p81, %p82
      %p84 = scmp.ne.s32.totalorder %s73, %s74
      %p85 = scmp.eq.s32.totalorder %s27, 0
      %p86 = por %p84, %p85
      %p87 = scmp.ne.s32.totalorder %s73, %s74
      %p88 = scmp.eq.s32.totalorder %s28, 1
      %p89 = por %p87, %p88
      %p91 = scmp.ne.s32.totalorder %s74, %s90
      %p92 = scmp.eq.s32.totalorder %s28, 0
      %p93 = por %p91, %p92
      %s95 = sadd.s32 %s94, 1
      %p98 = scmp.eq.s32.totalorder %s22, 1
      %p99 = scmp.ne.s32.totalorder %s94, %s96
      %p100 = scmp.eq.s32.totalorder %s22, 0
      %p101 = por %p99, %p100
      %p102 = scmp.ne.s32.totalorder %s94, %s96
      %p103 = scmp.eq.s32.totalorder %s27, 1
      %p104 = por %p102, %p103
      %p105 = scmp.ne.s32.totalorder %s96, %s97
      %p106 = scmp.eq.s32.totalorder %s27, 0
      %p107 = por %p105, %p106
      %p108 = scmp.ne.s32.totalorder %s96, %s97
      %p109 = scmp.eq.s32.totalorder %s28, 1
      %p110 = por %p108, %p109
      %p112 = scmp.ne.s32.totalorder %s97, %s111
      %p113 = scmp.eq.s32.totalorder %s28, 0
      %p114 = por %p112, %p113
      %s116 = sadd.s32 %s115, 1
      %p119 = scmp.eq.s32.totalorder %s22, 1
      %p120 = scmp.ne.s32.totalorder %s115, %s117
      %p121 = scmp.eq.s32.totalorder %s22, 0
      %p122 = por %p120, %p121
      %p123 = scmp.ne.s32.totalorder %s115, %s117
      %p124 = scmp.eq.s32.totalorder %s27, 1
      %p125 = por %p123, %p124
      %p126 = scmp.ne.s32.totalorder %s117, %s118
      %p127 = scmp.eq.s32.totalorder %s27, 0
      %p128 = por %p126, %p127
      %p129 = scmp.ne.s32.totalorder %s117, %s118
      %p130 = scmp.eq.s32.totalorder %s28, 1
      %p131 = por %p129, %p130
      %p133 = scmp.ne.s32.totalorder %s118, %s132
      %p134 = scmp.eq.s32.totalorder %s28, 0
      %p135 = por %p133, %p134
      %s137 = sadd.s32 %s136, 1
      %p140 = scmp.eq.s32.totalorder %s22, 1
      %p141 = scmp.ne.s32.totalorder %s136, %s138
      %p142 = scmp.eq.s32.totalorder %s22, 0
      %p143 = por %p141, %p142
      %p144 = scmp.ne.s32.totalorder %s136, %s138
      %p145 = scmp.eq.s32.totalorder %s27, 1
      %p146 = por %p144, %p145
      %p147 = scmp.ne.s32.totalorder %s138, %s139
      %p148 = scmp.eq.s32.totalorder %s27, 0
      %p149 = por %p147, %p148
      %p150 = scmp.ne.s32.totalorder %s138, %s139
      %p151 = scmp.eq.s32.totalorder %s28, 1
      %p152 = por %p150, %p151
      %p154 = scmp.ne.s32.totalorder %s139, %s153
      %p155 = scmp.eq.s32.totalorder %s28, 0
      %p156 = por %p154, %p155
      %s158 = sadd.s32 %s157, 1
      %p161 = scmp.eq.s32.totalorder %s22, 1
      %p162 = scmp.ne.s32.totalorder %s157, %s159
      %p163 = scmp.eq.s32.totalorder %s22, 0
      %p164 = por %p162, %p163
      %p165 = scmp.ne.s32.totalorder %s157, %s159
      %p166 = scmp.eq.s32.totalorder %s27, 1
      %p167 = por %p165, %p166
      %p168 = scmp.ne.s32.totalorder %s159, %s160
      %p169 = scmp.eq.s32.totalorder %s27, 0
      %p170 = por %p168, %p169
      %p171 = scmp.ne.s32.totalorder %s159, %s160
      %p172 = scmp.eq.s32.totalorder %s28, 1
      %p173 = por %p171, %p172
      %p175 = scmp.ne.s32.totalorder %s160, %s174
      %p176 = scmp.eq.s32.totalorder %s28, 0
      %p177 = por %p175, %p176
      %s179 = sadd.s32 %s178, 1
      %p182 = scmp.eq.s32.totalorder %s22, 1
      %p183 = scmp.ne.s32.totalorder %s178, %s180
      %p184 = scmp.eq.s32.totalorder %s22, 0
      %p185 = por %p183, %p184
      %p186 = scmp.ne.s32.totalorder %s178, %s180
      %p187 = scmp.eq.s32.totalorder %s27, 1
      %p188 = por %p186, %p187
      %p189 = scmp.ne.s32.totalorder %s180, %s181
      %p190 = scmp.eq.s32.totalorder %s27, 0
      %p191 = por %p189, %p190
      %p192 = scmp.ne.s32.totalorder %s180, %s181
      %p193 = scmp.eq.s32.totalorder %s28, 1
      %p194 = por %p192, %p193
      %p196 = scmp.ne.s32.totalorder %s181, %s195
      %p197 = scmp.eq.s32.totalorder %s28, 0
      %p198 = por %p196, %p197
      %s199 = ssub.s32 %s29, %s41
      %s200 = ssub.s32 %s30, %s37
      %s201 = sor.u32 %s199, %s200
      %p202 = scmp.eq.s32.totalorder %s201, 0
      %s204 = sadd.s32 %s203, 1
      %s205 = scalar_select %p202, %s203, %s204
      %p208 = pneg %p202
      %p209 = scmp.eq.s32.totalorder %s22, 1
      %p210 = por %p208, %p209
      %p211 = scmp.ne.s32.totalorder %s203, %s206
      %p212 = scmp.eq.s32.totalorder %s22, 0
      %p213 = por %p211, %p212
      %p214 = scmp.ne.s32.totalorder %s203, %s206
      %p215 = scmp.eq.s32.totalorder %s27, 1
      %p216 = por %p214, %p215
      %p217 = scmp.ne.s32.totalorder %s206, %s207
      %p218 = scmp.eq.s32.totalorder %s27, 0
      %p219 = por %p217, %p218
      %p220 = scmp.ne.s32.totalorder %s206, %s207
      %p221 = scmp.eq.s32.totalorder %s28, 1
      %p222 = por %p220, %p221
      %p224 = scmp.ne.s32.totalorder %s207, %s223
      %p225 = scmp.eq.s32.totalorder %s28, 0
      %p226 = por %p224, %p225
      %s227 = ssub.s32 %s29, %s41
      %s228 = ssub.s32 %s30, %s37
      %s229 = sor.u32 %s227, %s228
      %p230 = scmp.eq.s32.totalorder %s229, 0
      %s232 = sadd.s32 %s231, 1
      %s233 = scalar_select %p230, %s231, %s232
      %p236 = pneg %p230
      %p237 = scmp.eq.s32.totalorder %s22, 1
      %p238 = por %p236, %p237
      %p239 = scmp.ne.s32.totalorder %s231, %s234
      %p240 = scmp.eq.s32.totalorder %s22, 0
      %p241 = por %p239, %p240
      %p242 = scmp.ne.s32.totalorder %s231, %s234
      %p243 = scmp.eq.s32.totalorder %s27, 1
      %p244 = por %p242, %p243
      %p245 = scmp.ne.s32.totalorder %s234, %s235
      %p246 = scmp.eq.s32.totalorder %s27, 0
      %p247 = por %p245, %p246
      %p248 = scmp.ne.s32.totalorder %s234, %s235
      %p249 = scmp.eq.s32.totalorder %s28, 1
      %p250 = por %p248, %p249
      %p252 = scmp.ne.s32.totalorder %s235, %s251
      %p253 = scmp.eq.s32.totalorder %s28, 0
      %p254 = por %p252, %p253
      %p255 = scmp.le.s32.totalorder 1, %s22
      %p256 = scmp.lt.s32.totalorder %s22, 3
      %p257 = pnand %p255, %p256
      %p258 = pneg %p257
      // Predicated region
      $region9: #{tpu_custom_call.1} parent=5 // pred_check
        _
      $region10: #{tpu_custom_call.1} parent=5 // pred_check_branch
        %260 = sbr.rel (%p257) target = $region12
      $region11: #{tpu_custom_call.1} parent=5 // pred_region
        %s261 = ssub.s32 %s22, 1
        // Predicated region
        $region13: #{tpu_custom_call.1} parent=11 // pred_check
          %p262 = pneg %p107
        $region14: #{tpu_custom_call.1} parent=11 // pred_check_branch
          %264 = sbr.rel (%p262) target = $region16
        $region15: #{tpu_custom_call.1} parent=11 // pred_region
          _
        $region16: #{tpu_custom_call.1} parent=11 // pred_fallthru
          _
        // Predicated region
        $region17: #{tpu_custom_call.1} parent=11 // pred_check
          %p265 = pneg %p128
        $region18: #{tpu_custom_call.1} parent=11 // pred_check_branch
          %267 = sbr.rel (%p265) target = $region20
        $region19: #{tpu_custom_call.1} parent=11 // pred_region
          _
        $region20: #{tpu_custom_call.1} parent=11 // pred_fallthru
          _
        // Predicated region
        $region21: #{tpu_custom_call.1} parent=11 // pred_check
          %p268 = pneg %p149
        $region22: #{tpu_custom_call.1} parent=11 // pred_check_branch
          %270 = sbr.rel (%p268) target = $region24
        $region23: #{tpu_custom_call.1} parent=11 // pred_region
          _
        $region24: #{tpu_custom_call.1} parent=11 // pred_fallthru
          _
        // Predicated region
        $region25: #{tpu_custom_call.1} parent=11 // pred_check
          %p271 = pneg %p170
        $region26: #{tpu_custom_call.1} parent=11 // pred_check_branch
          %273 = sbr.rel (%p271) target = $region28
        $region27: #{tpu_custom_call.1} parent=11 // pred_region
          %s275 = ssub.s32 1024, 1024
          %276 = vsyncadd [#allocation4], %s275
          %s277 = sshll.u32 [#allocation3], 4
          %s278 = int_to_ptr.vmem [resolvable:$true] %s277
          %283 = dma.hbm_to_vmem [thread:$0]  %s5, 1024, %s278, [#allocation4], 256, 256, 16
        $region28: #{tpu_custom_call.1} parent=11 // pred_fallthru
          _
        // Predicated region
        $region29: #{tpu_custom_call.1} parent=11 // pred_check
          %p284 = pneg %p191
        $region30: #{tpu_custom_call.1} parent=11 // pred_check_branch
          %286 = sbr.rel (%p284) target = $region32
        $region31: #{tpu_custom_call.1} parent=11 // pred_region
          _
        $region32: #{tpu_custom_call.1} parent=11 // pred_fallthru
          _
      $region12: #{tpu_custom_call.1} parent=5 // pred_fallthru
        _
      %p287 = scmp.lt.s32.totalorder %s22, 2
      // Predicated region
      $region33: #{tpu_custom_call.1} parent=5 // pred_check
        %p288 = pneg %p287
      $region34: #{tpu_custom_call.1} parent=5 // pred_check_branch
        %290 = sbr.rel (%p288) target = $region36
      $region35: #{tpu_custom_call.1} parent=5 // pred_region
        // Predicated region
        $region37: #{tpu_custom_call.1} parent=35 // pred_check
          %p291 = pneg %p54
        $region38: #{tpu_custom_call.1} parent=35 // pred_check_branch
          %293 = sbr.rel (%p291) target = $region40
        $region39: #{tpu_custom_call.1} parent=35 // pred_region
          %p294 = scmp.lt.s32.totalorder %s29, 1
          %s295 = scalar_select %p294, %s29, 1
          %s296 = smul.addr %s295, 16
          %s297 = smul.addr %s296, 8
          %s298 = scalar_lea.vmem %s0, %s297
        $region40: #{tpu_custom_call.1} parent=35 // pred_fallthru
          _
        // Predicated region
        $region41: #{tpu_custom_call.1} parent=35 // pred_check
          %p299 = pneg %p80
        $region42: #{tpu_custom_call.1} parent=35 // pred_check_branch
          %301 = sbr.rel (%p299) target = $region44
        $region43: #{tpu_custom_call.1} parent=35 // pred_region
          %p302 = scmp.lt.s32.totalorder %s29, 1
          %s303 = scalar_select %p302, %s29, 1
          %s304 = scalar_lea.vmem %s1, %s303
        $region44: #{tpu_custom_call.1} parent=35 // pred_fallthru
          _
      $region36: #{tpu_custom_call.1} parent=5 // pred_fallthru
        _
      %p305 = scmp.le.s32.totalorder 1, %s22
      %p306 = scmp.lt.s32.totalorder %s22, 3
      %p307 = pnand %p305, %p306
      %p308 = pneg %p307
      // Predicated region
      $region45: #{tpu_custom_call.1} parent=5 // pred_check
        _
      $region46: #{tpu_custom_call.1} parent=5 // pred_check_branch
        %310 = sbr.rel (%p307) target = $region48
      $region47: #{tpu_custom_call.1} parent=5 // pred_region
        %s311 = ssub.s32 %s22, 1
        // Predicated region
        $region49: #{tpu_custom_call.1} parent=47 // pred_check
          %p312 = pneg %p170
        $region50: #{tpu_custom_call.1} parent=47 // pred_check_branch
          %314 = sbr.rel (%p312) target = $region52
        $region51: #{tpu_custom_call.1} parent=47 // pred_region
          %315 = dma.done [#allocation4], 1024
        $region52: #{tpu_custom_call.1} parent=47 // pred_fallthru
          _
        %p316 = scmp.lt.s32.totalorder %s31, 1
        %s317 = scalar_select %p316, %s31, 1
        %s318 = smul.addr %s317, 16
        %s319 = smul.addr %s318, 8
        %s320 = scalar_lea.vmem %s0, %s319
        %p321 = pneg %p60
        %p322 = pneg %p57
        %p323 = scmp.lt.s32.totalorder %s31, 1
        %s324 = scalar_select %p323, %s31, 1
        %s325 = scalar_lea.vmem %s1, %s324
        %p326 = pneg %p86
        %p327 = pneg %p83
        %p328 = pneg %p107
        %p329 = pneg %p104
        %p330 = pneg %p128
        %p331 = pneg %p125
        %p332 = pneg %p149
        %p333 = pneg %p146
        %p334 = pneg %p170
        %p335 = pneg %p167
        %p336 = pneg %p191
        %p337 = pneg %p188
        %p338 = pneg %p219
        %p339 = pneg %p216
        %s340 = sand.u32 %s206, 1
        %s341 = scalar_lea.sflag [#allocation5], %s340
        %s342 = sand.u32 %s206, 1
        %s343 = smul.addr %s342, 128
        %s344 = scalar_lea.vmem [#allocation6], %s343
        %p345 = pneg %p247
        %p346 = pneg %p244
        %s347 = sand.u32 %s234, 1
        %s348 = scalar_lea.sflag [#allocation8], %s347
        %s349 = sand.u32 %s234, 1
        %s350 = smul.addr %s349, 128
        %s351 = scalar_lea.vmem [#allocation7], %s350
        %p352 = scmp.lt.s32.totalorder %s31, 1
        %s353 = scalar_select %p352, %s31, 1
        %s354 = smul.addr %s353, 16
        %s355 = smul.addr %s354, 8
        %s356 = scalar_lea.vmem %s0, %s355
        %p357 = scmp.lt.s32.totalorder %s31, 1
        %s358 = scalar_select %p357, %s31, 1
        %s359 = scalar_lea.vmem %s1, %s358
        %s360 = smul.u32 16, %s32
        %s361 = smul.u32 16, %s32
        %p362 = scmp.eq.s32.totalorder %s32, 0
        // Predicated region
        $region53: #{tpu_custom_call.1} parent=47 // pred_check
          %p363 = pneg %p362
        $region54: #{tpu_custom_call.1} parent=47 // pred_check_branch
          %365 = sbr.rel (%p363) target = $region56
        $region55: #{tpu_custom_call.1} parent=47 // pred_region
          %v366 = vld [vmem:[%s2] sm:$0xff]
          %v367 = vld [vmem:[%s2 + $0x8] sm:$0xff]
          %v368 = vld [vmem:[%s2 + $0x10] sm:$0xff]
          %v369 = vld [vmem:[%s2 + $0x18] sm:$0xff]
          %v370 = vld [vmem:[%s2 + $0x20] sm:$0xff]
          %v371 = vld [vmem:[%s2 + $0x28] sm:$0xff]
          %v372 = vld [vmem:[%s2 + $0x30] sm:$0xff]
          %v373 = vld [vmem:[%s2 + $0x38] sm:$0xff]
          %v374 = vld [vmem:[%s2 + $0x40] sm:$0xff]
          %v375 = vld [vmem:[%s2 + $0x48] sm:$0xff]
          %v376 = vld [vmem:[%s2 + $0x50] sm:$0xff]
          %v377 = vld [vmem:[%s2 + $0x58] sm:$0xff]
          %v378 = vld [vmem:[%s2 + $0x60] sm:$0xff]
          %v379 = vld [vmem:[%s2 + $0x68] sm:$0xff]
          %v380 = vld [vmem:[%s2 + $0x70] sm:$0xff]
          %v381 = vld [vmem:[%s2 + $0x78] sm:$0xff]
          %382 = vst [vmem:[#allocation2] sm:$0xff] %v366
          %383 = vst [vmem:[#allocation2 + $0x10] sm:$0xff] %v367
          %384 = vst [vmem:[#allocation2 + $0x20] sm:$0xff] %v368
          %385 = vst [vmem:[#allocation2 + $0x30] sm:$0xff] %v369
          %386 = vst [vmem:[#allocation2 + $0x40] sm:$0xff] %v370
          %387 = vst [vmem:[#allocation2 + $0x50] sm:$0xff] %v371
          %388 = vst [vmem:[#allocation2 + $0x60] sm:$0xff] %v372
          %389 = vst [vmem:[#allocation2 + $0x70] sm:$0xff] %v373
          %390 = vst [vmem:[#allocation2 + $0x80] sm:$0xff] %v374
          %391 = vst [vmem:[#allocation2 + $0x90] sm:$0xff] %v375
          %392 = vst [vmem:[#allocation2 + $0xa0] sm:$0xff] %v376
          %393 = vst [vmem:[#allocation2 + $0xb0] sm:$0xff] %v377
          %394 = vst [vmem:[#allocation2 + $0xc0] sm:$0xff] %v378
          %395 = vst [vmem:[#allocation2 + $0xd0] sm:$0xff] %v379
          %396 = vst [vmem:[#allocation2 + $0xe0] sm:$0xff] %v380
          %397 = vst [vmem:[#allocation2 + $0xf0] sm:$0xff] %v381
          %s398 = scalar_lea.vmem %s2, 128
          %v399 = vld [vmem:[%s398] sm:$0xff]
          %v400 = vld [vmem:[%s398 + $0x8] sm:$0xff]
          %v401 = vld [vmem:[%s398 + $0x10] sm:$0xff]
          %v402 = vld [vmem:[%s398 + $0x18] sm:$0xff]
          %v403 = vld [vmem:[%s398 + $0x20] sm:$0xff]
          %v404 = vld [vmem:[%s398 + $0x28] sm:$0xff]
          %v405 = vld [vmem:[%s398 + $0x30] sm:$0xff]
          %v406 = vld [vmem:[%s398 + $0x38] sm:$0xff]
          %v407 = vld [vmem:[%s398 + $0x40] sm:$0xff]
          %v408 = vld [vmem:[%s398 + $0x48] sm:$0xff]
          %v409 = vld [vmem:[%s398 + $0x50] sm:$0xff]
          %v410 = vld [vmem:[%s398 + $0x58] sm:$0xff]
          %v411 = vld [vmem:[%s398 + $0x60] sm:$0xff]
          %v412 = vld [vmem:[%s398 + $0x68] sm:$0xff]
          %v413 = vld [vmem:[%s398 + $0x70] sm:$0xff]
          %v414 = vld [vmem:[%s398 + $0x78] sm:$0xff]
          %415 = vst [vmem:[#allocation2 + $0x8] sm:$0xff] %v399
          %416 = vst [vmem:[#allocation2 + $0x18] sm:$0xff] %v400
          %417 = vst [vmem:[#allocation2 + $0x28] sm:$0xff] %v401
          %418 = vst [vmem:[#allocation2 + $0x38] sm:$0xff] %v402
          %419 = vst [vmem:[#allocation2 + $0x48] sm:$0xff] %v403
          %420 = vst [vmem:[#allocation2 + $0x58] sm:$0xff] %v404
          %421 = vst [vmem:[#allocation2 + $0x68] sm:$0xff] %v405
          %422 = vst [vmem:[#allocation2 + $0x78] sm:$0xff] %v406
          %423 = vst [vmem:[#allocation2 + $0x88] sm:$0xff] %v407
          %424 = vst [vmem:[#allocation2 + $0x98] sm:$0xff] %v408
          %425 = vst [vmem:[#allocation2 + $0xa8] sm:$0xff] %v409
          %426 = vst [vmem:[#allocation2 + $0xb8] sm:$0xff] %v410
          %427 = vst [vmem:[#allocation2 + $0xc8] sm:$0xff] %v411
          %428 = vst [vmem:[#allocation2 + $0xd8] sm:$0xff] %v412
          %429 = vst [vmem:[#allocation2 + $0xe8] sm:$0xff] %v413
          %430 = vst [vmem:[#allocation2 + $0xf8] sm:$0xff] %v414
          %v431 = vld [vmem:[%s356] sm:$0xff]
          %v432 = vld [vmem:[%s356 + $0x8] sm:$0xff]
          %v433 = vld [vmem:[%s356 + $0x10] sm:$0xff]
          %v434 = vld [vmem:[%s356 + $0x18] sm:$0xff]
          %v435 = vld [vmem:[%s356 + $0x20] sm:$0xff]
          %v436 = vld [vmem:[%s356 + $0x28] sm:$0xff]
          %v437 = vld [vmem:[%s356 + $0x30] sm:$0xff]
          %v438 = vld [vmem:[%s356 + $0x38] sm:$0xff]
          %v439 = vld [vmem:[%s356 + $0x40] sm:$0xff]
          %v440 = vld [vmem:[%s356 + $0x48] sm:$0xff]
          %v441 = vld [vmem:[%s356 + $0x50] sm:$0xff]
          %v442 = vld [vmem:[%s356 + $0x58] sm:$0xff]
          %v443 = vld [vmem:[%s356 + $0x60] sm:$0xff]
          %v444 = vld [vmem:[%s356 + $0x68] sm:$0xff]
          %v445 = vld [vmem:[%s356 + $0x70] sm:$0xff]
          %v446 = vld [vmem:[%s356 + $0x78] sm:$0xff]
          %v447 = vld [vmem:[#allocation3] sm:$0xff]
          %v448 = vld [vmem:[#allocation3 + $0x8] sm:$0xff]
          %v449 = vld [vmem:[#allocation3 + $0x10] sm:$0xff]
          %v450 = vld [vmem:[#allocation3 + $0x18] sm:$0xff]
          %v451 = vld [vmem:[#allocation3 + $0x20] sm:$0xff]
          %v452 = vld [vmem:[#allocation3 + $0x28] sm:$0xff]
          %v453 = vld [vmem:[#allocation3 + $0x30] sm:$0xff]
          %v454 = vld [vmem:[#allocation3 + $0x38] sm:$0xff]
          %v455 = vld [vmem:[%s6] sm:$0x3]
          %v457 = vlaneseq
          %v458 = vshrl.u32 %v457, 7
          %v459 = vsub.s32 0, %v458
          %v460 = vrot.slane %v455, %v459
          %v461 = vlaneseq
          %v462 = vshrl.u32 %v461, 7
          %v463 = vsub.s32 1, %v462
          %v464 = vrot.slane %v455, %v463
          %vm467 = vcmask 261120
          %v469 = vsel %vm467, %v431, 0
          %v472 = vsel %vm467, %v432, 0
          %v475 = vsel %vm467, %v433, 0
          %v478 = vsel %vm467, %v434, 0
          %v481 = vsel %vm467, %v435, 0
          %v484 = vsel %vm467, %v436, 0
          %v487 = vsel %vm467, %v437, 0
          %v490 = vsel %vm467, %v438, 0
          %v493 = vsel %vm467, %v439, 0
          %v496 = vsel %vm467, %v440, 0
          %v499 = vsel %vm467, %v441, 0
          %v502 = vsel %vm467, %v442, 0
          %v505 = vsel %vm467, %v443, 0
          %v508 = vsel %vm467, %v444, 0
          %v511 = vsel %vm467, %v445, 0
          %v514 = vsel %vm467, %v446, 0
          %516 = vmatprep.subr.mxu0 %v448
          %517 = vmatpush1.msra.mxu0 %v447
          %518 = vmatprep.subr.mxu0 %v450
          %519 = vmatpush1.msra.mxu0 %v449
          %520 = vmatprep.subr.mxu0 %v452
          %521 = vmatpush1.msra.mxu0 %v451
          %522 = vmatprep.subr.mxu0 %v454
          %523 = vmatpush1.msra.mxu0 %v453
          %524 = vmatprep.subr.mxu0 0.0
          %525 = vmatpush1.msra.mxu0 0.0
          %526 = vmatprep.subr.mxu0 0.0
          %527 = vmatpush1.msra.mxu0 0.0
          %528 = vmatprep.subr.mxu0 0.0
          %529 = vmatpush1.msra.mxu0 0.0
          %530 = vmatprep.subr.mxu0 0.0
          %531 = vmatpush1.msra.mxu0 0.0
          %532 = vmatprep.subr.mxu0 0.0
          %533 = vmatpush1.msra.mxu0 0.0
          %534 = vmatprep.subr.mxu0 0.0
          %535 = vmatpush1.msra.mxu0 0.0
          %536 = vmatprep.subr.mxu0 0.0
          %537 = vmatpush1.msra.mxu0 0.0
          %538 = vmatprep.subr.mxu0 0.0
          %539 = vmatpush1.msra.mxu0 0.0
          %540 = vmatprep.subr.mxu0 0.0
          %541 = vmatpush1.msra.mxu0 0.0
          %542 = vmatprep.subr.mxu0 0.0
          %543 = vmatpush1.msra.mxu0 0.0
          %544 = vmatprep.subr.mxu0 0.0
          %545 = vmatpush1.msra.mxu0 0.0
          %546 = vmatprep.subr.mxu0 0.0
          %547 = vmatpush1.msra.mxu0 0.0
          %548 = vmatprep.subr.mxu0 0.0
          %549 = vmatpush1.msra.mxu0 0.0
          %550 = vmatprep.subr.mxu0 0.0
          %551 = vmatpush1.msra.mxu0 0.0
          %552 = vmatprep.subr.mxu0 0.0
          %553 = vmatpush1.msra.mxu0 0.0
          %554 = vmatprep.subr.mxu0 0.0
          %555 = vmatpush1.msra.mxu0 0.0
          %556 = vmatprep.subr.mxu0 0.0
          %557 = vmatpush1.msra.mxu0 0.0
          %558 = vmatprep.subr.mxu0 0.0
          %559 = vmatpush1.msra.mxu0 0.0
          %560 = vmatprep.subr.mxu0 0.0
          %561 = vmatpush1.msra.mxu0 0.0
          %562 = vmatprep.subr.mxu0 0.0
          %563 = vmatpush1.msra.mxu0 0.0
          %564 = vmatprep.subr.mxu0 0.0
          %565 = vmatpush1.msra.mxu0 0.0
          %566 = vmatprep.subr.mxu0 0.0
          %567 = vmatpush1.msra.mxu0 0.0
          %568 = vmatprep.subr.mxu0 0.0
          %569 = vmatpush1.msra.mxu0 0.0
          %570 = vmatprep.subr.mxu0 0.0
          %571 = vmatpush1.msra.mxu0 0.0
          %572 = vmatprep.subr.mxu0 0.0
          %573 = vmatpush1.msra.mxu0 0.0
          %574 = vmatprep.subr.mxu0 0.0
          %575 = vmatpush1.msra.mxu0 0.0
          %576 = vmatprep.subr.mxu0 0.0
          %577 = vmatpush1.msra.mxu0 0.0
          %578 = vmatprep.subr.mxu0 0.0
          %579 = vmatpush1.msra.mxu0 0.0
          %580 = vmatprep.mubr.f32.mxu0 0.0
          %581 = vmatmul.mubr.f32.gmra.mrb[0].mxu0 %v469
          %v582 = vpop.f32.mrb[0].mxu0
          %v583 = vadd.f32 %v460, %v582
          %v584 = vpop.f32.mrb[0].mxu0
          %v585 = vadd.f32 %v464, %v584
          %586 = vmatprep.mubr.f32.mxu0 0.0
          %587 = vmatmul.mubr.f32.gmra.mrb[0].mxu0 %v472
          %v588 = vpop.f32.mrb[0].mxu0
          %v589 = vadd.f32 %v460, %v588
          %v590 = vpop.f32.mrb[0].mxu0
          %v591 = vadd.f32 %v464, %v590
          %592 = vmatprep.mubr.f32.mxu0 0.0
          %593 = vmatmul.mubr.f32.gmra.mrb[0].mxu0 %v475
          %v594 = vpop.f32.mrb[0].mxu0
          %v595 = vadd.f32 %v460, %v594
          %v596 = vpop.f32.mrb[0].mxu0
          %v597 = vadd.f32 %v464, %v596
          %598 = vmatprep.mubr.f32.mxu0 0.0
          %599 = vmatmul.mubr.f32.gmra.mrb[0].mxu0 %v478
          %v600 = vpop.f32.mrb[0].mxu0
          %v601 = vadd.f32 %v460, %v600
          %v602 = vpop.f32.mrb[0].mxu0
          %v603 = vadd.f32 %v464, %v602
          %604 = vmatprep.mubr.f32.mxu0 0.0
          %605 = vmatmul.mubr.f32.gmra.mrb[0].mxu0 %v481
          %v606 = vpop.f32.mrb[0].mxu0
          %v607 = vadd.f32 %v460, %v606
          %v608 = vpop.f32.mrb[0].mxu0
          %v609 = vadd.f32 %v464, %v608
          %610 = vmatprep.mubr.f32.mxu0 0.0
          %611 = vmatmul.mubr.f32.gmra.mrb[0].mxu0 %v484
          %v612 = vpop.f32.mrb[0].mxu0
          %v613 = vadd.f32 %v460, %v612
          %v614 = vpop.f32.mrb[0].mxu0
          %v615 = vadd.f32 %v464, %v614
          %616 = vmatprep.mubr.f32.mxu0 0.0
          %617 = vmatmul.mubr.f32.gmra.mrb[0].mxu0 %v487
          %v618 = vpop.f32.mrb[0].mxu0
          %v619 = vadd.f32 %v460, %v618
          %v620 = vpop.f32.mrb[0].mxu0
          %v621 = vadd.f32 %v464, %v620
          %622 = vmatprep.mubr.f32.mxu0 0.0
          %623 = vmatmul.mubr.f32.gmra.mrb[0].mxu0 %v490
          %v624 = vpop.f32.mrb[0].mxu0
          %v625 = vadd.f32 %v460, %v624
          %v626 = vpop.f32.mrb[0].mxu0
          %v627 = vadd.f32 %v464, %v626
          %628 = vmatprep.mubr.f32.mxu0 0.0
          %629 = vmatmul.mubr.f32.gmra.mrb[0].mxu0 %v493
          %v630 = vpop.f32.mrb[0].mxu0
          %v631 = vadd.f32 %v460, %v630
          %v632 = vpop.f32.mrb[0].mxu0
          %v633 = vadd.f32 %v464, %v632
          %634 = vmatprep.mubr.f32.mxu0 0.0
          %635 = vmatmul.mubr.f32.gmra.mrb[0].mxu0 %v496
          %v636 = vpop.f32.mrb[0].mxu0
          %v637 = vadd.f32 %v460, %v636
          %v638 = vpop.f32.mrb[0].mxu0
          %v639 = vadd.f32 %v464, %v638
          %640 = vmatprep.mubr.f32.mxu0 0.0
          %641 = vmatmul.mubr.f32.gmra.mrb[0].mxu0 %v499
          %v642 = vpop.f32.mrb[0].mxu0
          %v643 = vadd.f32 %v460, %v642
          %v644 = vpop.f32.mrb[0].mxu0
          %v645 = vadd.f32 %v464, %v644
          %646 = vmatprep.mubr.f32.mxu0 0.0
          %647 = vmatmul.mubr.f32.gmra.mrb[0].mxu0 %v502
          %v648 = vpop.f32.mrb[0].mxu0
          %v649 = vadd.f32 %v460, %v648
          %v650 = vpop.f32.mrb[0].mxu0
          %v651 = vadd.f32 %v464, %v650
          %652 = vmatprep.mubr.f32.mxu0 0.0
          %653 = vmatmul.mubr.f32.gmra.mrb[0].mxu0 %v505
          %v654 = vpop.f32.mrb[0].mxu0
          %v655 = vadd.f32 %v460, %v654
          %v656 = vpop.f32.mrb[0].mxu0
          %v657 = vadd.f32 %v464, %v656
          %658 = vmatprep.mubr.f32.mxu0 0.0
          %659 = vmatmul.mubr.f32.gmra.mrb[0].mxu0 %v508
          %v660 = vpop.f32.mrb[0].mxu0
          %v661 = vadd.f32 %v460, %v660
          %v662 = vpop.f32.mrb[0].mxu0
          %v663 = vadd.f32 %v464, %v662
          %664 = vmatprep.mubr.f32.mxu0 0.0
          %665 = vmatmul.mubr.f32.gmra.mrb[0].mxu0 %v511
          %v666 = vpop.f32.mrb[0].mxu0
          %v667 = vadd.f32 %v460, %v666
          %v668 = vpop.f32.mrb[0].mxu0
          %v669 = vadd.f32 %v464, %v668
          %670 = vmatprep.mubr.f32.mxu0 0.0
          %671 = vmatmul.mubr.f32.gmra.mrb[0].mxu0 %v514
          %v672 = vpop.f32.mrb[0].mxu0
          %v673 = vadd.f32 %v460, %v672
          %v674 = vpop.f32.mrb[0].mxu0
          %v675 = vadd.f32 %v464, %v674
          %676 = vdwg.mxu0
          %677 = vst [vmem:[#allocation2 + $0x100] sm:$0xff] %v583
          %678 = vst [vmem:[#allocation2 + $0x108] sm:$0xff] %v585
          %679 = vst [vmem:[#allocation2 + $0x110] sm:$0xff] %v589
          %680 = vst [vmem:[#allocation2 + $0x118] sm:$0xff] %v591
          %681 = vst [vmem:[#allocation2 + $0x120] sm:$0xff] %v595
          %682 = vst [vmem:[#allocation2 + $0x128] sm:$0xff] %v597
          %683 = vst [vmem:[#allocation2 + $0x130] sm:$0xff] %v601
          %684 = vst [vmem:[#allocation2 + $0x138] sm:$0xff] %v603
          %685 = vst [vmem:[#allocation2 + $0x140] sm:$0xff] %v607
          %686 = vst [vmem:[#allocation2 + $0x148] sm:$0xff] %v609
          %687 = vst [vmem:[#allocation2 + $0x150] sm:$0xff] %v613
          %688 = vst [vmem:[#allocation2 + $0x158] sm:$0xff] %v615
          %689 = vst [vmem:[#allocation2 + $0x160] sm:$0xff] %v619
          %690 = vst [vmem:[#allocation2 + $0x168] sm:$0xff] %v621
          %691 = vst [vmem:[#allocation2 + $0x170] sm:$0xff] %v625
          %692 = vst [vmem:[#allocation2 + $0x178] sm:$0xff] %v627
          %693 = vst [vmem:[#allocation2 + $0x180] sm:$0xff] %v631
          %694 = vst [vmem:[#allocation2 + $0x188] sm:$0xff] %v633
          %695 = vst [vmem:[#allocation2 + $0x190] sm:$0xff] %v637
          %696 = vst [vmem:[#allocation2 + $0x198] sm:$0xff] %v639
          %697 = vst [vmem:[#allocation2 + $0x1a0] sm:$0xff] %v643
          %698 = vst [vmem:[#allocation2 + $0x1a8] sm:$0xff] %v645
          %699 = vst [vmem:[#allocation2 + $0x1b0] sm:$0xff] %v649
          %700 = vst [vmem:[#allocation2 + $0x1b8] sm:$0xff] %v651
          %701 = vst [vmem:[#allocation2 + $0x1c0] sm:$0xff] %v655
          %702 = vst [vmem:[#allocation2 + $0x1c8] sm:$0xff] %v657
          %703 = vst [vmem:[#allocation2 + $0x1d0] sm:$0xff] %v661
          %704 = vst [vmem:[#allocation2 + $0x1d8] sm:$0xff] %v663
          %705 = vst [vmem:[#allocation2 + $0x1e0] sm:$0xff] %v667
          %706 = vst [vmem:[#allocation2 + $0x1e8] sm:$0xff] %v669
          %707 = vst [vmem:[#allocation2 + $0x1f0] sm:$0xff] %v673
          %708 = vst [vmem:[#allocation2 + $0x1f8] sm:$0xff] %v675
        $region56: #{tpu_custom_call.1} parent=47 // pred_fallthru
          _
        %s709 = smul.u32 %s32, 128
        %s710 = scalar_lea.vmem %s356, %s709
        %v711 = vld [vmem:[%s710] sm:$0xff]
        %v712 = vld [vmem:[%s710 + $0x8] sm:$0xff]
        %v713 = vld [vmem:[%s710 + $0x10] sm:$0xff]
        %v714 = vld [vmem:[%s710 + $0x18] sm:$0xff]
        %v715 = vld [vmem:[%s710 + $0x20] sm:$0xff]
        %v716 = vld [vmem:[%s710 + $0x28] sm:$0xff]
        %v717 = vld [vmem:[%s710 + $0x30] sm:$0xff]
        %v718 = vld [vmem:[%s710 + $0x38] sm:$0xff]
        %v719 = vld [vmem:[%s710 + $0x40] sm:$0xff]
        %v720 = vld [vmem:[%s710 + $0x48] sm:$0xff]
        %v721 = vld [vmem:[%s710 + $0x50] sm:$0xff]
        %v722 = vld [vmem:[%s710 + $0x58] sm:$0xff]
        %v723 = vld [vmem:[%s710 + $0x60] sm:$0xff]
        %v724 = vld [vmem:[%s710 + $0x68] sm:$0xff]
        %v725 = vld [vmem:[%s710 + $0x70] sm:$0xff]
        %v726 = vld [vmem:[%s710 + $0x78] sm:$0xff]
        %v727 = vld [vmem:[%s3] sm:$0xff]
        %v728 = vld [vmem:[%s3 + $0x8] sm:$0xff]
        %v729 = vld [vmem:[%s3 + $0x10] sm:$0xff]
        %v730 = vld [vmem:[%s3 + $0x18] sm:$0xff]
        %v731 = vld [vmem:[%s3 + $0x20] sm:$0xff]
        %v732 = vld [vmem:[%s3 + $0x28] sm:$0xff]
        %v733 = vld [vmem:[%s3 + $0x30] sm:$0xff]
        %v734 = vld [vmem:[%s3 + $0x38] sm:$0xff]
        %v735 = vld [vmem:[%s4] sm:$0x3]
        %v737 = vlaneseq
        %v738 = vshrl.u32 %v737, 7
        %v739 = vsub.s32 0, %v738
        %v740 = vrot.slane %v735, %v739
        %v741 = vlaneseq
        %v742 = vshrl.u32 %v741, 7
        %v743 = vsub.s32 1, %v742
        %v744 = vrot.slane %v735, %v743
        %vm747 = vcmask 261120
        %v749 = vsel %vm747, %v711, 0
        %v752 = vsel %vm747, %v712, 0
        %v755 = vsel %vm747, %v713, 0
        %v758 = vsel %vm747, %v714, 0
        %v761 = vsel %vm747, %v715, 0
        %v764 = vsel %vm747, %v716, 0
        %v767 = vsel %vm747, %v717, 0
        %v770 = vsel %vm747, %v718, 0
        %v773 = vsel %vm747, %v719, 0
        %v776 = vsel %vm747, %v720, 0
        %v779 = vsel %vm747, %v721, 0
        %v782 = vsel %vm747, %v722, 0
        %v785 = vsel %vm747, %v723, 0
        %v788 = vsel %vm747, %v724, 0
        %v791 = vsel %vm747, %v725, 0
        %v794 = vsel %vm747, %v726, 0
        %796 = vmatprep.subr.mxu0 %v728
        %797 = vmatpush1.msra.mxu0 %v727
        %798 = vmatprep.subr.mxu0 %v730
        %799 = vmatpush1.msra.mxu0 %v729
        %800 = vmatprep.subr.mxu0 %v732
        %801 = vmatpush1.msra.mxu0 %v731
        %802 = vmatprep.subr.mxu0 %v734
        %803 = vmatpush1.msra.mxu0 %v733
        %804 = vmatprep.subr.mxu0 0.0
        %805 = vmatpush1.msra.mxu0 0.0
        %806 = vmatprep.subr.mxu0 0.0
        %807 = vmatpush1.msra.mxu0 0.0
        %808 = vmatprep.subr.mxu0 0.0
        %809 = vmatpush1.msra.mxu0 0.0
        %810 = vmatprep.subr.mxu0 0.0
        %811 = vmatpush1.msra.mxu0 0.0
        %812 = vmatprep.subr.mxu0 0.0
        %813 = vmatpush1.msra.mxu0 0.0
        %814 = vmatprep.subr.mxu0 0.0
        %815 = vmatpush1.msra.mxu0 0.0
        %816 = vmatprep.subr.mxu0 0.0
        %817 = vmatpush1.msra.mxu0 0.0
        %818 = vmatprep.subr.mxu0 0.0
        %819 = vmatpush1.msra.mxu0 0.0
        %820 = vmatprep.subr.mxu0 0.0
        %821 = vmatpush1.msra.mxu0 0.0
        %822 = vmatprep.subr.mxu0 0.0
        %823 = vmatpush1.msra.mxu0 0.0
        %824 = vmatprep.subr.mxu0 0.0
        %825 = vmatpush1.msra.mxu0 0.0
        %826 = vmatprep.subr.mxu0 0.0
        %827 = vmatpush1.msra.mxu0 0.0
        %828 = vmatprep.subr.mxu0 0.0
        %829 = vmatpush1.msra.mxu0 0.0
        %830 = vmatprep.subr.mxu0 0.0
        %831 = vmatpush1.msra.mxu0 0.0
        %832 = vmatprep.subr.mxu0 0.0
        %833 = vmatpush1.msra.mxu0 0.0
        %834 = vmatprep.subr.mxu0 0.0
        %835 = vmatpush1.msra.mxu0 0.0
        %836 = vmatprep.subr.mxu0 0.0
        %837 = vmatpush1.msra.mxu0 0.0
        %838 = vmatprep.subr.mxu0 0.0
        %839 = vmatpush1.msra.mxu0 0.0
        %840 = vmatprep.subr.mxu0 0.0
        %841 = vmatpush1.msra.mxu0 0.0
        %842 = vmatprep.subr.mxu0 0.0
        %843 = vmatpush1.msra.mxu0 0.0
        %844 = vmatprep.subr.mxu0 0.0
        %845 = vmatpush1.msra.mxu0 0.0
        %846 = vmatprep.subr.mxu0 0.0
        %847 = vmatpush1.msra.mxu0 0.0
        %848 = vmatprep.subr.mxu0 0.0
        %849 = vmatpush1.msra.mxu0 0.0
        %850 = vmatprep.subr.mxu0 0.0
        %851 = vmatpush1.msra.mxu0 0.0
        %852 = vmatprep.subr.mxu0 0.0
        %853 = vmatpush1.msra.mxu0 0.0
        %854 = vmatprep.subr.mxu0 0.0
        %855 = vmatpush1.msra.mxu0 0.0
        %856 = vmatprep.subr.mxu0 0.0
        %857 = vmatpush1.msra.mxu0 0.0
        %858 = vmatprep.subr.mxu0 0.0
        %859 = vmatpush1.msra.mxu0 0.0
        %860 = vmatprep.mubr.f32.mxu0 0.0
        %861 = vmatmul.mubr.f32.gmra.mrb[0].mxu0 %v749
        %v862 = vpop.f32.mrb[0].mxu0
        %v863 = vadd.f32 %v740, %v862
        %v864 = vpop.f32.mrb[0].mxu0
        %v865 = vadd.f32 %v744, %v864
        %866 = vmatprep.mubr.f32.mxu0 0.0
        %867 = vmatmul.mubr.f32.gmra.mrb[0].mxu0 %v752
        %v868 = vpop.f32.mrb[0].mxu0
        %v869 = vadd.f32 %v740, %v868
        %v870 = vpop.f32.mrb[0].mxu0
        %v871 = vadd.f32 %v744, %v870
        %872 = vmatprep.mubr.f32.mxu0 0.0
        %873 = vmatmul.mubr.f32.gmra.mrb[0].mxu0 %v755
        %v874 = vpop.f32.mrb[0].mxu0
        %v875 = vadd.f32 %v740, %v874
        %v876 = vpop.f32.mrb[0].mxu0
        %v877 = vadd.f32 %v744, %v876
        %878 = vmatprep.mubr.f32.mxu0 0.0
        %879 = vmatmul.mubr.f32.gmra.mrb[0].mxu0 %v758
        %v880 = vpop.f32.mrb[0].mxu0
        %v881 = vadd.f32 %v740, %v880
        %v882 = vpop.f32.mrb[0].mxu0
        %v883 = vadd.f32 %v744, %v882
        %884 = vmatprep.mubr.f32.mxu0 0.0
        %885 = vmatmul.mubr.f32.gmra.mrb[0].mxu0 %v761
        %v886 = vpop.f32.mrb[0].mxu0
        %v887 = vadd.f32 %v740, %v886
        %v888 = vpop.f32.mrb[0].mxu0
        %v889 = vadd.f32 %v744, %v888
        %890 = vmatprep.mubr.f32.mxu0 0.0
        %891 = vmatmul.mubr.f32.gmra.mrb[0].mxu0 %v764
        %v892 = vpop.f32.mrb[0].mxu0
        %v893 = vadd.f32 %v740, %v892
        %v894 = vpop.f32.mrb[0].mxu0
        %v895 = vadd.f32 %v744, %v894
        %896 = vmatprep.mubr.f32.mxu0 0.0
        %897 = vmatmul.mubr.f32.gmra.mrb[0].mxu0 %v767
        %v898 = vpop.f32.mrb[0].mxu0
        %v899 = vadd.f32 %v740, %v898
        %v900 = vpop.f32.mrb[0].mxu0
        %v901 = vadd.f32 %v744, %v900
        %902 = vmatprep.mubr.f32.mxu0 0.0
        %903 = vmatmul.mubr.f32.gmra.mrb[0].mxu0 %v770
        %v904 = vpop.f32.mrb[0].mxu0
        %v905 = vadd.f32 %v740, %v904
        %v906 = vpop.f32.mrb[0].mxu0
        %v907 = vadd.f32 %v744, %v906
        %908 = vmatprep.mubr.f32.mxu0 0.0
        %909 = vmatmul.mubr.f32.gmra.mrb[0].mxu0 %v773
        %v910 = vpop.f32.mrb[0].mxu0
        %v911 = vadd.f32 %v740, %v910
        %v912 = vpop.f32.mrb[0].mxu0
        %v913 = vadd.f32 %v744, %v912
        %914 = vmatprep.mubr.f32.mxu0 0.0
        %915 = vmatmul.mubr.f32.gmra.mrb[0].mxu0 %v776
        %v916 = vpop.f32.mrb[0].mxu0
        %v917 = vadd.f32 %v740, %v916
        %v918 = vpop.f32.mrb[0].mxu0
        %v919 = vadd.f32 %v744, %v918
        %920 = vmatprep.mubr.f32.mxu0 0.0
        %921 = vmatmul.mubr.f32.gmra.mrb[0].mxu0 %v779
        %v922 = vpop.f32.mrb[0].mxu0
        %v923 = vadd.f32 %v740, %v922
        %v924 = vpop.f32.mrb[0].mxu0
        %v925 = vadd.f32 %v744, %v924
        %926 = vmatprep.mubr.f32.mxu0 0.0
        %927 = vmatmul.mubr.f32.gmra.mrb[0].mxu0 %v782
        %v928 = vpop.f32.mrb[0].mxu0
        %v929 = vadd.f32 %v740, %v928
        %v930 = vpop.f32.mrb[0].mxu0
        %v931 = vadd.f32 %v744, %v930
        %932 = vmatprep.mubr.f32.mxu0 0.0
        %933 = vmatmul.mubr.f32.gmra.mrb[0].mxu0 %v785
        %v934 = vpop.f32.mrb[0].mxu0
        %v935 = vadd.f32 %v740, %v934
        %v936 = vpop.f32.mrb[0].mxu0
        %v937 = vadd.f32 %v744, %v936
        %938 = vmatprep.mubr.f32.mxu0 0.0
        %939 = vmatmul.mubr.f32.gmra.mrb[0].mxu0 %v788
        %v940 = vpop.f32.mrb[0].mxu0
        %v941 = vadd.f32 %v740, %v940
        %v942 = vpop.f32.mrb[0].mxu0
        %v943 = vadd.f32 %v744, %v942
        %944 = vmatprep.mubr.f32.mxu0 0.0
        %945 = vmatmul.mubr.f32.gmra.mrb[0].mxu0 %v791
        %v946 = vpop.f32.mrb[0].mxu0
        %v947 = vadd.f32 %v740, %v946
        %v948 = vpop.f32.mrb[0].mxu0
        %v949 = vadd.f32 %v744, %v948
        %950 = vmatprep.mubr.f32.mxu0 0.0
        %951 = vmatmul.mubr.f32.gmra.mrb[0].mxu0 %v794
        %v952 = vpop.f32.mrb[0].mxu0
        %v953 = vadd.f32 %v740, %v952
        %v954 = vpop.f32.mrb[0].mxu0
        %v955 = vadd.f32 %v744, %v954
        %956 = vdwg.mxu0
        %v957 = vmul.f32 %v863, 0.17677669
        %v958 = vmul.f32 %v865, 0.17677669
        %v959 = vmul.f32 %v869, 0.17677669
        %v960 = vmul.f32 %v871, 0.17677669
        %v961 = vmul.f32 %v875, 0.17677669
        %v962 = vmul.f32 %v877, 0.17677669
        %v963 = vmul.f32 %v881, 0.17677669
        %v964 = vmul.f32 %v883, 0.17677669
        %v965 = vmul.f32 %v887, 0.17677669
        %v966 = vmul.f32 %v889, 0.17677669
        %v967 = vmul.f32 %v893, 0.17677669
        %v968 = vmul.f32 %v895, 0.17677669
        %v969 = vmul.f32 %v899, 0.17677669
        %v970 = vmul.f32 %v901, 0.17677669
        %v971 = vmul.f32 %v905, 0.17677669
        %v972 = vmul.f32 %v907, 0.17677669
        %v973 = vmul.f32 %v911, 0.17677669
        %v974 = vmul.f32 %v913, 0.17677669
        %v975 = vmul.f32 %v917, 0.17677669
        %v976 = vmul.f32 %v919, 0.17677669
        %v977 = vmul.f32 %v923, 0.17677669
        %v978 = vmul.f32 %v925, 0.17677669
        %v979 = vmul.f32 %v929, 0.17677669
        %v980 = vmul.f32 %v931, 0.17677669
        %v981 = vmul.f32 %v935, 0.17677669
        %v982 = vmul.f32 %v937, 0.17677669
        %v983 = vmul.f32 %v941, 0.17677669
        %v984 = vmul.f32 %v943, 0.17677669
        %v985 = vmul.f32 %v947, 0.17677669
        %v986 = vmul.f32 %v949, 0.17677669
        %v987 = vmul.f32 %v953, 0.17677669
        %v988 = vmul.f32 %v955, 0.17677669
        %v989 = vld [vmem:[#allocation2] sm:$0xff]
        %v990 = vld [vmem:[#allocation2 + $0x10] sm:$0xff]
        %v991 = vld [vmem:[#allocation2 + $0x20] sm:$0xff]
        %v992 = vld [vmem:[#allocation2 + $0x30] sm:$0xff]
        %v993 = vld [vmem:[#allocation2 + $0x40] sm:$0xff]
        %v994 = vld [vmem:[#allocation2 + $0x50] sm:$0xff]
        %v995 = vld [vmem:[#allocation2 + $0x60] sm:$0xff]
        %v996 = vld [vmem:[#allocation2 + $0x70] sm:$0xff]
        %v997 = vld [vmem:[#allocation2 + $0x80] sm:$0xff]
        %v998 = vld [vmem:[#allocation2 + $0x90] sm:$0xff]
        %v999 = vld [vmem:[#allocation2 + $0xa0] sm:$0xff]
        %v1000 = vld [vmem:[#allocation2 + $0xb0] sm:$0xff]
        %v1001 = vld [vmem:[#allocation2 + $0xc0] sm:$0xff]
        %v1002 = vld [vmem:[#allocation2 + $0xd0] sm:$0xff]
        %v1003 = vld [vmem:[#allocation2 + $0xe0] sm:$0xff]
        %v1004 = vld [vmem:[#allocation2 + $0xf0] sm:$0xff]
        %v1005 = vld [vmem:[#allocation2 + $0x100] sm:$0xff]
        %v1006 = vld [vmem:[#allocation2 + $0x110] sm:$0xff]
        %v1007 = vld [vmem:[#allocation2 + $0x120] sm:$0xff]
        %v1008 = vld [vmem:[#allocation2 + $0x130] sm:$0xff]
        %v1009 = vld [vmem:[#allocation2 + $0x140] sm:$0xff]
        %v1010 = vld [vmem:[#allocation2 + $0x150] sm:$0xff]
        %v1011 = vld [vmem:[#allocation2 + $0x160] sm:$0xff]
        %v1012 = vld [vmem:[#allocation2 + $0x170] sm:$0xff]
        %v1013 = vld [vmem:[#allocation2 + $0x180] sm:$0xff]
        %v1014 = vld [vmem:[#allocation2 + $0x190] sm:$0xff]
        %v1015 = vld [vmem:[#allocation2 + $0x1a0] sm:$0xff]
        %v1016 = vld [vmem:[#allocation2 + $0x1b0] sm:$0xff]
        %v1017 = vld [vmem:[#allocation2 + $0x1c0] sm:$0xff]
        %v1018 = vld [vmem:[#allocation2 + $0x1d0] sm:$0xff]
        %v1019 = vld [vmem:[#allocation2 + $0x1e0] sm:$0xff]
        %v1020 = vld [vmem:[#allocation2 + $0x1f0] sm:$0xff]
        %1021 = vmatprep.subr.mxu0 0.0
        %1022 = vmatpush1.xpose.msra.mxu0 %v989
        %1023 = vmatprep.subr.mxu0 0.0
        %1024 = vmatpush1.xpose.msra.mxu0 %v990
        %1025 = vmatprep.subr.mxu0 0.0
        %1026 = vmatpush1.xpose.msra.mxu0 %v991
        %1027 = vmatprep.subr.mxu0 0.0
        %1028 = vmatpush1.xpose.msra.mxu0 %v992
        %1029 = vmatprep.subr.mxu0 0.0
        %1030 = vmatpush1.xpose.msra.mxu0 %v993
        %1031 = vmatprep.subr.mxu0 0.0
        %1032 = vmatpush1.xpose.msra.mxu0 %v994
        %1033 = vmatprep.subr.mxu0 0.0
        %1034 = vmatpush1.xpose.msra.mxu0 %v995
        %1035 = vmatprep.subr.mxu0 0.0
        %1036 = vmatpush1.xpose.msra.mxu0 %v996
        %1037 = vmatprep.subr.mxu0 0.0
        %1038 = vmatpush1.xpose.msra.mxu0 %v997
        %1039 = vmatprep.subr.mxu0 0.0
        %1040 = vmatpush1.xpose.msra.mxu0 %v998
        %1041 = vmatprep.subr.mxu0 0.0
        %1042 = vmatpush1.xpose.msra.mxu0 %v999
        %1043 = vmatprep.subr.mxu0 0.0
        %1044 = vmatpush1.xpose.msra.mxu0 %v1000
        %1045 = vmatprep.subr.mxu0 0.0
        %1046 = vmatpush1.xpose.msra.mxu0 %v1001
        %1047 = vmatprep.subr.mxu0 0.0
        %1048 = vmatpush1.xpose.msra.mxu0 %v1002
        %1049 = vmatprep.subr.mxu0 0.0
        %1050 = vmatpush1.xpose.msra.mxu0 %v1003
        %1051 = vmatprep.subr.mxu0 0.0
        %1052 = vmatpush1.xpose.msra.mxu0 %v1004
        %1053 = vmatprep.subr.mxu0 0.0
        %1054 = vmatpush1.xpose.msra.mxu0 %v1005
        %1055 = vmatprep.subr.mxu0 0.0
        %1056 = vmatpush1.xpose.msra.mxu0 %v1006
        %1057 = vmatprep.subr.mxu0 0.0
        %1058 = vmatpush1.xpose.msra.mxu0 %v1007
        %1059 = vmatprep.subr.mxu0 0.0
        %1060 = vmatpush1.xpose.msra.mxu0 %v1008
        %1061 = vmatprep.subr.mxu0 0.0
        %1062 = vmatpush1.xpose.msra.mxu0 %v1009
        %1063 = vmatprep.subr.mxu0 0.0
        %1064 = vmatpush1.xpose.msra.mxu0 %v1010
        %1065 = vmatprep.subr.mxu0 0.0
        %1066 = vmatpush1.xpose.msra.mxu0 %v1011
        %1067 = vmatprep.subr.mxu0 0.0
        %1068 = vmatpush1.xpose.msra.mxu0 %v1012
        %1069 = vmatprep.subr.mxu0 0.0
        %1070 = vmatpush1.xpose.msra.mxu0 %v1013
        %1071 = vmatprep.subr.mxu0 0.0
        %1072 = vmatpush1.xpose.msra.mxu0 %v1014
        %1073 = vmatprep.subr.mxu0 0.0
        %1074 = vmatpush1.xpose.msra.mxu0 %v1015
        %1075 = vmatprep.subr.mxu0 0.0
        %1076 = vmatpush1.xpose.msra.mxu0 %v1016
        %1077 = vmatprep.subr.mxu0 0.0
        %1078 = vmatpush1.xpose.msra.mxu0 %v1017
        %1079 = vmatprep.subr.mxu0 0.0
        %1080 = vmatpush1.xpose.msra.mxu0 %v1018
        %1081 = vmatprep.subr.mxu0 0.0
        %1082 = vmatpush1.xpose.msra.mxu0 %v1019
        %1083 = vmatprep.subr.mxu0 0.0
        %1084 = vmatpush1.xpose.msra.mxu0 %v1020
        %1085 = vmatprep.mubr.f32.mxu0 0.0
        %1086 = vmatmul.mubr.f32.gmra.mrb[0].mxu0 %v957
        %v1087 = vpop.f32.mrb[0].mxu0
        %v1088 = vadd.f32 0.0, %v1087
        %v1089 = vpop.f32.mrb[0].mxu0
        %v1090 = vadd.f32 0.0, %v1089
        %1091 = vmatprep.mubr.f32.mxu0 0.0
        %1092 = vmatmul.mubr.f32.gmra.mrb[0].mxu0 %v959
        %v1093 = vpop.f32.mrb[0].mxu0
        %v1094 = vadd.f32 0.0, %v1093
        %v1095 = vpop.f32.mrb[0].mxu0
        %v1096 = vadd.f32 0.0, %v1095
        %1097 = vmatprep.mubr.f32.mxu0 0.0
        %1098 = vmatmul.mubr.f32.gmra.mrb[0].mxu0 %v961
        %v1099 = vpop.f32.mrb[0].mxu0
        %v1100 = vadd.f32 0.0, %v1099
        %v1101 = vpop.f32.mrb[0].mxu0
        %v1102 = vadd.f32 0.0, %v1101
        %1103 = vmatprep.mubr.f32.mxu0 0.0
        %1104 = vmatmul.mubr.f32.gmra.mrb[0].mxu0 %v963
        %v1105 = vpop.f32.mrb[0].mxu0
        %v1106 = vadd.f32 0.0, %v1105
        %v1107 = vpop.f32.mrb[0].mxu0
        %v1108 = vadd.f32 0.0, %v1107
        %1109 = vmatprep.mubr.f32.mxu0 0.0
        %1110 = vmatmul.mubr.f32.gmra.mrb[0].mxu0 %v965
        %v1111 = vpop.f32.mrb[0].mxu0
        %v1112 = vadd.f32 0.0, %v1111
        %v1113 = vpop.f32.mrb[0].mxu0
        %v1114 = vadd.f32 0.0, %v1113
        %1115 = vmatprep.mubr.f32.mxu0 0.0
        %1116 = vmatmul.mubr.f32.gmra.mrb[0].mxu0 %v967
        %v1117 = vpop.f32.mrb[0].mxu0
        %v1118 = vadd.f32 0.0, %v1117
        %v1119 = vpop.f32.mrb[0].mxu0
        %v1120 = vadd.f32 0.0, %v1119
        %1121 = vmatprep.mubr.f32.mxu0 0.0
        %1122 = vmatmul.mubr.f32.gmra.mrb[0].mxu0 %v969
        %v1123 = vpop.f32.mrb[0].mxu0
        %v1124 = vadd.f32 0.0, %v1123
        %v1125 = vpop.f32.mrb[0].mxu0
        %v1126 = vadd.f32 0.0, %v1125
        %1127 = vmatprep.mubr.f32.mxu0 0.0
        %1128 = vmatmul.mubr.f32.gmra.mrb[0].mxu0 %v971
        %v1129 = vpop.f32.mrb[0].mxu0
        %v1130 = vadd.f32 0.0, %v1129
        %v1131 = vpop.f32.mrb[0].mxu0
        %v1132 = vadd.f32 0.0, %v1131
        %1133 = vmatprep.mubr.f32.mxu0 0.0
        %1134 = vmatmul.mubr.f32.gmra.mrb[0].mxu0 %v973
        %v1135 = vpop.f32.mrb[0].mxu0
        %v1136 = vadd.f32 0.0, %v1135
        %v1137 = vpop.f32.mrb[0].mxu0
        %v1138 = vadd.f32 0.0, %v1137
        %1139 = vmatprep.mubr.f32.mxu0 0.0
        %1140 = vmatmul.mubr.f32.gmra.mrb[0].mxu0 %v975
        %v1141 = vpop.f32.mrb[0].mxu0
        %v1142 = vadd.f32 0.0, %v1141
        %v1143 = vpop.f32.mrb[0].mxu0
        %v1144 = vadd.f32 0.0, %v1143
        %1145 = vmatprep.mubr.f32.mxu0 0.0
        %1146 = vmatmul.mubr.f32.gmra.mrb[0].mxu0 %v977
        %v1147 = vpop.f32.mrb[0].mxu0
        %v1148 = vadd.f32 0.0, %v1147
        %v1149 = vpop.f32.mrb[0].mxu0
        %v1150 = vadd.f32 0.0, %v1149
        %1151 = vmatprep.mubr.f32.mxu0 0.0
        %1152 = vmatmul.mubr.f32.gmra.mrb[0].mxu0 %v979
        %v1153 = vpop.f32.mrb[0].mxu0
        %v1154 = vadd.f32 0.0, %v1153
        %v1155 = vpop.f32.mrb[0].mxu0
        %v1156 = vadd.f32 0.0, %v1155
        %1157 = vmatprep.mubr.f32.mxu0 0.0
        %1158 = vmatmul.mubr.f32.gmra.mrb[0].mxu0 %v981
        %v1159 = vpop.f32.mrb[0].mxu0
        %v1160 = vadd.f32 0.0, %v1159
        %v1161 = vpop.f32.mrb[0].mxu0
        %v1162 = vadd.f32 0.0, %v1161
        %1163 = vmatprep.mubr.f32.mxu0 0.0
        %1164 = vmatmul.mubr.f32.gmra.mrb[0].mxu0 %v983
        %v1165 = vpop.f32.mrb[0].mxu0
        %v1166 = vadd.f32 0.0, %v1165
        %v1167 = vpop.f32.mrb[0].mxu0
        %v1168 = vadd.f32 0.0, %v1167
        %1169 = vmatprep.mubr.f32.mxu0 0.0
        %1170 = vmatmul.mubr.f32.gmra.mrb[0].mxu0 %v985
        %v1171 = vpop.f32.mrb[0].mxu0
        %v1172 = vadd.f32 0.0, %v1171
        %v1173 = vpop.f32.mrb[0].mxu0
        %v1174 = vadd.f32 0.0, %v1173
        %1175 = vmatprep.mubr.f32.mxu0 0.0
        %1176 = vmatmul.mubr.f32.gmra.mrb[0].mxu0 %v987
        %v1177 = vpop.f32.mrb[0].mxu0
        %v1178 = vadd.f32 0.0, %v1177
        %v1179 = vpop.f32.mrb[0].mxu0
        %v1180 = vadd.f32 0.0, %v1179
        %1181 = vdwg.mxu0
        %v1182 = vld [vmem:[#allocation2 + $0x8] sm:$0xff]
        %v1183 = vld [vmem:[#allocation2 + $0x18] sm:$0xff]
        %v1184 = vld [vmem:[#allocation2 + $0x28] sm:$0xff]
        %v1185 = vld [vmem:[#allocation2 + $0x38] sm:$0xff]
        %v1186 = vld [vmem:[#allocation2 + $0x48] sm:$0xff]
        %v1187 = vld [vmem:[#allocation2 + $0x58] sm:$0xff]
        %v1188 = vld [vmem:[#allocation2 + $0x68] sm:$0xff]
        %v1189 = vld [vmem:[#allocation2 + $0x78] sm:$0xff]
        %v1190 = vld [vmem:[#allocation2 + $0x88] sm:$0xff]
        %v1191 = vld [vmem:[#allocation2 + $0x98] sm:$0xff]
        %v1192 = vld [vmem:[#allocation2 + $0xa8] sm:$0xff]
        %v1193 = vld [vmem:[#allocation2 + $0xb8] sm:$0xff]
        %v1194 = vld [vmem:[#allocation2 + $0xc8] sm:$0xff]
        %v1195 = vld [vmem:[#allocation2 + $0xd8] sm:$0xff]
        %v1196 = vld [vmem:[#allocation2 + $0xe8] sm:$0xff]
        %v1197 = vld [vmem:[#allocation2 + $0xf8] sm:$0xff]
        %v1198 = vld [vmem:[#allocation2 + $0x108] sm:$0xff]
        %v1199 = vld [vmem:[#allocation2 + $0x118] sm:$0xff]
        %v1200 = vld [vmem:[#allocation2 + $0x128] sm:$0xff]
        %v1201 = vld [vmem:[#allocation2 + $0x138] sm:$0xff]
        %v1202 = vld [vmem:[#allocation2 + $0x148] sm:$0xff]
        %v1203 = vld [vmem:[#allocation2 + $0x158] sm:$0xff]
        %v1204 = vld [vmem:[#allocation2 + $0x168] sm:$0xff]
        %v1205 = vld [vmem:[#allocation2 + $0x178] sm:$0xff]
        %v1206 = vld [vmem:[#allocation2 + $0x188] sm:$0xff]
        %v1207 = vld [vmem:[#allocation2 + $0x198] sm:$0xff]
        %v1208 = vld [vmem:[#allocation2 + $0x1a8] sm:$0xff]
        %v1209 = vld [vmem:[#allocation2 + $0x1b8] sm:$0xff]
        %v1210 = vld [vmem:[#allocation2 + $0x1c8] sm:$0xff]
        %v1211 = vld [vmem:[#allocation2 + $0x1d8] sm:$0xff]
        %v1212 = vld [vmem:[#allocation2 + $0x1e8] sm:$0xff]
        %v1213 = vld [vmem:[#allocation2 + $0x1f8] sm:$0xff]
        %1214 = vmatprep.subr.mxu0 0.0
        %1215 = vmatpush1.xpose.msra.mxu0 %v1182
        %1216 = vmatprep.subr.mxu0 0.0
        %1217 = vmatpush1.xpose.msra.mxu0 %v1183
        %1218 = vmatprep.subr.mxu0 0.0
        %1219 = vmatpush1.xpose.msra.mxu0 %v1184
        %1220 = vmatprep.subr.mxu0 0.0
        %1221 = vmatpush1.xpose.msra.mxu0 %v1185
        %1222 = vmatprep.subr.mxu0 0.0
        %1223 = vmatpush1.xpose.msra.mxu0 %v1186
        %1224 = vmatprep.subr.mxu0 0.0
        %1225 = vmatpush1.xpose.msra.mxu0 %v1187
        %1226 = vmatprep.subr.mxu0 0.0
        %1227 = vmatpush1.xpose.msra.mxu0 %v1188
        %1228 = vmatprep.subr.mxu0 0.0
        %1229 = vmatpush1.xpose.msra.mxu0 %v1189
        %1230 = vmatprep.subr.mxu0 0.0
        %1231 = vmatpush1.xpose.msra.mxu0 %v1190
        %1232 = vmatprep.subr.mxu0 0.0
        %1233 = vmatpush1.xpose.msra.mxu0 %v1191
        %1234 = vmatprep.subr.mxu0 0.0
        %1235 = vmatpush1.xpose.msra.mxu0 %v1192
        %1236 = vmatprep.subr.mxu0 0.0
        %1237 = vmatpush1.xpose.msra.mxu0 %v1193
        %1238 = vmatprep.subr.mxu0 0.0
        %1239 = vmatpush1.xpose.msra.mxu0 %v1194
        %1240 = vmatprep.subr.mxu0 0.0
        %1241 = vmatpush1.xpose.msra.mxu0 %v1195
        %1242 = vmatprep.subr.mxu0 0.0
        %1243 = vmatpush1.xpose.msra.mxu0 %v1196
        %1244 = vmatprep.subr.mxu0 0.0
        %1245 = vmatpush1.xpose.msra.mxu0 %v1197
        %1246 = vmatprep.subr.mxu0 0.0
        %1247 = vmatpush1.xpose.msra.mxu0 %v1198
        %1248 = vmatprep.subr.mxu0 0.0
        %1249 = vmatpush1.xpose.msra.mxu0 %v1199
        %1250 = vmatprep.subr.mxu0 0.0
        %1251 = vmatpush1.xpose.msra.mxu0 %v1200
        %1252 = vmatprep.subr.mxu0 0.0
        %1253 = vmatpush1.xpose.msra.mxu0 %v1201
        %1254 = vmatprep.subr.mxu0 0.0
        %1255 = vmatpush1.xpose.msra.mxu0 %v1202
        %1256 = vmatprep.subr.mxu0 0.0
        %1257 = vmatpush1.xpose.msra.mxu0 %v1203
        %1258 = vmatprep.subr.mxu0 0.0
        %1259 = vmatpush1.xpose.msra.mxu0 %v1204
        %1260 = vmatprep.subr.mxu0 0.0
        %1261 = vmatpush1.xpose.msra.mxu0 %v1205
        %1262 = vmatprep.subr.mxu0 0.0
        %1263 = vmatpush1.xpose.msra.mxu0 %v1206
        %1264 = vmatprep.subr.mxu0 0.0
        %1265 = vmatpush1.xpose.msra.mxu0 %v1207
        %1266 = vmatprep.subr.mxu0 0.0
        %1267 = vmatpush1.xpose.msra.mxu0 %v1208
        %1268 = vmatprep.subr.mxu0 0.0
        %1269 = vmatpush1.xpose.msra.mxu0 %v1209
        %1270 = vmatprep.subr.mxu0 0.0
        %1271 = vmatpush1.xpose.msra.mxu0 %v1210
        %1272 = vmatprep.subr.mxu0 0.0
        %1273 = vmatpush1.xpose.msra.mxu0 %v1211
        %1274 = vmatprep.subr.mxu0 0.0
        %1275 = vmatpush1.xpose.msra.mxu0 %v1212
        %1276 = vmatprep.subr.mxu0 0.0
        %1277 = vmatpush1.xpose.msra.mxu0 %v1213
        %1278 = vmatprep.mubr.f32.mxu0 0.0
        %1279 = vmatmul.mubr.f32.gmra.mrb[0].mxu0 %v958
        %v1280 = vpop.f32.mrb[0].mxu0
        %v1281 = vadd.f32 0.0, %v1280
        %v1282 = vpop.f32.mrb[0].mxu0
        %v1283 = vadd.f32 0.0, %v1282
        %1284 = vmatprep.mubr.f32.mxu0 0.0
        %1285 = vmatmul.mubr.f32.gmra.mrb[0].mxu0 %v960
        %v1286 = vpop.f32.mrb[0].mxu0
        %v1287 = vadd.f32 0.0, %v1286
        %v1288 = vpop.f32.mrb[0].mxu0
        %v1289 = vadd.f32 0.0, %v1288
        %1290 = vmatprep.mubr.f32.mxu0 0.0
        %1291 = vmatmul.mubr.f32.gmra.mrb[0].mxu0 %v962
        %v1292 = vpop.f32.mrb[0].mxu0
        %v1293 = vadd.f32 0.0, %v1292
        %v1294 = vpop.f32.mrb[0].mxu0
        %v1295 = vadd.f32 0.0, %v1294
        %1296 = vmatprep.mubr.f32.mxu0 0.0
        %1297 = vmatmul.mubr.f32.gmra.mrb[0].mxu0 %v964
        %v1298 = vpop.f32.mrb[0].mxu0
        %v1299 = vadd.f32 0.0, %v1298
        %v1300 = vpop.f32.mrb[0].mxu0
        %v1301 = vadd.f32 0.0, %v1300
        %1302 = vmatprep.mubr.f32.mxu0 0.0
        %1303 = vmatmul.mubr.f32.gmra.mrb[0].mxu0 %v966
        %v1304 = vpop.f32.mrb[0].mxu0
        %v1305 = vadd.f32 0.0, %v1304
        %v1306 = vpop.f32.mrb[0].mxu0
        %v1307 = vadd.f32 0.0, %v1306
        %1308 = vmatprep.mubr.f32.mxu0 0.0
        %1309 = vmatmul.mubr.f32.gmra.mrb[0].mxu0 %v968
        %v1310 = vpop.f32.mrb[0].mxu0
        %v1311 = vadd.f32 0.0, %v1310
        %v1312 = vpop.f32.mrb[0].mxu0
        %v1313 = vadd.f32 0.0, %v1312
        %1314 = vmatprep.mubr.f32.mxu0 0.0
        %1315 = vmatmul.mubr.f32.gmra.mrb[0].mxu0 %v970
        %v1316 = vpop.f32.mrb[0].mxu0
        %v1317 = vadd.f32 0.0, %v1316
        %v1318 = vpop.f32.mrb[0].mxu0
        %v1319 = vadd.f32 0.0, %v1318
        %1320 = vmatprep.mubr.f32.mxu0 0.0
        %1321 = vmatmul.mubr.f32.gmra.mrb[0].mxu0 %v972
        %v1322 = vpop.f32.mrb[0].mxu0
        %v1323 = vadd.f32 0.0, %v1322
        %v1324 = vpop.f32.mrb[0].mxu0
        %v1325 = vadd.f32 0.0, %v1324
        %1326 = vmatprep.mubr.f32.mxu0 0.0
        %1327 = vmatmul.mubr.f32.gmra.mrb[0].mxu0 %v974
        %v1328 = vpop.f32.mrb[0].mxu0
        %v1329 = vadd.f32 0.0, %v1328
        %v1330 = vpop.f32.mrb[0].mxu0
        %v1331 = vadd.f32 0.0, %v1330
        %1332 = vmatprep.mubr.f32.mxu0 0.0
        %1333 = vmatmul.mubr.f32.gmra.mrb[0].mxu0 %v976
        %v1334 = vpop.f32.mrb[0].mxu0
        %v1335 = vadd.f32 0.0, %v1334
        %v1336 = vpop.f32.mrb[0].mxu0
        %v1337 = vadd.f32 0.0, %v1336
        %1338 = vmatprep.mubr.f32.mxu0 0.0
        %1339 = vmatmul.mubr.f32.gmra.mrb[0].mxu0 %v978
        %v1340 = vpop.f32.mrb[0].mxu0
        %v1341 = vadd.f32 0.0, %v1340
        %v1342 = vpop.f32.mrb[0].mxu0
        %v1343 = vadd.f32 0.0, %v1342
        %1344 = vmatprep.mubr.f32.mxu0 0.0
        %1345 = vmatmul.mubr.f32.gmra.mrb[0].mxu0 %v980
        %v1346 = vpop.f32.mrb[0].mxu0
        %v1347 = vadd.f32 0.0, %v1346
        %v1348 = vpop.f32.mrb[0].mxu0
        %v1349 = vadd.f32 0.0, %v1348
        %1350 = vmatprep.mubr.f32.mxu0 0.0
        %1351 = vmatmul.mubr.f32.gmra.mrb[0].mxu0 %v982
        %v1352 = vpop.f32.mrb[0].mxu0
        %v1353 = vadd.f32 0.0, %v1352
        %v1354 = vpop.f32.mrb[0].mxu0
        %v1355 = vadd.f32 0.0, %v1354
        %1356 = vmatprep.mubr.f32.mxu0 0.0
        %1357 = vmatmul.mubr.f32.gmra.mrb[0].mxu0 %v984
        %v1358 = vpop.f32.mrb[0].mxu0
        %v1359 = vadd.f32 0.0, %v1358
        %v1360 = vpop.f32.mrb[0].mxu0
        %v1361 = vadd.f32 0.0, %v1360
        %1362 = vmatprep.mubr.f32.mxu0 0.0
        %1363 = vmatmul.mubr.f32.gmra.mrb[0].mxu0 %v986
        %v1364 = vpop.f32.mrb[0].mxu0
        %v1365 = vadd.f32 0.0, %v1364
        %v1366 = vpop.f32.mrb[0].mxu0
        %v1367 = vadd.f32 0.0, %v1366
        %1368 = vmatprep.mubr.f32.mxu0 0.0
        %1369 = vmatmul.mubr.f32.gmra.mrb[0].mxu0 %v988
        %v1370 = vpop.f32.mrb[0].mxu0
        %v1371 = vadd.f32 0.0, %v1370
        %v1372 = vpop.f32.mrb[0].mxu0
        %v1373 = vadd.f32 0.0, %v1372
        %1374 = vdwg.mxu0
        %v1375 = vlaneseq
        %v1376 = vand.u32 %v1375, 127
        %v1377 = vlaneseq
        %v1378 = vshrl.u32 %v1377, 7
        %v1379 = vadd.s32 %v1378, 8
        %v1380 = vadd.s32 %v1378, 16
        %v1381 = vadd.s32 %v1378, 24
        %v1382 = vadd.s32 %v1378, 32
        %v1383 = vadd.s32 %v1378, 40
        %v1384 = vadd.s32 %v1378, 48
        %v1385 = vadd.s32 %v1378, 56
        %v1386 = vadd.s32 %v1378, 64
        %v1387 = vadd.s32 %v1378, 72
        %v1388 = vadd.s32 %v1378, 80
        %v1389 = vadd.s32 %v1378, 88
        %v1390 = vadd.s32 %v1378, 96
        %v1391 = vadd.s32 %v1378, 104
        %v1392 = vadd.s32 %v1378, 112
        %v1393 = vadd.s32 %v1378, 120
        %v1394 = vstv %s709
        %v1395 = vadd.s32 %v1394, %v1378
        %v1396 = vadd.s32 %v1394, %v1379
        %v1397 = vadd.s32 %v1394, %v1380
        %v1398 = vadd.s32 %v1394, %v1381
        %v1399 = vadd.s32 %v1394, %v1382
        %v1400 = vadd.s32 %v1394, %v1383
        %v1401 = vadd.s32 %v1394, %v1384
        %v1402 = vadd.s32 %v1394, %v1385
        %v1403 = vadd.s32 %v1394, %v1386
        %v1404 = vadd.s32 %v1394, %v1387
        %v1405 = vadd.s32 %v1394, %v1388
        %v1406 = vadd.s32 %v1394, %v1389
        %v1407 = vadd.s32 %v1394, %v1390
        %v1408 = vadd.s32 %v1394, %v1391
        %v1409 = vadd.s32 %v1394, %v1392
        %v1410 = vadd.s32 %v1394, %v1393
        %v1411 = vsub.s32 %v1376, %v1395
        %v1412 = vsub.s32 %v1376, %v1396
        %v1413 = vsub.s32 %v1376, %v1397
        %v1414 = vsub.s32 %v1376, %v1398
        %v1415 = vsub.s32 %v1376, %v1399
        %v1416 = vsub.s32 %v1376, %v1400
        %v1417 = vsub.s32 %v1376, %v1401
        %v1418 = vsub.s32 %v1376, %v1402
        %v1419 = vsub.s32 %v1376, %v1403
        %v1420 = vsub.s32 %v1376, %v1404
        %v1421 = vsub.s32 %v1376, %v1405
        %v1422 = vsub.s32 %v1376, %v1406
        %v1423 = vsub.s32 %v1376, %v1407
        %v1424 = vsub.s32 %v1376, %v1408
        %v1425 = vsub.s32 %v1376, %v1409
        %v1426 = vsub.s32 %v1376, %v1410
        %vm1427 = vcmp.ge.s32.totalorder %v1411, 4294967293
        %vm1428 = vcmp.ge.s32.totalorder %v1412, 4294967293
        %vm1429 = vcmp.ge.s32.totalorder %v1413, 4294967293
        %vm1430 = vcmp.ge.s32.totalorder %v1414, 4294967293
        %vm1431 = vcmp.ge.s32.totalorder %v1415, 4294967293
        %vm1432 = vcmp.ge.s32.totalorder %v1416, 4294967293
        %vm1433 = vcmp.ge.s32.totalorder %v1417, 4294967293
        %vm1434 = vcmp.ge.s32.totalorder %v1418, 4294967293
        %vm1435 = vcmp.ge.s32.totalorder %v1419, 4294967293
        %vm1436 = vcmp.ge.s32.totalorder %v1420, 4294967293
        %vm1437 = vcmp.ge.s32.totalorder %v1421, 4294967293
        %vm1438 = vcmp.ge.s32.totalorder %v1422, 4294967293
        %vm1439 = vcmp.ge.s32.totalorder %v1423, 4294967293
        %vm1440 = vcmp.ge.s32.totalorder %v1424, 4294967293
        %vm1441 = vcmp.ge.s32.totalorder %v1425, 4294967293
        %vm1442 = vcmp.ge.s32.totalorder %v1426, 4294967293
        %1444 = vset.pattern.permute.xlu0 1
        %1445 = vperm.xlu0 %1444, %v1088
        %v1446 = vpop.permute.xlu0 %1445
        %1449 = vset.pattern.permute.xlu0 1
        %1450 = vperm.xlu0 %1449, %v1094
        %v1451 = vpop.permute.xlu0 %1450
        %1454 = vset.pattern.permute.xlu0 1
        %1455 = vperm.xlu0 %1454, %v1100
        %v1456 = vpop.permute.xlu0 %1455
        %1459 = vset.pattern.permute.xlu0 1
        %1460 = vperm.xlu0 %1459, %v1106
        %v1461 = vpop.permute.xlu0 %1460
        %1464 = vset.pattern.permute.xlu0 1
        %1465 = vperm.xlu0 %1464, %v1112
        %v1466 = vpop.permute.xlu0 %1465
        %1469 = vset.pattern.permute.xlu0 1
        %1470 = vperm.xlu0 %1469, %v1118
        %v1471 = vpop.permute.xlu0 %1470
        %1474 = vset.pattern.permute.xlu0 1
        %1475 = vperm.xlu0 %1474, %v1124
        %v1476 = vpop.permute.xlu0 %1475
        %1479 = vset.pattern.permute.xlu0 1
        %1480 = vperm.xlu0 %1479, %v1130
        %v1481 = vpop.permute.xlu0 %1480
        %1484 = vset.pattern.permute.xlu0 1
        %1485 = vperm.xlu0 %1484, %v1136
        %v1486 = vpop.permute.xlu0 %1485
        %1489 = vset.pattern.permute.xlu0 1
        %1490 = vperm.xlu0 %1489, %v1142
        %v1491 = vpop.permute.xlu0 %1490
        %1494 = vset.pattern.permute.xlu0 1
        %1495 = vperm.xlu0 %1494, %v1148
        %v1496 = vpop.permute.xlu0 %1495
        %1499 = vset.pattern.permute.xlu0 1
        %1500 = vperm.xlu0 %1499, %v1154
        %v1501 = vpop.permute.xlu0 %1500
        %1504 = vset.pattern.permute.xlu0 1
        %1505 = vperm.xlu0 %1504, %v1160
        %v1506 = vpop.permute.xlu0 %1505
        %1509 = vset.pattern.permute.xlu0 1
        %1510 = vperm.xlu0 %1509, %v1166
        %v1511 = vpop.permute.xlu0 %1510
        %1514 = vset.pattern.permute.xlu0 1
        %1515 = vperm.xlu0 %1514, %v1172
        %v1516 = vpop.permute.xlu0 %1515
        %1519 = vset.pattern.permute.xlu0 1
        %1520 = vperm.xlu0 %1519, %v1178
        %v1521 = vpop.permute.xlu0 %1520
        %1523 = vset.pattern.permute.xlu0 0
        %1524 = vperm.xlu0 %1523, %v1088
        %v1525 = vpop.permute.xlu0 %1524
        %1527 = vset.pattern.permute.xlu0 0
        %1528 = vperm.xlu0 %1527, %v1094
        %v1529 = vpop.permute.xlu0 %1528
        %1531 = vset.pattern.permute.xlu0 0
        %1532 = vperm.xlu0 %1531, %v1100
        %v1533 = vpop.permute.xlu0 %1532
        %1535 = vset.pattern.permute.xlu0 0
        %1536 = vperm.xlu0 %1535, %v1106
        %v1537 = vpop.permute.xlu0 %1536
        %1539 = vset.pattern.permute.xlu0 0
        %1540 = vperm.xlu0 %1539, %v1112
        %v1541 = vpop.permute.xlu0 %1540
        %1543 = vset.pattern.permute.xlu0 0
        %1544 = vperm.xlu0 %1543, %v1118
        %v1545 = vpop.permute.xlu0 %1544
        %1547 = vset.pattern.permute.xlu0 0
        %1548 = vperm.xlu0 %1547, %v1124
        %v1549 = vpop.permute.xlu0 %1548
        %1551 = vset.pattern.permute.xlu0 0
        %1552 = vperm.xlu0 %1551, %v1130
        %v1553 = vpop.permute.xlu0 %1552
        %1555 = vset.pattern.permute.xlu0 0
        %1556 = vperm.xlu0 %1555, %v1136
        %v1557 = vpop.permute.xlu0 %1556
        %1559 = vset.pattern.permute.xlu0 0
        %1560 = vperm.xlu0 %1559, %v1142
        %v1561 = vpop.permute.xlu0 %1560
        %1563 = vset.pattern.permute.xlu0 0
        %1564 = vperm.xlu0 %1563, %v1148
        %v1565 = vpop.permute.xlu0 %1564
        %1567 = vset.pattern.permute.xlu0 0
        %1568 = vperm.xlu0 %1567, %v1154
        %v1569 = vpop.permute.xlu0 %1568
        %1571 = vset.pattern.permute.xlu0 0
        %1572 = vperm.xlu0 %1571, %v1160
        %v1573 = vpop.permute.xlu0 %1572
        %1575 = vset.pattern.permute.xlu0 0
        %1576 = vperm.xlu0 %1575, %v1166
        %v1577 = vpop.permute.xlu0 %1576
        %1579 = vset.pattern.permute.xlu0 0
        %1580 = vperm.xlu0 %1579, %v1172
        %v1581 = vpop.permute.xlu0 %1580
        %1583 = vset.pattern.permute.xlu0 0
        %1584 = vperm.xlu0 %1583, %v1178
        %v1585 = vpop.permute.xlu0 %1584
        %v1587 = vsel %vm1427, %v1446, %v1525
        %v1588 = vsel %vm1428, %v1451, %v1529
        %v1589 = vsel %vm1429, %v1456, %v1533
        %v1590 = vsel %vm1430, %v1461, %v1537
        %v1591 = vsel %vm1431, %v1466, %v1541
        %v1592 = vsel %vm1432, %v1471, %v1545
        %v1593 = vsel %vm1433, %v1476, %v1549
        %v1594 = vsel %vm1434, %v1481, %v1553
        %v1595 = vsel %vm1435, %v1486, %v1557
        %v1596 = vsel %vm1436, %v1491, %v1561
        %v1597 = vsel %vm1437, %v1496, %v1565
        %v1598 = vsel %vm1438, %v1501, %v1569
        %v1599 = vsel %vm1439, %v1506, %v1573
        %v1600 = vsel %vm1440, %v1511, %v1577
        %v1601 = vsel %vm1441, %v1516, %v1581
        %v1602 = vsel %vm1442, %v1521, %v1585
        %1604 = vset.pattern.permute.xlu0 1
        %1605 = vperm.xlu0 %1604, %v1281
        %v1606 = vpop.permute.xlu0 %1605
        %1609 = vset.pattern.permute.xlu0 1
        %1610 = vperm.xlu0 %1609, %v1287
        %v1611 = vpop.permute.xlu0 %1610
        %1614 = vset.pattern.permute.xlu0 1
        %1615 = vperm.xlu0 %1614, %v1293
        %v1616 = vpop.permute.xlu0 %1615
        %1619 = vset.pattern.permute.xlu0 1
        %1620 = vperm.xlu0 %1619, %v1299
        %v1621 = vpop.permute.xlu0 %1620
        %1624 = vset.pattern.permute.xlu0 1
        %1625 = vperm.xlu0 %1624, %v1305
        %v1626 = vpop.permute.xlu0 %1625
        %1629 = vset.pattern.permute.xlu0 1
        %1630 = vperm.xlu0 %1629, %v1311
        %v1631 = vpop.permute.xlu0 %1630
        %1634 = vset.pattern.permute.xlu0 1
        %1635 = vperm.xlu0 %1634, %v1317
        %v1636 = vpop.permute.xlu0 %1635
        %1639 = vset.pattern.permute.xlu0 1
        %1640 = vperm.xlu0 %1639, %v1323
        %v1641 = vpop.permute.xlu0 %1640
        %1644 = vset.pattern.permute.xlu0 1
        %1645 = vperm.xlu0 %1644, %v1329
        %v1646 = vpop.permute.xlu0 %1645
        %1649 = vset.pattern.permute.xlu0 1
        %1650 = vperm.xlu0 %1649, %v1335
        %v1651 = vpop.permute.xlu0 %1650
        %1654 = vset.pattern.permute.xlu0 1
        %1655 = vperm.xlu0 %1654, %v1341
        %v1656 = vpop.permute.xlu0 %1655
        %1659 = vset.pattern.permute.xlu0 1
        %1660 = vperm.xlu0 %1659, %v1347
        %v1661 = vpop.permute.xlu0 %1660
        %1664 = vset.pattern.permute.xlu0 1
        %1665 = vperm.xlu0 %1664, %v1353
        %v1666 = vpop.permute.xlu0 %1665
        %1669 = vset.pattern.permute.xlu0 1
        %1670 = vperm.xlu0 %1669, %v1359
        %v1671 = vpop.permute.xlu0 %1670
        %1674 = vset.pattern.permute.xlu0 1
        %1675 = vperm.xlu0 %1674, %v1365
        %v1676 = vpop.permute.xlu0 %1675
        %1679 = vset.pattern.permute.xlu0 1
        %1680 = vperm.xlu0 %1679, %v1371
        %v1681 = vpop.permute.xlu0 %1680
        %1683 = vset.pattern.permute.xlu0 0
        %1684 = vperm.xlu0 %1683, %v1281
        %v1685 = vpop.permute.xlu0 %1684
        %1687 = vset.pattern.permute.xlu0 0
        %1688 = vperm.xlu0 %1687, %v1287
        %v1689 = vpop.permute.xlu0 %1688
        %1691 = vset.pattern.permute.xlu0 0
        %1692 = vperm.xlu0 %1691, %v1293
        %v1693 = vpop.permute.xlu0 %1692
        %1695 = vset.pattern.permute.xlu0 0
        %1696 = vperm.xlu0 %1695, %v1299
        %v1697 = vpop.permute.xlu0 %1696
        %1699 = vset.pattern.permute.xlu0 0
        %1700 = vperm.xlu0 %1699, %v1305
        %v1701 = vpop.permute.xlu0 %1700
        %1703 = vset.pattern.permute.xlu0 0
        %1704 = vperm.xlu0 %1703, %v1311
        %v1705 = vpop.permute.xlu0 %1704
        %1707 = vset.pattern.permute.xlu0 0
        %1708 = vperm.xlu0 %1707, %v1317
        %v1709 = vpop.permute.xlu0 %1708
        %1711 = vset.pattern.permute.xlu0 0
        %1712 = vperm.xlu0 %1711, %v1323
        %v1713 = vpop.permute.xlu0 %1712
        %1715 = vset.pattern.permute.xlu0 0
        %1716 = vperm.xlu0 %1715, %v1329
        %v1717 = vpop.permute.xlu0 %1716
        %1719 = vset.pattern.permute.xlu0 0
        %1720 = vperm.xlu0 %1719, %v1335
        %v1721 = vpop.permute.xlu0 %1720
        %1723 = vset.pattern.permute.xlu0 0
        %1724 = vperm.xlu0 %1723, %v1341
        %v1725 = vpop.permute.xlu0 %1724
        %1727 = vset.pattern.permute.xlu0 0
        %1728 = vperm.xlu0 %1727, %v1347
        %v1729 = vpop.permute.xlu0 %1728
        %1731 = vset.pattern.permute.xlu0 0
        %1732 = vperm.xlu0 %1731, %v1353
        %v1733 = vpop.permute.xlu0 %1732
        %1735 = vset.pattern.permute.xlu0 0
        %1736 = vperm.xlu0 %1735, %v1359
        %v1737 = vpop.permute.xlu0 %1736
        %1739 = vset.pattern.permute.xlu0 0
        %1740 = vperm.xlu0 %1739, %v1365
        %v1741 = vpop.permute.xlu0 %1740
        %1743 = vset.pattern.permute.xlu0 0
        %1744 = vperm.xlu0 %1743, %v1371
        %v1745 = vpop.permute.xlu0 %1744
        %v1747 = vsel %vm1427, %v1606, %v1685
        %v1748 = vsel %vm1428, %v1611, %v1689
        %v1749 = vsel %vm1429, %v1616, %v1693
        %v1750 = vsel %vm1430, %v1621, %v1697
        %v1751 = vsel %vm1431, %v1626, %v1701
        %v1752 = vsel %vm1432, %v1631, %v1705
        %v1753 = vsel %vm1433, %v1636, %v1709
        %v1754 = vsel %vm1434, %v1641, %v1713
        %v1755 = vsel %vm1435, %v1646, %v1717
        %v1756 = vsel %vm1436, %v1651, %v1721
        %v1757 = vsel %vm1437, %v1656, %v1725
        %v1758 = vsel %vm1438, %v1661, %v1729
        %v1759 = vsel %vm1439, %v1666, %v1733
        %v1760 = vsel %vm1440, %v1671, %v1737
        %v1761 = vsel %vm1441, %v1676, %v1741
        %v1762 = vsel %vm1442, %v1681, %v1745
        %vm1763 = vcmp.ge.s32.totalorder %v1411, 4294967294
        %vm1764 = vcmp.ge.s32.totalorder %v1412, 4294967294
        %vm1765 = vcmp.ge.s32.totalorder %v1413, 4294967294
        %vm1766 = vcmp.ge.s32.totalorder %v1414, 4294967294
        %vm1767 = vcmp.ge.s32.totalorder %v1415, 4294967294
        %vm1768 = vcmp.ge.s32.totalorder %v1416, 4294967294
        %vm1769 = vcmp.ge.s32.totalorder %v1417, 4294967294
        %vm1770 = vcmp.ge.s32.totalorder %v1418, 4294967294
        %vm1771 = vcmp.ge.s32.totalorder %v1419, 4294967294
        %vm1772 = vcmp.ge.s32.totalorder %v1420, 4294967294
        %vm1773 = vcmp.ge.s32.totalorder %v1421, 4294967294
        %vm1774 = vcmp.ge.s32.totalorder %v1422, 4294967294
        %vm1775 = vcmp.ge.s32.totalorder %v1423, 4294967294
        %vm1776 = vcmp.ge.s32.totalorder %v1424, 4294967294
        %vm1777 = vcmp.ge.s32.totalorder %v1425, 4294967294
        %vm1778 = vcmp.ge.s32.totalorder %v1426, 4294967294
        %1779 = vset.pattern.permute.xlu0 2
        %1780 = vperm.xlu0 %1779, %v1088
        %v1781 = vpop.permute.xlu0 %1780
        %1783 = vset.pattern.permute.xlu0 2
        %1784 = vperm.xlu0 %1783, %v1094
        %v1785 = vpop.permute.xlu0 %1784
        %1787 = vset.pattern.permute.xlu0 2
        %1788 = vperm.xlu0 %1787, %v1100
        %v1789 = vpop.permute.xlu0 %1788
        %1791 = vset.pattern.permute.xlu0 2
        %1792 = vperm.xlu0 %1791, %v1106
        %v1793 = vpop.permute.xlu0 %1792
        %1795 = vset.pattern.permute.xlu0 2
        %1796 = vperm.xlu0 %1795, %v1112
        %v1797 = vpop.permute.xlu0 %1796
        %1799 = vset.pattern.permute.xlu0 2
        %1800 = vperm.xlu0 %1799, %v1118
        %v1801 = vpop.permute.xlu0 %1800
        %1803 = vset.pattern.permute.xlu0 2
        %1804 = vperm.xlu0 %1803, %v1124
        %v1805 = vpop.permute.xlu0 %1804
        %1807 = vset.pattern.permute.xlu0 2
        %1808 = vperm.xlu0 %1807, %v1130
        %v1809 = vpop.permute.xlu0 %1808
        %1811 = vset.pattern.permute.xlu0 2
        %1812 = vperm.xlu0 %1811, %v1136
        %v1813 = vpop.permute.xlu0 %1812
        %1815 = vset.pattern.permute.xlu0 2
        %1816 = vperm.xlu0 %1815, %v1142
        %v1817 = vpop.permute.xlu0 %1816
        %1819 = vset.pattern.permute.xlu0 2
        %1820 = vperm.xlu0 %1819, %v1148
        %v1821 = vpop.permute.xlu0 %1820
        %1823 = vset.pattern.permute.xlu0 2
        %1824 = vperm.xlu0 %1823, %v1154
        %v1825 = vpop.permute.xlu0 %1824
        %1827 = vset.pattern.permute.xlu0 2
        %1828 = vperm.xlu0 %1827, %v1160
        %v1829 = vpop.permute.xlu0 %1828
        %1831 = vset.pattern.permute.xlu0 2
        %1832 = vperm.xlu0 %1831, %v1166
        %v1833 = vpop.permute.xlu0 %1832
        %1835 = vset.pattern.permute.xlu0 2
        %1836 = vperm.xlu0 %1835, %v1172
        %v1837 = vpop.permute.xlu0 %1836
        %1839 = vset.pattern.permute.xlu0 2
        %1840 = vperm.xlu0 %1839, %v1178
        %v1841 = vpop.permute.xlu0 %1840
        %v1843 = vsel %vm1763, %v1781, %v1587
        %v1844 = vsel %vm1764, %v1785, %v1588
        %v1845 = vsel %vm1765, %v1789, %v1589
        %v1846 = vsel %vm1766, %v1793, %v1590
        %v1847 = vsel %vm1767, %v1797, %v1591
        %v1848 = vsel %vm1768, %v1801, %v1592
        %v1849 = vsel %vm1769, %v1805, %v1593
        %v1850 = vsel %vm1770, %v1809, %v1594
        %v1851 = vsel %vm1771, %v1813, %v1595
        %v1852 = vsel %vm1772, %v1817, %v1596
        %v1853 = vsel %vm1773, %v1821, %v1597
        %v1854 = vsel %vm1774, %v1825, %v1598
        %v1855 = vsel %vm1775, %v1829, %v1599
        %v1856 = vsel %vm1776, %v1833, %v1600
        %v1857 = vsel %vm1777, %v1837, %v1601
        %v1858 = vsel %vm1778, %v1841, %v1602
        %1859 = vset.pattern.permute.xlu0 2
        %1860 = vperm.xlu0 %1859, %v1281
        %v1861 = vpop.permute.xlu0 %1860
        %1863 = vset.pattern.permute.xlu0 2
        %1864 = vperm.xlu0 %1863, %v1287
        %v1865 = vpop.permute.xlu0 %1864
        %1867 = vset.pattern.permute.xlu0 2
        %1868 = vperm.xlu0 %1867, %v1293
        %v1869 = vpop.permute.xlu0 %1868
        %1871 = vset.pattern.permute.xlu0 2
        %1872 = vperm.xlu0 %1871, %v1299
        %v1873 = vpop.permute.xlu0 %1872
        %1875 = vset.pattern.permute.xlu0 2
        %1876 = vperm.xlu0 %1875, %v1305
        %v1877 = vpop.permute.xlu0 %1876
        %1879 = vset.pattern.permute.xlu0 2
        %1880 = vperm.xlu0 %1879, %v1311
        %v1881 = vpop.permute.xlu0 %1880
        %1883 = vset.pattern.permute.xlu0 2
        %1884 = vperm.xlu0 %1883, %v1317
        %v1885 = vpop.permute.xlu0 %1884
        %1887 = vset.pattern.permute.xlu0 2
        %1888 = vperm.xlu0 %1887, %v1323
        %v1889 = vpop.permute.xlu0 %1888
        %1891 = vset.pattern.permute.xlu0 2
        %1892 = vperm.xlu0 %1891, %v1329
        %v1893 = vpop.permute.xlu0 %1892
        %1895 = vset.pattern.permute.xlu0 2
        %1896 = vperm.xlu0 %1895, %v1335
        %v1897 = vpop.permute.xlu0 %1896
        %1899 = vset.pattern.permute.xlu0 2
        %1900 = vperm.xlu0 %1899, %v1341
        %v1901 = vpop.permute.xlu0 %1900
        %1903 = vset.pattern.permute.xlu0 2
        %1904 = vperm.xlu0 %1903, %v1347
        %v1905 = vpop.permute.xlu0 %1904
        %1907 = vset.pattern.permute.xlu0 2
        %1908 = vperm.xlu0 %1907, %v1353
        %v1909 = vpop.permute.xlu0 %1908
        %1911 = vset.pattern.permute.xlu0 2
        %1912 = vperm.xlu0 %1911, %v1359
        %v1913 = vpop.permute.xlu0 %1912
        %1915 = vset.pattern.permute.xlu0 2
        %1916 = vperm.xlu0 %1915, %v1365
        %v1917 = vpop.permute.xlu0 %1916
        %1919 = vset.pattern.permute.xlu0 2
        %1920 = vperm.xlu0 %1919, %v1371
        %v1921 = vpop.permute.xlu0 %1920
        %v1923 = vsel %vm1763, %v1861, %v1747
        %v1924 = vsel %vm1764, %v1865, %v1748
        %v1925 = vsel %vm1765, %v1869, %v1749
        %v1926 = vsel %vm1766, %v1873, %v1750
        %v1927 = vsel %vm1767, %v1877, %v1751
        %v1928 = vsel %vm1768, %v1881, %v1752
        %v1929 = vsel %vm1769, %v1885, %v1753
        %v1930 = vsel %vm1770, %v1889, %v1754
        %v1931 = vsel %vm1771, %v1893, %v1755
        %v1932 = vsel %vm1772, %v1897, %v1756
        %v1933 = vsel %vm1773, %v1901, %v1757
        %v1934 = vsel %vm1774, %v1905, %v1758
        %v1935 = vsel %vm1775, %v1909, %v1759
        %v1936 = vsel %vm1776, %v1913, %v1760
        %v1937 = vsel %vm1777, %v1917, %v1761
        %v1938 = vsel %vm1778, %v1921, %v1762
        %vm1939 = vcmp.ge.s32.totalorder %v1411, 4294967295
        %vm1940 = vcmp.ge.s32.totalorder %v1412, 4294967295
        %vm1941 = vcmp.ge.s32.totalorder %v1413, 4294967295
        %vm1942 = vcmp.ge.s32.totalorder %v1414, 4294967295
        %vm1943 = vcmp.ge.s32.totalorder %v1415, 4294967295
        %vm1944 = vcmp.ge.s32.totalorder %v1416, 4294967295
        %vm1945 = vcmp.ge.s32.totalorder %v1417, 4294967295
        %vm1946 = vcmp.ge.s32.totalorder %v1418, 4294967295
        %vm1947 = vcmp.ge.s32.totalorder %v1419, 4294967295
        %vm1948 = vcmp.ge.s32.totalorder %v1420, 4294967295
        %vm1949 = vcmp.ge.s32.totalorder %v1421, 4294967295
        %vm1950 = vcmp.ge.s32.totalorder %v1422, 4294967295
        %vm1951 = vcmp.ge.s32.totalorder %v1423, 4294967295
        %vm1952 = vcmp.ge.s32.totalorder %v1424, 4294967295
        %vm1953 = vcmp.ge.s32.totalorder %v1425, 4294967295
        %vm1954 = vcmp.ge.s32.totalorder %v1426, 4294967295
        %1955 = vset.pattern.permute.xlu0 3
        %1956 = vperm.xlu0 %1955, %v1088
        %v1957 = vpop.permute.xlu0 %1956
        %1959 = vset.pattern.permute.xlu0 3
        %1960 = vperm.xlu0 %1959, %v1094
        %v1961 = vpop.permute.xlu0 %1960
        %1963 = vset.pattern.permute.xlu0 3
        %1964 = vperm.xlu0 %1963, %v1100
        %v1965 = vpop.permute.xlu0 %1964
        %1967 = vset.pattern.permute.xlu0 3
        %1968 = vperm.xlu0 %1967, %v1106
        %v1969 = vpop.permute.xlu0 %1968
        %1971 = vset.pattern.permute.xlu0 3
        %1972 = vperm.xlu0 %1971, %v1112
        %v1973 = vpop.permute.xlu0 %1972
        %1975 = vset.pattern.permute.xlu0 3
        %1976 = vperm.xlu0 %1975, %v1118
        %v1977 = vpop.permute.xlu0 %1976
        %1979 = vset.pattern.permute.xlu0 3
        %1980 = vperm.xlu0 %1979, %v1124
        %v1981 = vpop.permute.xlu0 %1980
        %1983 = vset.pattern.permute.xlu0 3
        %1984 = vperm.xlu0 %1983, %v1130
        %v1985 = vpop.permute.xlu0 %1984
        %1987 = vset.pattern.permute.xlu0 3
        %1988 = vperm.xlu0 %1987, %v1136
        %v1989 = vpop.permute.xlu0 %1988
        %1991 = vset.pattern.permute.xlu0 3
        %1992 = vperm.xlu0 %1991, %v1142
        %v1993 = vpop.permute.xlu0 %1992
        %1995 = vset.pattern.permute.xlu0 3
        %1996 = vperm.xlu0 %1995, %v1148
        %v1997 = vpop.permute.xlu0 %1996
        %1999 = vset.pattern.permute.xlu0 3
        %2000 = vperm.xlu0 %1999, %v1154
        %v2001 = vpop.permute.xlu0 %2000
        %2003 = vset.pattern.permute.xlu0 3
        %2004 = vperm.xlu0 %2003, %v1160
        %v2005 = vpop.permute.xlu0 %2004
        %2007 = vset.pattern.permute.xlu0 3
        %2008 = vperm.xlu0 %2007, %v1166
        %v2009 = vpop.permute.xlu0 %2008
        %2011 = vset.pattern.permute.xlu0 3
        %2012 = vperm.xlu0 %2011, %v1172
        %v2013 = vpop.permute.xlu0 %2012
        %2015 = vset.pattern.permute.xlu0 3
        %2016 = vperm.xlu0 %2015, %v1178
        %v2017 = vpop.permute.xlu0 %2016
        %v2019 = vsel %vm1939, %v1957, %v1843
        %v2020 = vsel %vm1940, %v1961, %v1844
        %v2021 = vsel %vm1941, %v1965, %v1845
        %v2022 = vsel %vm1942, %v1969, %v1846
        %v2023 = vsel %vm1943, %v1973, %v1847
        %v2024 = vsel %vm1944, %v1977, %v1848
        %v2025 = vsel %vm1945, %v1981, %v1849
        %v2026 = vsel %vm1946, %v1985, %v1850
        %v2027 = vsel %vm1947, %v1989, %v1851
        %v2028 = vsel %vm1948, %v1993, %v1852
        %v2029 = vsel %vm1949, %v1997, %v1853
        %v2030 = vsel %vm1950, %v2001, %v1854
        %v2031 = vsel %vm1951, %v2005, %v1855
        %v2032 = vsel %vm1952, %v2009, %v1856
        %v2033 = vsel %vm1953, %v2013, %v1857
        %v2034 = vsel %vm1954, %v2017, %v1858
        %2035 = vset.pattern.permute.xlu0 3
        %2036 = vperm.xlu0 %2035, %v1281
        %v2037 = vpop.permute.xlu0 %2036
        %2039 = vset.pattern.permute.xlu0 3
        %2040 = vperm.xlu0 %2039, %v1287
        %v2041 = vpop.permute.xlu0 %2040
        %2043 = vset.pattern.permute.xlu0 3
        %2044 = vperm.xlu0 %2043, %v1293
        %v2045 = vpop.permute.xlu0 %2044
        %2047 = vset.pattern.permute.xlu0 3
        %2048 = vperm.xlu0 %2047, %v1299
        %v2049 = vpop.permute.xlu0 %2048
        %2051 = vset.pattern.permute.xlu0 3
        %2052 = vperm.xlu0 %2051, %v1305
        %v2053 = vpop.permute.xlu0 %2052
        %2055 = vset.pattern.permute.xlu0 3
        %2056 = vperm.xlu0 %2055, %v1311
        %v2057 = vpop.permute.xlu0 %2056
        %2059 = vset.pattern.permute.xlu0 3
        %2060 = vperm.xlu0 %2059, %v1317
        %v2061 = vpop.permute.xlu0 %2060
        %2063 = vset.pattern.permute.xlu0 3
        %2064 = vperm.xlu0 %2063, %v1323
        %v2065 = vpop.permute.xlu0 %2064
        %2067 = vset.pattern.permute.xlu0 3
        %2068 = vperm.xlu0 %2067, %v1329
        %v2069 = vpop.permute.xlu0 %2068
        %2071 = vset.pattern.permute.xlu0 3
        %2072 = vperm.xlu0 %2071, %v1335
        %v2073 = vpop.permute.xlu0 %2072
        %2075 = vset.pattern.permute.xlu0 3
        %2076 = vperm.xlu0 %2075, %v1341
        %v2077 = vpop.permute.xlu0 %2076
        %2079 = vset.pattern.permute.xlu0 3
        %2080 = vperm.xlu0 %2079, %v1347
        %v2081 = vpop.permute.xlu0 %2080
        %2083 = vset.pattern.permute.xlu0 3
        %2084 = vperm.xlu0 %2083, %v1353
        %v2085 = vpop.permute.xlu0 %2084
        %2087 = vset.pattern.permute.xlu0 3
        %2088 = vperm.xlu0 %2087, %v1359
        %v2089 = vpop.permute.xlu0 %2088
        %2091 = vset.pattern.permute.xlu0 3
        %2092 = vperm.xlu0 %2091, %v1365
        %v2093 = vpop.permute.xlu0 %2092
        %2095 = vset.pattern.permute.xlu0 3
        %2096 = vperm.xlu0 %2095, %v1371
        %v2097 = vpop.permute.xlu0 %2096
        %v2099 = vsel %vm1939, %v2037, %v1923
        %v2100 = vsel %vm1940, %v2041, %v1924
        %v2101 = vsel %vm1941, %v2045, %v1925
        %v2102 = vsel %vm1942, %v2049, %v1926
        %v2103 = vsel %vm1943, %v2053, %v1927
        %v2104 = vsel %vm1944, %v2057, %v1928
        %v2105 = vsel %vm1945, %v2061, %v1929
        %v2106 = vsel %vm1946, %v2065, %v1930
        %v2107 = vsel %vm1947, %v2069, %v1931
        %v2108 = vsel %vm1948, %v2073, %v1932
        %v2109 = vsel %vm1949, %v2077, %v1933
        %v2110 = vsel %vm1950, %v2081, %v1934
        %v2111 = vsel %vm1951, %v2085, %v1935
        %v2112 = vsel %vm1952, %v2089, %v1936
        %v2113 = vsel %vm1953, %v2093, %v1937
        %v2114 = vsel %vm1954, %v2097, %v1938
        %vm2115 = vcmp.ge.s32.totalorder %v1411, 0
        %vm2116 = vcmp.ge.s32.totalorder %v1412, 0
        %vm2117 = vcmp.ge.s32.totalorder %v1413, 0
        %vm2118 = vcmp.ge.s32.totalorder %v1414, 0
        %vm2119 = vcmp.ge.s32.totalorder %v1415, 0
        %vm2120 = vcmp.ge.s32.totalorder %v1416, 0
        %vm2121 = vcmp.ge.s32.totalorder %v1417, 0
        %vm2122 = vcmp.ge.s32.totalorder %v1418, 0
        %vm2123 = vcmp.ge.s32.totalorder %v1419, 0
        %vm2124 = vcmp.ge.s32.totalorder %v1420, 0
        %vm2125 = vcmp.ge.s32.totalorder %v1421, 0
        %vm2126 = vcmp.ge.s32.totalorder %v1422, 0
        %vm2127 = vcmp.ge.s32.totalorder %v1423, 0
        %vm2128 = vcmp.ge.s32.totalorder %v1424, 0
        %vm2129 = vcmp.ge.s32.totalorder %v1425, 0
        %vm2130 = vcmp.ge.s32.totalorder %v1426, 0
        %2131 = vset.pattern.permute.xlu0 4
        %2132 = vperm.xlu0 %2131, %v1088
        %v2133 = vpop.permute.xlu0 %2132
        %2135 = vset.pattern.permute.xlu0 4
        %2136 = vperm.xlu0 %2135, %v1094
        %v2137 = vpop.permute.xlu0 %2136
        %2139 = vset.pattern.permute.xlu0 4
        %2140 = vperm.xlu0 %2139, %v1100
        %v2141 = vpop.permute.xlu0 %2140
        %2143 = vset.pattern.permute.xlu0 4
        %2144 = vperm.xlu0 %2143, %v1106
        %v2145 = vpop.permute.xlu0 %2144
        %2147 = vset.pattern.permute.xlu0 4
        %2148 = vperm.xlu0 %2147, %v1112
        %v2149 = vpop.permute.xlu0 %2148
        %2151 = vset.pattern.permute.xlu0 4
        %2152 = vperm.xlu0 %2151, %v1118
        %v2153 = vpop.permute.xlu0 %2152
        %2155 = vset.pattern.permute.xlu0 4
        %2156 = vperm.xlu0 %2155, %v1124
        %v2157 = vpop.permute.xlu0 %2156
        %2159 = vset.pattern.permute.xlu0 4
        %2160 = vperm.xlu0 %2159, %v1130
        %v2161 = vpop.permute.xlu0 %2160
        %2163 = vset.pattern.permute.xlu0 4
        %2164 = vperm.xlu0 %2163, %v1136
        %v2165 = vpop.permute.xlu0 %2164
        %2167 = vset.pattern.permute.xlu0 4
        %2168 = vperm.xlu0 %2167, %v1142
        %v2169 = vpop.permute.xlu0 %2168
        %2171 = vset.pattern.permute.xlu0 4
        %2172 = vperm.xlu0 %2171, %v1148
        %v2173 = vpop.permute.xlu0 %2172
        %2175 = vset.pattern.permute.xlu0 4
        %2176 = vperm.xlu0 %2175, %v1154
        %v2177 = vpop.permute.xlu0 %2176
        %2179 = vset.pattern.permute.xlu0 4
        %2180 = vperm.xlu0 %2179, %v1160
        %v2181 = vpop.permute.xlu0 %2180
        %2183 = vset.pattern.permute.xlu0 4
        %2184 = vperm.xlu0 %2183, %v1166
        %v2185 = vpop.permute.xlu0 %2184
        %2187 = vset.pattern.permute.xlu0 4
        %2188 = vperm.xlu0 %2187, %v1172
        %v2189 = vpop.permute.xlu0 %2188
        %2191 = vset.pattern.permute.xlu0 4
        %2192 = vperm.xlu0 %2191, %v1178
        %v2193 = vpop.permute.xlu0 %2192
        %v2195 = vsel %vm2115, %v2133, %v2019
        %v2196 = vsel %vm2116, %v2137, %v2020
        %v2197 = vsel %vm2117, %v2141, %v2021
        %v2198 = vsel %vm2118, %v2145, %v2022
        %v2199 = vsel %vm2119, %v2149, %v2023
        %v2200 = vsel %vm2120, %v2153, %v2024
        %v2201 = vsel %vm2121, %v2157, %v2025
        %v2202 = vsel %vm2122, %v2161, %v2026
        %v2203 = vsel %vm2123, %v2165, %v2027
        %v2204 = vsel %vm2124, %v2169, %v2028
        %v2205 = vsel %vm2125, %v2173, %v2029
        %v2206 = vsel %vm2126, %v2177, %v2030
        %v2207 = vsel %vm2127, %v2181, %v2031
        %v2208 = vsel %vm2128, %v2185, %v2032
        %v2209 = vsel %vm2129, %v2189, %v2033
        %v2210 = vsel %vm2130, %v2193, %v2034
        %2211 = vset.pattern.permute.xlu0 4
        %2212 = vperm.xlu0 %2211, %v1281
        %v2213 = vpop.permute.xlu0 %2212
        %2215 = vset.pattern.permute.xlu0 4
        %2216 = vperm.xlu0 %2215, %v1287
        %v2217 = vpop.permute.xlu0 %2216
        %2219 = vset.pattern.permute.xlu0 4
        %2220 = vperm.xlu0 %2219, %v1293
        %v2221 = vpop.permute.xlu0 %2220
        %2223 = vset.pattern.permute.xlu0 4
        %2224 = vperm.xlu0 %2223, %v1299
        %v2225 = vpop.permute.xlu0 %2224
        %2227 = vset.pattern.permute.xlu0 4
        %2228 = vperm.xlu0 %2227, %v1305
        %v2229 = vpop.permute.xlu0 %2228
        %2231 = vset.pattern.permute.xlu0 4
        %2232 = vperm.xlu0 %2231, %v1311
        %v2233 = vpop.permute.xlu0 %2232
        %2235 = vset.pattern.permute.xlu0 4
        %2236 = vperm.xlu0 %2235, %v1317
        %v2237 = vpop.permute.xlu0 %2236
        %2239 = vset.pattern.permute.xlu0 4
        %2240 = vperm.xlu0 %2239, %v1323
        %v2241 = vpop.permute.xlu0 %2240
        %2243 = vset.pattern.permute.xlu0 4
        %2244 = vperm.xlu0 %2243, %v1329
        %v2245 = vpop.permute.xlu0 %2244
        %2247 = vset.pattern.permute.xlu0 4
        %2248 = vperm.xlu0 %2247, %v1335
        %v2249 = vpop.permute.xlu0 %2248
        %2251 = vset.pattern.permute.xlu0 4
        %2252 = vperm.xlu0 %2251, %v1341
        %v2253 = vpop.permute.xlu0 %2252
        %2255 = vset.pattern.permute.xlu0 4
        %2256 = vperm.xlu0 %2255, %v1347
        %v2257 = vpop.permute.xlu0 %2256
        %2259 = vset.pattern.permute.xlu0 4
        %2260 = vperm.xlu0 %2259, %v1353
        %v2261 = vpop.permute.xlu0 %2260
        %2263 = vset.pattern.permute.xlu0 4
        %2264 = vperm.xlu0 %2263, %v1359
        %v2265 = vpop.permute.xlu0 %2264
        %2267 = vset.pattern.permute.xlu0 4
        %2268 = vperm.xlu0 %2267, %v1365
        %v2269 = vpop.permute.xlu0 %2268
        %2271 = vset.pattern.permute.xlu0 4
        %2272 = vperm.xlu0 %2271, %v1371
        %v2273 = vpop.permute.xlu0 %2272
        %v2275 = vsel %vm2115, %v2213, %v2099
        %v2276 = vsel %vm2116, %v2217, %v2100
        %v2277 = vsel %vm2117, %v2221, %v2101
        %v2278 = vsel %vm2118, %v2225, %v2102
        %v2279 = vsel %vm2119, %v2229, %v2103
        %v2280 = vsel %vm2120, %v2233, %v2104
        %v2281 = vsel %vm2121, %v2237, %v2105
        %v2282 = vsel %vm2122, %v2241, %v2106
        %v2283 = vsel %vm2123, %v2245, %v2107
        %v2284 = vsel %vm2124, %v2249, %v2108
        %v2285 = vsel %vm2125, %v2253, %v2109
        %v2286 = vsel %vm2126, %v2257, %v2110
        %v2287 = vsel %vm2127, %v2261, %v2111
        %v2288 = vsel %vm2128, %v2265, %v2112
        %v2289 = vsel %vm2129, %v2269, %v2113
        %v2290 = vsel %vm2130, %v2273, %v2114
        %vm2291 = vcmp.ge.s32.totalorder %v1411, 1
        %vm2292 = vcmp.ge.s32.totalorder %v1412, 1
        %vm2293 = vcmp.ge.s32.totalorder %v1413, 1
        %vm2294 = vcmp.ge.s32.totalorder %v1414, 1
        %vm2295 = vcmp.ge.s32.totalorder %v1415, 1
        %vm2296 = vcmp.ge.s32.totalorder %v1416, 1
        %vm2297 = vcmp.ge.s32.totalorder %v1417, 1
        %vm2298 = vcmp.ge.s32.totalorder %v1418, 1
        %vm2299 = vcmp.ge.s32.totalorder %v1419, 1
        %vm2300 = vcmp.ge.s32.totalorder %v1420, 1
        %vm2301 = vcmp.ge.s32.totalorder %v1421, 1
        %vm2302 = vcmp.ge.s32.totalorder %v1422, 1
        %vm2303 = vcmp.ge.s32.totalorder %v1423, 1
        %vm2304 = vcmp.ge.s32.totalorder %v1424, 1
        %vm2305 = vcmp.ge.s32.totalorder %v1425, 1
        %vm2306 = vcmp.ge.s32.totalorder %v1426, 1
        %2307 = vset.pattern.permute.xlu0 5
        %2308 = vperm.xlu0 %2307, %v1088
        %v2309 = vpop.permute.xlu0 %2308
        %2311 = vset.pattern.permute.xlu0 5
        %2312 = vperm.xlu0 %2311, %v1094
        %v2313 = vpop.permute.xlu0 %2312
        %2315 = vset.pattern.permute.xlu0 5
        %2316 = vperm.xlu0 %2315, %v1100
        %v2317 = vpop.permute.xlu0 %2316
        %2319 = vset.pattern.permute.xlu0 5
        %2320 = vperm.xlu0 %2319, %v1106
        %v2321 = vpop.permute.xlu0 %2320
        %2323 = vset.pattern.permute.xlu0 5
        %2324 = vperm.xlu0 %2323, %v1112
        %v2325 = vpop.permute.xlu0 %2324
        %2327 = vset.pattern.permute.xlu0 5
        %2328 = vperm.xlu0 %2327, %v1118
        %v2329 = vpop.permute.xlu0 %2328
        %2331 = vset.pattern.permute.xlu0 5
        %2332 = vperm.xlu0 %2331, %v1124
        %v2333 = vpop.permute.xlu0 %2332
        %2335 = vset.pattern.permute.xlu0 5
        %2336 = vperm.xlu0 %2335, %v1130
        %v2337 = vpop.permute.xlu0 %2336
        %2339 = vset.pattern.permute.xlu0 5
        %2340 = vperm.xlu0 %2339, %v1136
        %v2341 = vpop.permute.xlu0 %2340
        %2343 = vset.pattern.permute.xlu0 5
        %2344 = vperm.xlu0 %2343, %v1142
        %v2345 = vpop.permute.xlu0 %2344
        %2347 = vset.pattern.permute.xlu0 5
        %2348 = vperm.xlu0 %2347, %v1148
        %v2349 = vpop.permute.xlu0 %2348
        %2351 = vset.pattern.permute.xlu0 5
        %2352 = vperm.xlu0 %2351, %v1154
        %v2353 = vpop.permute.xlu0 %2352
        %2355 = vset.pattern.permute.xlu0 5
        %2356 = vperm.xlu0 %2355, %v1160
        %v2357 = vpop.permute.xlu0 %2356
        %2359 = vset.pattern.permute.xlu0 5
        %2360 = vperm.xlu0 %2359, %v1166
        %v2361 = vpop.permute.xlu0 %2360
        %2363 = vset.pattern.permute.xlu0 5
        %2364 = vperm.xlu0 %2363, %v1172
        %v2365 = vpop.permute.xlu0 %2364
        %2367 = vset.pattern.permute.xlu0 5
        %2368 = vperm.xlu0 %2367, %v1178
        %v2369 = vpop.permute.xlu0 %2368
        %v2371 = vsel %vm2291, %v2309, %v2195
        %v2372 = vsel %vm2292, %v2313, %v2196
        %v2373 = vsel %vm2293, %v2317, %v2197
        %v2374 = vsel %vm2294, %v2321, %v2198
        %v2375 = vsel %vm2295, %v2325, %v2199
        %v2376 = vsel %vm2296, %v2329, %v2200
        %v2377 = vsel %vm2297, %v2333, %v2201
        %v2378 = vsel %vm2298, %v2337, %v2202
        %v2379 = vsel %vm2299, %v2341, %v2203
        %v2380 = vsel %vm2300, %v2345, %v2204
        %v2381 = vsel %vm2301, %v2349, %v2205
        %v2382 = vsel %vm2302, %v2353, %v2206
        %v2383 = vsel %vm2303, %v2357, %v2207
        %v2384 = vsel %vm2304, %v2361, %v2208
        %v2385 = vsel %vm2305, %v2365, %v2209
        %v2386 = vsel %vm2306, %v2369, %v2210
        %2387 = vset.pattern.permute.xlu0 5
        %2388 = vperm.xlu0 %2387, %v1281
        %v2389 = vpop.permute.xlu0 %2388
        %2391 = vset.pattern.permute.xlu0 5
        %2392 = vperm.xlu0 %2391, %v1287
        %v2393 = vpop.permute.xlu0 %2392
        %2395 = vset.pattern.permute.xlu0 5
        %2396 = vperm.xlu0 %2395, %v1293
        %v2397 = vpop.permute.xlu0 %2396
        %2399 = vset.pattern.permute.xlu0 5
        %2400 = vperm.xlu0 %2399, %v1299
        %v2401 = vpop.permute.xlu0 %2400
        %2403 = vset.pattern.permute.xlu0 5
        %2404 = vperm.xlu0 %2403, %v1305
        %v2405 = vpop.permute.xlu0 %2404
        %2407 = vset.pattern.permute.xlu0 5
        %2408 = vperm.xlu0 %2407, %v1311
        %v2409 = vpop.permute.xlu0 %2408
        %2411 = vset.pattern.permute.xlu0 5
        %2412 = vperm.xlu0 %2411, %v1317
        %v2413 = vpop.permute.xlu0 %2412
        %2415 = vset.pattern.permute.xlu0 5
        %2416 = vperm.xlu0 %2415, %v1323
        %v2417 = vpop.permute.xlu0 %2416
        %2419 = vset.pattern.permute.xlu0 5
        %2420 = vperm.xlu0 %2419, %v1329
        %v2421 = vpop.permute.xlu0 %2420
        %2423 = vset.pattern.permute.xlu0 5
        %2424 = vperm.xlu0 %2423, %v1335
        %v2425 = vpop.permute.xlu0 %2424
        %2427 = vset.pattern.permute.xlu0 5
        %2428 = vperm.xlu0 %2427, %v1341
        %v2429 = vpop.permute.xlu0 %2428
        %2431 = vset.pattern.permute.xlu0 5
        %2432 = vperm.xlu0 %2431, %v1347
        %v2433 = vpop.permute.xlu0 %2432
        %2435 = vset.pattern.permute.xlu0 5
        %2436 = vperm.xlu0 %2435, %v1353
        %v2437 = vpop.permute.xlu0 %2436
        %2439 = vset.pattern.permute.xlu0 5
        %2440 = vperm.xlu0 %2439, %v1359
        %v2441 = vpop.permute.xlu0 %2440
        %2443 = vset.pattern.permute.xlu0 5
        %2444 = vperm.xlu0 %2443, %v1365
        %v2445 = vpop.permute.xlu0 %2444
        %2447 = vset.pattern.permute.xlu0 5
        %2448 = vperm.xlu0 %2447, %v1371
        %v2449 = vpop.permute.xlu0 %2448
        %v2451 = vsel %vm2291, %v2389, %v2275
        %v2452 = vsel %vm2292, %v2393, %v2276
        %v2453 = vsel %vm2293, %v2397, %v2277
        %v2454 = vsel %vm2294, %v2401, %v2278
        %v2455 = vsel %vm2295, %v2405, %v2279
        %v2456 = vsel %vm2296, %v2409, %v2280
        %v2457 = vsel %vm2297, %v2413, %v2281
        %v2458 = vsel %vm2298, %v2417, %v2282
        %v2459 = vsel %vm2299, %v2421, %v2283
        %v2460 = vsel %vm2300, %v2425, %v2284
        %v2461 = vsel %vm2301, %v2429, %v2285
        %v2462 = vsel %vm2302, %v2433, %v2286
        %v2463 = vsel %vm2303, %v2437, %v2287
        %v2464 = vsel %vm2304, %v2441, %v2288
        %v2465 = vsel %vm2305, %v2445, %v2289
        %v2466 = vsel %vm2306, %v2449, %v2290
        %vm2467 = vcmp.ge.s32.totalorder %v1411, 2
        %vm2468 = vcmp.ge.s32.totalorder %v1412, 2
        %vm2469 = vcmp.ge.s32.totalorder %v1413, 2
        %vm2470 = vcmp.ge.s32.totalorder %v1414, 2
        %vm2471 = vcmp.ge.s32.totalorder %v1415, 2
        %vm2472 = vcmp.ge.s32.totalorder %v1416, 2
        %vm2473 = vcmp.ge.s32.totalorder %v1417, 2
        %vm2474 = vcmp.ge.s32.totalorder %v1418, 2
        %vm2475 = vcmp.ge.s32.totalorder %v1419, 2
        %vm2476 = vcmp.ge.s32.totalorder %v1420, 2
        %vm2477 = vcmp.ge.s32.totalorder %v1421, 2
        %vm2478 = vcmp.ge.s32.totalorder %v1422, 2
        %vm2479 = vcmp.ge.s32.totalorder %v1423, 2
        %vm2480 = vcmp.ge.s32.totalorder %v1424, 2
        %vm2481 = vcmp.ge.s32.totalorder %v1425, 2
        %vm2482 = vcmp.ge.s32.totalorder %v1426, 2
        %2483 = vset.pattern.permute.xlu0 6
        %2484 = vperm.xlu0 %2483, %v1088
        %v2485 = vpop.permute.xlu0 %2484
        %2487 = vset.pattern.permute.xlu0 6
        %2488 = vperm.xlu0 %2487, %v1094
        %v2489 = vpop.permute.xlu0 %2488
        %2491 = vset.pattern.permute.xlu0 6
        %2492 = vperm.xlu0 %2491, %v1100
        %v2493 = vpop.permute.xlu0 %2492
        %2495 = vset.pattern.permute.xlu0 6
        %2496 = vperm.xlu0 %2495, %v1106
        %v2497 = vpop.permute.xlu0 %2496
        %2499 = vset.pattern.permute.xlu0 6
        %2500 = vperm.xlu0 %2499, %v1112
        %v2501 = vpop.permute.xlu0 %2500
        %2503 = vset.pattern.permute.xlu0 6
        %2504 = vperm.xlu0 %2503, %v1118
        %v2505 = vpop.permute.xlu0 %2504
        %2507 = vset.pattern.permute.xlu0 6
        %2508 = vperm.xlu0 %2507, %v1124
        %v2509 = vpop.permute.xlu0 %2508
        %2511 = vset.pattern.permute.xlu0 6
        %2512 = vperm.xlu0 %2511, %v1130
        %v2513 = vpop.permute.xlu0 %2512
        %2515 = vset.pattern.permute.xlu0 6
        %2516 = vperm.xlu0 %2515, %v1136
        %v2517 = vpop.permute.xlu0 %2516
        %2519 = vset.pattern.permute.xlu0 6
        %2520 = vperm.xlu0 %2519, %v1142
        %v2521 = vpop.permute.xlu0 %2520
        %2523 = vset.pattern.permute.xlu0 6
        %2524 = vperm.xlu0 %2523, %v1148
        %v2525 = vpop.permute.xlu0 %2524
        %2527 = vset.pattern.permute.xlu0 6
        %2528 = vperm.xlu0 %2527, %v1154
        %v2529 = vpop.permute.xlu0 %2528
        %2531 = vset.pattern.permute.xlu0 6
        %2532 = vperm.xlu0 %2531, %v1160
        %v2533 = vpop.permute.xlu0 %2532
        %2535 = vset.pattern.permute.xlu0 6
        %2536 = vperm.xlu0 %2535, %v1166
        %v2537 = vpop.permute.xlu0 %2536
        %2539 = vset.pattern.permute.xlu0 6
        %2540 = vperm.xlu0 %2539, %v1172
        %v2541 = vpop.permute.xlu0 %2540
        %2543 = vset.pattern.permute.xlu0 6
        %2544 = vperm.xlu0 %2543, %v1178
        %v2545 = vpop.permute.xlu0 %2544
        %v2547 = vsel %vm2467, %v2485, %v2371
        %v2548 = vsel %vm2468, %v2489, %v2372
        %v2549 = vsel %vm2469, %v2493, %v2373
        %v2550 = vsel %vm2470, %v2497, %v2374
        %v2551 = vsel %vm2471, %v2501, %v2375
        %v2552 = vsel %vm2472, %v2505, %v2376
        %v2553 = vsel %vm2473, %v2509, %v2377
        %v2554 = vsel %vm2474, %v2513, %v2378
        %v2555 = vsel %vm2475, %v2517, %v2379
        %v2556 = vsel %vm2476, %v2521, %v2380
        %v2557 = vsel %vm2477, %v2525, %v2381
        %v2558 = vsel %vm2478, %v2529, %v2382
        %v2559 = vsel %vm2479, %v2533, %v2383
        %v2560 = vsel %vm2480, %v2537, %v2384
        %v2561 = vsel %vm2481, %v2541, %v2385
        %v2562 = vsel %vm2482, %v2545, %v2386
        %2563 = vset.pattern.permute.xlu0 6
        %2564 = vperm.xlu0 %2563, %v1281
        %v2565 = vpop.permute.xlu0 %2564
        %2567 = vset.pattern.permute.xlu0 6
        %2568 = vperm.xlu0 %2567, %v1287
        %v2569 = vpop.permute.xlu0 %2568
        %2571 = vset.pattern.permute.xlu0 6
        %2572 = vperm.xlu0 %2571, %v1293
        %v2573 = vpop.permute.xlu0 %2572
        %2575 = vset.pattern.permute.xlu0 6
        %2576 = vperm.xlu0 %2575, %v1299
        %v2577 = vpop.permute.xlu0 %2576
        %2579 = vset.pattern.permute.xlu0 6
        %2580 = vperm.xlu0 %2579, %v1305
        %v2581 = vpop.permute.xlu0 %2580
        %2583 = vset.pattern.permute.xlu0 6
        %2584 = vperm.xlu0 %2583, %v1311
        %v2585 = vpop.permute.xlu0 %2584
        %2587 = vset.pattern.permute.xlu0 6
        %2588 = vperm.xlu0 %2587, %v1317
        %v2589 = vpop.permute.xlu0 %2588
        %2591 = vset.pattern.permute.xlu0 6
        %2592 = vperm.xlu0 %2591, %v1323
        %v2593 = vpop.permute.xlu0 %2592
        %2595 = vset.pattern.permute.xlu0 6
        %2596 = vperm.xlu0 %2595, %v1329
        %v2597 = vpop.permute.xlu0 %2596
        %2599 = vset.pattern.permute.xlu0 6
        %2600 = vperm.xlu0 %2599, %v1335
        %v2601 = vpop.permute.xlu0 %2600
        %2603 = vset.pattern.permute.xlu0 6
        %2604 = vperm.xlu0 %2603, %v1341
        %v2605 = vpop.permute.xlu0 %2604
        %2607 = vset.pattern.permute.xlu0 6
        %2608 = vperm.xlu0 %2607, %v1347
        %v2609 = vpop.permute.xlu0 %2608
        %2611 = vset.pattern.permute.xlu0 6
        %2612 = vperm.xlu0 %2611, %v1353
        %v2613 = vpop.permute.xlu0 %2612
        %2615 = vset.pattern.permute.xlu0 6
        %2616 = vperm.xlu0 %2615, %v1359
        %v2617 = vpop.permute.xlu0 %2616
        %2619 = vset.pattern.permute.xlu0 6
        %2620 = vperm.xlu0 %2619, %v1365
        %v2621 = vpop.permute.xlu0 %2620
        %2623 = vset.pattern.permute.xlu0 6
        %2624 = vperm.xlu0 %2623, %v1371
        %v2625 = vpop.permute.xlu0 %2624
        %v2627 = vsel %vm2467, %v2565, %v2451
        %v2628 = vsel %vm2468, %v2569, %v2452
        %v2629 = vsel %vm2469, %v2573, %v2453
        %v2630 = vsel %vm2470, %v2577, %v2454
        %v2631 = vsel %vm2471, %v2581, %v2455
        %v2632 = vsel %vm2472, %v2585, %v2456
        %v2633 = vsel %vm2473, %v2589, %v2457
        %v2634 = vsel %vm2474, %v2593, %v2458
        %v2635 = vsel %vm2475, %v2597, %v2459
        %v2636 = vsel %vm2476, %v2601, %v2460
        %v2637 = vsel %vm2477, %v2605, %v2461
        %v2638 = vsel %vm2478, %v2609, %v2462
        %v2639 = vsel %vm2479, %v2613, %v2463
        %v2640 = vsel %vm2480, %v2617, %v2464
        %v2641 = vsel %vm2481, %v2621, %v2465
        %v2642 = vsel %vm2482, %v2625, %v2466
        %vm2643 = vcmp.ge.s32.totalorder %v1411, 3
        %vm2644 = vcmp.ge.s32.totalorder %v1412, 3
        %vm2645 = vcmp.ge.s32.totalorder %v1413, 3
        %vm2646 = vcmp.ge.s32.totalorder %v1414, 3
        %vm2647 = vcmp.ge.s32.totalorder %v1415, 3
        %vm2648 = vcmp.ge.s32.totalorder %v1416, 3
        %vm2649 = vcmp.ge.s32.totalorder %v1417, 3
        %vm2650 = vcmp.ge.s32.totalorder %v1418, 3
        %vm2651 = vcmp.ge.s32.totalorder %v1419, 3
        %vm2652 = vcmp.ge.s32.totalorder %v1420, 3
        %vm2653 = vcmp.ge.s32.totalorder %v1421, 3
        %vm2654 = vcmp.ge.s32.totalorder %v1422, 3
        %vm2655 = vcmp.ge.s32.totalorder %v1423, 3
        %vm2656 = vcmp.ge.s32.totalorder %v1424, 3
        %vm2657 = vcmp.ge.s32.totalorder %v1425, 3
        %vm2658 = vcmp.ge.s32.totalorder %v1426, 3
        %2659 = vset.pattern.permute.xlu0 7
        %2660 = vperm.xlu0 %2659, %v1088
        %v2661 = vpop.permute.xlu0 %2660
        %2663 = vset.pattern.permute.xlu0 7
        %2664 = vperm.xlu0 %2663, %v1094
        %v2665 = vpop.permute.xlu0 %2664
        %2667 = vset.pattern.permute.xlu0 7
        %2668 = vperm.xlu0 %2667, %v1100
        %v2669 = vpop.permute.xlu0 %2668
        %2671 = vset.pattern.permute.xlu0 7
        %2672 = vperm.xlu0 %2671, %v1106
        %v2673 = vpop.permute.xlu0 %2672
        %2675 = vset.pattern.permute.xlu0 7
        %2676 = vperm.xlu0 %2675, %v1112
        %v2677 = vpop.permute.xlu0 %2676
        %2679 = vset.pattern.permute.xlu0 7
        %2680 = vperm.xlu0 %2679, %v1118
        %v2681 = vpop.permute.xlu0 %2680
        %2683 = vset.pattern.permute.xlu0 7
        %2684 = vperm.xlu0 %2683, %v1124
        %v2685 = vpop.permute.xlu0 %2684
        %2687 = vset.pattern.permute.xlu0 7
        %2688 = vperm.xlu0 %2687, %v1130
        %v2689 = vpop.permute.xlu0 %2688
        %2691 = vset.pattern.permute.xlu0 7
        %2692 = vperm.xlu0 %2691, %v1136
        %v2693 = vpop.permute.xlu0 %2692
        %2695 = vset.pattern.permute.xlu0 7
        %2696 = vperm.xlu0 %2695, %v1142
        %v2697 = vpop.permute.xlu0 %2696
        %2699 = vset.pattern.permute.xlu0 7
        %2700 = vperm.xlu0 %2699, %v1148
        %v2701 = vpop.permute.xlu0 %2700
        %2703 = vset.pattern.permute.xlu0 7
        %2704 = vperm.xlu0 %2703, %v1154
        %v2705 = vpop.permute.xlu0 %2704
        %2707 = vset.pattern.permute.xlu0 7
        %2708 = vperm.xlu0 %2707, %v1160
        %v2709 = vpop.permute.xlu0 %2708
        %2711 = vset.pattern.permute.xlu0 7
        %2712 = vperm.xlu0 %2711, %v1166
        %v2713 = vpop.permute.xlu0 %2712
        %2715 = vset.pattern.permute.xlu0 7
        %2716 = vperm.xlu0 %2715, %v1172
        %v2717 = vpop.permute.xlu0 %2716
        %2719 = vset.pattern.permute.xlu0 7
        %2720 = vperm.xlu0 %2719, %v1178
        %v2721 = vpop.permute.xlu0 %2720
        %v2723 = vsel %vm2643, %v2661, %v2547
        %v2724 = vsel %vm2644, %v2665, %v2548
        %v2725 = vsel %vm2645, %v2669, %v2549
        %v2726 = vsel %vm2646, %v2673, %v2550
        %v2727 = vsel %vm2647, %v2677, %v2551
        %v2728 = vsel %vm2648, %v2681, %v2552
        %v2729 = vsel %vm2649, %v2685, %v2553
        %v2730 = vsel %vm2650, %v2689, %v2554
        %v2731 = vsel %vm2651, %v2693, %v2555
        %v2732 = vsel %vm2652, %v2697, %v2556
        %v2733 = vsel %vm2653, %v2701, %v2557
        %v2734 = vsel %vm2654, %v2705, %v2558
        %v2735 = vsel %vm2655, %v2709, %v2559
        %v2736 = vsel %vm2656, %v2713, %v2560
        %v2737 = vsel %vm2657, %v2717, %v2561
        %v2738 = vsel %vm2658, %v2721, %v2562
        %2739 = vset.pattern.permute.xlu0 7
        %2740 = vperm.xlu0 %2739, %v1281
        %v2741 = vpop.permute.xlu0 %2740
        %2743 = vset.pattern.permute.xlu0 7
        %2744 = vperm.xlu0 %2743, %v1287
        %v2745 = vpop.permute.xlu0 %2744
        %2747 = vset.pattern.permute.xlu0 7
        %2748 = vperm.xlu0 %2747, %v1293
        %v2749 = vpop.permute.xlu0 %2748
        %2751 = vset.pattern.permute.xlu0 7
        %2752 = vperm.xlu0 %2751, %v1299
        %v2753 = vpop.permute.xlu0 %2752
        %2755 = vset.pattern.permute.xlu0 7
        %2756 = vperm.xlu0 %2755, %v1305
        %v2757 = vpop.permute.xlu0 %2756
        %2759 = vset.pattern.permute.xlu0 7
        %2760 = vperm.xlu0 %2759, %v1311
        %v2761 = vpop.permute.xlu0 %2760
        %2763 = vset.pattern.permute.xlu0 7
        %2764 = vperm.xlu0 %2763, %v1317
        %v2765 = vpop.permute.xlu0 %2764
        %2767 = vset.pattern.permute.xlu0 7
        %2768 = vperm.xlu0 %2767, %v1323
        %v2769 = vpop.permute.xlu0 %2768
        %2771 = vset.pattern.permute.xlu0 7
        %2772 = vperm.xlu0 %2771, %v1329
        %v2773 = vpop.permute.xlu0 %2772
        %2775 = vset.pattern.permute.xlu0 7
        %2776 = vperm.xlu0 %2775, %v1335
        %v2777 = vpop.permute.xlu0 %2776
        %2779 = vset.pattern.permute.xlu0 7
        %2780 = vperm.xlu0 %2779, %v1341
        %v2781 = vpop.permute.xlu0 %2780
        %2783 = vset.pattern.permute.xlu0 7
        %2784 = vperm.xlu0 %2783, %v1347
        %v2785 = vpop.permute.xlu0 %2784
        %2787 = vset.pattern.permute.xlu0 7
        %2788 = vperm.xlu0 %2787, %v1353
        %v2789 = vpop.permute.xlu0 %2788
        %2791 = vset.pattern.permute.xlu0 7
        %2792 = vperm.xlu0 %2791, %v1359
        %v2793 = vpop.permute.xlu0 %2792
        %2795 = vset.pattern.permute.xlu0 7
        %2796 = vperm.xlu0 %2795, %v1365
        %v2797 = vpop.permute.xlu0 %2796
        %2799 = vset.pattern.permute.xlu0 7
        %2800 = vperm.xlu0 %2799, %v1371
        %v2801 = vpop.permute.xlu0 %2800
        %v2803 = vsel %vm2643, %v2741, %v2627
        %v2804 = vsel %vm2644, %v2745, %v2628
        %v2805 = vsel %vm2645, %v2749, %v2629
        %v2806 = vsel %vm2646, %v2753, %v2630
        %v2807 = vsel %vm2647, %v2757, %v2631
        %v2808 = vsel %vm2648, %v2761, %v2632
        %v2809 = vsel %vm2649, %v2765, %v2633
        %v2810 = vsel %vm2650, %v2769, %v2634
        %v2811 = vsel %vm2651, %v2773, %v2635
        %v2812 = vsel %vm2652, %v2777, %v2636
        %v2813 = vsel %vm2653, %v2781, %v2637
        %v2814 = vsel %vm2654, %v2785, %v2638
        %v2815 = vsel %vm2655, %v2789, %v2639
        %v2816 = vsel %vm2656, %v2793, %v2640
        %v2817 = vsel %vm2657, %v2797, %v2641
        %v2818 = vsel %vm2658, %v2801, %v2642
        %vm2819 = vcmp.ge.s32.totalorder %v1411, 4
        %vm2820 = vcmp.ge.s32.totalorder %v1412, 4
        %vm2821 = vcmp.ge.s32.totalorder %v1413, 4
        %vm2822 = vcmp.ge.s32.totalorder %v1414, 4
        %vm2823 = vcmp.ge.s32.totalorder %v1415, 4
        %vm2824 = vcmp.ge.s32.totalorder %v1416, 4
        %vm2825 = vcmp.ge.s32.totalorder %v1417, 4
        %vm2826 = vcmp.ge.s32.totalorder %v1418, 4
        %vm2827 = vcmp.ge.s32.totalorder %v1419, 4
        %vm2828 = vcmp.ge.s32.totalorder %v1420, 4
        %vm2829 = vcmp.ge.s32.totalorder %v1421, 4
        %vm2830 = vcmp.ge.s32.totalorder %v1422, 4
        %vm2831 = vcmp.ge.s32.totalorder %v1423, 4
        %vm2832 = vcmp.ge.s32.totalorder %v1424, 4
        %vm2833 = vcmp.ge.s32.totalorder %v1425, 4
        %vm2834 = vcmp.ge.s32.totalorder %v1426, 4
        %2835 = vset.pattern.permute.xlu0 8
        %2836 = vperm.xlu0 %2835, %v1088
        %v2837 = vpop.permute.xlu0 %2836
        %2839 = vset.pattern.permute.xlu0 8
        %2840 = vperm.xlu0 %2839, %v1094
        %v2841 = vpop.permute.xlu0 %2840
        %2843 = vset.pattern.permute.xlu0 8
        %2844 = vperm.xlu0 %2843, %v1100
        %v2845 = vpop.permute.xlu0 %2844
        %2847 = vset.pattern.permute.xlu0 8
        %2848 = vperm.xlu0 %2847, %v1106
        %v2849 = vpop.permute.xlu0 %2848
        %2851 = vset.pattern.permute.xlu0 8
        %2852 = vperm.xlu0 %2851, %v1112
        %v2853 = vpop.permute.xlu0 %2852
        %2855 = vset.pattern.permute.xlu0 8
        %2856 = vperm.xlu0 %2855, %v1118
        %v2857 = vpop.permute.xlu0 %2856
        %2859 = vset.pattern.permute.xlu0 8
        %2860 = vperm.xlu0 %2859, %v1124
        %v2861 = vpop.permute.xlu0 %2860
        %2863 = vset.pattern.permute.xlu0 8
        %2864 = vperm.xlu0 %2863, %v1130
        %v2865 = vpop.permute.xlu0 %2864
        %2867 = vset.pattern.permute.xlu0 8
        %2868 = vperm.xlu0 %2867, %v1136
        %v2869 = vpop.permute.xlu0 %2868
        %2871 = vset.pattern.permute.xlu0 8
        %2872 = vperm.xlu0 %2871, %v1142
        %v2873 = vpop.permute.xlu0 %2872
        %2875 = vset.pattern.permute.xlu0 8
        %2876 = vperm.xlu0 %2875, %v1148
        %v2877 = vpop.permute.xlu0 %2876
        %2879 = vset.pattern.permute.xlu0 8
        %2880 = vperm.xlu0 %2879, %v1154
        %v2881 = vpop.permute.xlu0 %2880
        %2883 = vset.pattern.permute.xlu0 8
        %2884 = vperm.xlu0 %2883, %v1160
        %v2885 = vpop.permute.xlu0 %2884
        %2887 = vset.pattern.permute.xlu0 8
        %2888 = vperm.xlu0 %2887, %v1166
        %v2889 = vpop.permute.xlu0 %2888
        %2891 = vset.pattern.permute.xlu0 8
        %2892 = vperm.xlu0 %2891, %v1172
        %v2893 = vpop.permute.xlu0 %2892
        %2895 = vset.pattern.permute.xlu0 8
        %2896 = vperm.xlu0 %2895, %v1178
        %v2897 = vpop.permute.xlu0 %2896
        %v2899 = vsel %vm2819, %v2837, %v2723
        %v2900 = vsel %vm2820, %v2841, %v2724
        %v2901 = vsel %vm2821, %v2845, %v2725
        %v2902 = vsel %vm2822, %v2849, %v2726
        %v2903 = vsel %vm2823, %v2853, %v2727
        %v2904 = vsel %vm2824, %v2857, %v2728
        %v2905 = vsel %vm2825, %v2861, %v2729
        %v2906 = vsel %vm2826, %v2865, %v2730
        %v2907 = vsel %vm2827, %v2869, %v2731
        %v2908 = vsel %vm2828, %v2873, %v2732
        %v2909 = vsel %vm2829, %v2877, %v2733
        %v2910 = vsel %vm2830, %v2881, %v2734
        %v2911 = vsel %vm2831, %v2885, %v2735
        %v2912 = vsel %vm2832, %v2889, %v2736
        %v2913 = vsel %vm2833, %v2893, %v2737
        %v2914 = vsel %vm2834, %v2897, %v2738
        %2915 = vset.pattern.permute.xlu0 8
        %2916 = vperm.xlu0 %2915, %v1281
        %v2917 = vpop.permute.xlu0 %2916
        %2919 = vset.pattern.permute.xlu0 8
        %2920 = vperm.xlu0 %2919, %v1287
        %v2921 = vpop.permute.xlu0 %2920
        %2923 = vset.pattern.permute.xlu0 8
        %2924 = vperm.xlu0 %2923, %v1293
        %v2925 = vpop.permute.xlu0 %2924
        %2927 = vset.pattern.permute.xlu0 8
        %2928 = vperm.xlu0 %2927, %v1299
        %v2929 = vpop.permute.xlu0 %2928
        %2931 = vset.pattern.permute.xlu0 8
        %2932 = vperm.xlu0 %2931, %v1305
        %v2933 = vpop.permute.xlu0 %2932
        %2935 = vset.pattern.permute.xlu0 8
        %2936 = vperm.xlu0 %2935, %v1311
        %v2937 = vpop.permute.xlu0 %2936
        %2939 = vset.pattern.permute.xlu0 8
        %2940 = vperm.xlu0 %2939, %v1317
        %v2941 = vpop.permute.xlu0 %2940
        %2943 = vset.pattern.permute.xlu0 8
        %2944 = vperm.xlu0 %2943, %v1323
        %v2945 = vpop.permute.xlu0 %2944
        %2947 = vset.pattern.permute.xlu0 8
        %2948 = vperm.xlu0 %2947, %v1329
        %v2949 = vpop.permute.xlu0 %2948
        %2951 = vset.pattern.permute.xlu0 8
        %2952 = vperm.xlu0 %2951, %v1335
        %v2953 = vpop.permute.xlu0 %2952
        %2955 = vset.pattern.permute.xlu0 8
        %2956 = vperm.xlu0 %2955, %v1341
        %v2957 = vpop.permute.xlu0 %2956
        %2959 = vset.pattern.permute.xlu0 8
        %2960 = vperm.xlu0 %2959, %v1347
        %v2961 = vpop.permute.xlu0 %2960
        %2963 = vset.pattern.permute.xlu0 8
        %2964 = vperm.xlu0 %2963, %v1353
        %v2965 = vpop.permute.xlu0 %2964
        %2967 = vset.pattern.permute.xlu0 8
        %2968 = vperm.xlu0 %2967, %v1359
        %v2969 = vpop.permute.xlu0 %2968
        %2971 = vset.pattern.permute.xlu0 8
        %2972 = vperm.xlu0 %2971, %v1365
        %v2973 = vpop.permute.xlu0 %2972
        %2975 = vset.pattern.permute.xlu0 8
        %2976 = vperm.xlu0 %2975, %v1371
        %v2977 = vpop.permute.xlu0 %2976
        %v2979 = vsel %vm2819, %v2917, %v2803
        %v2980 = vsel %vm2820, %v2921, %v2804
        %v2981 = vsel %vm2821, %v2925, %v2805
        %v2982 = vsel %vm2822, %v2929, %v2806
        %v2983 = vsel %vm2823, %v2933, %v2807
        %v2984 = vsel %vm2824, %v2937, %v2808
        %v2985 = vsel %vm2825, %v2941, %v2809
        %v2986 = vsel %vm2826, %v2945, %v2810
        %v2987 = vsel %vm2827, %v2949, %v2811
        %v2988 = vsel %vm2828, %v2953, %v2812
        %v2989 = vsel %vm2829, %v2957, %v2813
        %v2990 = vsel %vm2830, %v2961, %v2814
        %v2991 = vsel %vm2831, %v2965, %v2815
        %v2992 = vsel %vm2832, %v2969, %v2816
        %v2993 = vsel %vm2833, %v2973, %v2817
        %v2994 = vsel %vm2834, %v2977, %v2818
        %v2995 = vadd.f32 %v1090, %v2899
        %v2996 = vadd.f32 %v1096, %v2900
        %v2997 = vadd.f32 %v1102, %v2901
        %v2998 = vadd.f32 %v1108, %v2902
        %v2999 = vadd.f32 %v1114, %v2903
        %v3000 = vadd.f32 %v1120, %v2904
        %v3001 = vadd.f32 %v1126, %v2905
        %v3002 = vadd.f32 %v1132, %v2906
        %v3003 = vadd.f32 %v1138, %v2907
        %v3004 = vadd.f32 %v1144, %v2908
        %v3005 = vadd.f32 %v1150, %v2909
        %v3006 = vadd.f32 %v1156, %v2910
        %v3007 = vadd.f32 %v1162, %v2911
        %v3008 = vadd.f32 %v1168, %v2912
        %v3009 = vadd.f32 %v1174, %v2913
        %v3010 = vadd.f32 %v1180, %v2914
        %v3011 = vadd.f32 %v1283, %v2979
        %v3012 = vadd.f32 %v1289, %v2980
        %v3013 = vadd.f32 %v1295, %v2981
        %v3014 = vadd.f32 %v1301, %v2982
        %v3015 = vadd.f32 %v1307, %v2983
        %v3016 = vadd.f32 %v1313, %v2984
        %v3017 = vadd.f32 %v1319, %v2985
        %v3018 = vadd.f32 %v1325, %v2986
        %v3019 = vadd.f32 %v1331, %v2987
        %v3020 = vadd.f32 %v1337, %v2988
        %v3021 = vadd.f32 %v1343, %v2989
        %v3022 = vadd.f32 %v1349, %v2990
        %v3023 = vadd.f32 %v1355, %v2991
        %v3024 = vadd.f32 %v1361, %v2992
        %v3025 = vadd.f32 %v1367, %v2993
        %v3026 = vadd.f32 %v1373, %v2994
        %v3027 = vld [vmem:[%s359] sm:$0x1]
        %vm3028 = vcmp.ne.s32.totalorder %v3027, 0
        %v3029 = vsel %vm3028, 1, 0
        %v3030 = vlaneseq
        %v3031 = vshrl.u32 %v3030, 7
        %v3032 = vsub.s32 0, %v3031
        %v3033 = vrot.slane %v3029, %v3032
        %vm3034 = vcmp.eq.s32.totalorder %v3033, 1
        %v3035 = vsel %vm3034, -1e+18, %v2995
        %v3036 = vsel %vm3034, -1e+18, %v2996
        %v3037 = vsel %vm3034, -1e+18, %v2997
        %v3038 = vsel %vm3034, -1e+18, %v2998
        %v3039 = vsel %vm3034, -1e+18, %v2999
        %v3040 = vsel %vm3034, -1e+18, %v3000
        %v3041 = vsel %vm3034, -1e+18, %v3001
        %v3042 = vsel %vm3034, -1e+18, %v3002
        %v3043 = vsel %vm3034, -1e+18, %v3003
        %v3044 = vsel %vm3034, -1e+18, %v3004
        %v3045 = vsel %vm3034, -1e+18, %v3005
        %v3046 = vsel %vm3034, -1e+18, %v3006
        %v3047 = vsel %vm3034, -1e+18, %v3007
        %v3048 = vsel %vm3034, -1e+18, %v3008
        %v3049 = vsel %vm3034, -1e+18, %v3009
        %v3050 = vsel %vm3034, -1e+18, %v3010
        %3051 = vst [vmem:[%s344] sm:$0xff] %v3035
        %3052 = vst [vmem:[%s344 + $0x8] sm:$0xff] %v3036
        %3053 = vst [vmem:[%s344 + $0x10] sm:$0xff] %v3037
        %3054 = vst [vmem:[%s344 + $0x18] sm:$0xff] %v3038
        %3055 = vst [vmem:[%s344 + $0x20] sm:$0xff] %v3039
        %3056 = vst [vmem:[%s344 + $0x28] sm:$0xff] %v3040
        %3057 = vst [vmem:[%s344 + $0x30] sm:$0xff] %v3041
        %3058 = vst [vmem:[%s344 + $0x38] sm:$0xff] %v3042
        %3059 = vst [vmem:[%s344 + $0x40] sm:$0xff] %v3043
        %3060 = vst [vmem:[%s344 + $0x48] sm:$0xff] %v3044
        %3061 = vst [vmem:[%s344 + $0x50] sm:$0xff] %v3045
        %3062 = vst [vmem:[%s344 + $0x58] sm:$0xff] %v3046
        %3063 = vst [vmem:[%s344 + $0x60] sm:$0xff] %v3047
        %3064 = vst [vmem:[%s344 + $0x68] sm:$0xff] %v3048
        %3065 = vst [vmem:[%s344 + $0x70] sm:$0xff] %v3049
        %3066 = vst [vmem:[%s344 + $0x78] sm:$0xff] %v3050
        %v3067 = vsel %vm3034, -1e+18, %v3011
        %v3068 = vsel %vm3034, -1e+18, %v3012
        %v3069 = vsel %vm3034, -1e+18, %v3013
        %v3070 = vsel %vm3034, -1e+18, %v3014
        %v3071 = vsel %vm3034, -1e+18, %v3015
        %v3072 = vsel %vm3034, -1e+18, %v3016
        %v3073 = vsel %vm3034, -1e+18, %v3017
        %v3074 = vsel %vm3034, -1e+18, %v3018
        %v3075 = vsel %vm3034, -1e+18, %v3019
        %v3076 = vsel %vm3034, -1e+18, %v3020
        %v3077 = vsel %vm3034, -1e+18, %v3021
        %v3078 = vsel %vm3034, -1e+18, %v3022
        %v3079 = vsel %vm3034, -1e+18, %v3023
        %v3080 = vsel %vm3034, -1e+18, %v3024
        %v3081 = vsel %vm3034, -1e+18, %v3025
        %v3082 = vsel %vm3034, -1e+18, %v3026
        %3083 = vst [vmem:[%s351] sm:$0xff] %v3067
        %3084 = vst [vmem:[%s351 + $0x8] sm:$0xff] %v3068
        %3085 = vst [vmem:[%s351 + $0x10] sm:$0xff] %v3069
        %3086 = vst [vmem:[%s351 + $0x18] sm:$0xff] %v3070
        %3087 = vst [vmem:[%s351 + $0x20] sm:$0xff] %v3071
        %3088 = vst [vmem:[%s351 + $0x28] sm:$0xff] %v3072
        %3089 = vst [vmem:[%s351 + $0x30] sm:$0xff] %v3073
        %3090 = vst [vmem:[%s351 + $0x38] sm:$0xff] %v3074
        %3091 = vst [vmem:[%s351 + $0x40] sm:$0xff] %v3075
        %3092 = vst [vmem:[%s351 + $0x48] sm:$0xff] %v3076
        %3093 = vst [vmem:[%s351 + $0x50] sm:$0xff] %v3077
        %3094 = vst [vmem:[%s351 + $0x58] sm:$0xff] %v3078
        %3095 = vst [vmem:[%s351 + $0x60] sm:$0xff] %v3079
        %3096 = vst [vmem:[%s351 + $0x68] sm:$0xff] %v3080
        %3097 = vst [vmem:[%s351 + $0x70] sm:$0xff] %v3081
        %3098 = vst [vmem:[%s351 + $0x78] sm:$0xff] %v3082
        %s3099 = sand.u32 %s206, 1
        %s3100 = scalar_lea.sflag [#allocation5], %s3099
        %s3101 = sand.u32 %s206, 1
        %s3102 = smul.addr %s3101, 128
        %s3103 = scalar_lea.vmem [#allocation6], %s3102
        %s3104 = sand.u32 %s234, 1
        %s3105 = scalar_lea.sflag [#allocation8], %s3104
        %s3106 = sand.u32 %s234, 1
        %s3107 = smul.addr %s3106, 128
        %s3108 = scalar_lea.vmem [#allocation7], %s3107
        // Predicated region
        $region57: #{tpu_custom_call.1} parent=47 // pred_check
          %p3109 = pneg %p216
        $region58: #{tpu_custom_call.1} parent=47 // pred_check_branch
          %3111 = sbr.rel (%p3109) target = $region60
        $region59: #{tpu_custom_call.1} parent=47 // pred_region
          %s3112 = smul.u32 16, %s32
          %s3114 = ssub.s32 2048, 2048
          %3115 = vsyncadd %s3100, %s3114
          %s3116 = smul.addr %s31, 16
          %s3117 = sadd.s32 %s3112, %s3116
          %s3118 = smul.addr %s3117, 128
          %s3119 = scalar_lea.hbm %s7, %s3118
          %s3120 = sshll.u32 %s3103, 4
          %s3121 = int_to_ptr.vmem [resolvable:$true] %s3120
          %3126 = dma.vmem_to_hbm [thread:$0]  %s3121, 2048, %s3119, %s3100, 128, 128, 8
        $region60: #{tpu_custom_call.1} parent=47 // pred_fallthru
          _
        // Predicated region
        $region61: #{tpu_custom_call.1} parent=47 // pred_check
          %p3127 = pneg %p244
        $region62: #{tpu_custom_call.1} parent=47 // pred_check_branch
          %3129 = sbr.rel (%p3127) target = $region64
        $region63: #{tpu_custom_call.1} parent=47 // pred_region
          %s3130 = smul.u32 16, %s32
          %s3132 = ssub.s32 2048, 2048
          %3133 = vsyncadd %s3105, %s3132
          %s3134 = smul.addr %s31, 16
          %s3135 = sadd.s32 %s3130, %s3134
          %s3136 = smul.addr %s3135, 128
          %s3137 = scalar_lea.hbm %s8, %s3136
          %s3138 = sshll.u32 %s3108, 4
          %s3139 = int_to_ptr.vmem [resolvable:$true] %s3138
          %3144 = dma.vmem_to_hbm [thread:$0]  %s3139, 2048, %s3137, %s3105, 128, 128, 8
        $region64: #{tpu_custom_call.1} parent=47 // pred_fallthru
          _
      $region48: #{tpu_custom_call.1} parent=5 // pred_fallthru
        _
      %p3145 = scmp.le.s32.totalorder 2, %s22
      // Predicated region
      $region65: #{tpu_custom_call.1} parent=5 // pred_check
        %p3146 = pneg %p3145
      $region66: #{tpu_custom_call.1} parent=5 // pred_check_branch
        %3148 = sbr.rel (%p3146) target = $region68
      $region67: #{tpu_custom_call.1} parent=5 // pred_region
        %s3149 = ssub.s32 %s22, 2
        // Predicated region
        $region69: #{tpu_custom_call.1} parent=67 // pred_check
          %p3150 = pneg %p222
        $region70: #{tpu_custom_call.1} parent=67 // pred_check_branch
          %3152 = sbr.rel (%p3150) target = $region72
        $region71: #{tpu_custom_call.1} parent=67 // pred_region
          %s3153 = sand.u32 %s207, 1
          %s3154 = scalar_lea.sflag [#allocation5], %s3153
          %s3155 = sand.u32 %s207, 1
          %s3156 = smul.addr %s3155, 128
          %s3157 = scalar_lea.vmem [#allocation6], %s3156
          %3158 = dma.done %s3154, 2048
        $region72: #{tpu_custom_call.1} parent=67 // pred_fallthru
          _
        // Predicated region
        $region73: #{tpu_custom_call.1} parent=67 // pred_check
          %p3159 = pneg %p250
        $region74: #{tpu_custom_call.1} parent=67 // pred_check_branch
          %3161 = sbr.rel (%p3159) target = $region76
        $region75: #{tpu_custom_call.1} parent=67 // pred_region
          %s3162 = sand.u32 %s235, 1
          %s3163 = scalar_lea.sflag [#allocation8], %s3162
          %s3164 = sand.u32 %s235, 1
          %s3165 = smul.addr %s3164, 128
          %s3166 = scalar_lea.vmem [#allocation7], %s3165
          %3167 = dma.done %s3163, 2048
        $region76: #{tpu_custom_call.1} parent=67 // pred_fallthru
          _
      $region68: #{tpu_custom_call.1} parent=5 // pred_fallthru
        _
    $region6: #{tpu_custom_call.1} parent=1 // loop_footer
      %s26 = sadd.s32 1, %s22
    $region7: #{tpu_custom_call.1} parent=1 // loop_footer_branch
      %21 = sbr.rel target = $region3
    $region8: #{tpu_custom_call.1} parent=1 // loop_exit
      _
    %3168 = vsyncpa [#allocation4], 1
    %s3169 = scalar_lea.sflag [#allocation4], 1
    %3170 = vsyncpa %s3169, 1
    %3171 = vsyncpa [#allocation5], 1
    %s3172 = scalar_lea.sflag [#allocation5], 1
    %3173 = vsyncpa %s3172, 1
    %3174 = vsyncpa [#allocation8], 1
    %s3175 = scalar_lea.sflag [#allocation8], 1
    %3176 = vsyncpa %s3175, 1

</llo_original>
